<compile_context>
chip_gen: v7x
topology: tpu7x:2x2x1
jax: 0.10.0
libtpu: 0.0.40
codegen_flags: <defaults>
</compile_context>

<pallas_src>
import jax
import jax.numpy as jnp
from jax import lax
from jax.experimental import pallas as pl
from jax.experimental.pallas import tpu as pltpu

# Static network dims (MNIST Net: 28 -conv5-> 24 -pool-> 12 -conv5-> 8 -pool-> 4)
KSZ = 5
C1, C2 = 10, 20          # real conv channel counts
F1, F2 = 50, 10          # fc1 / fc2 widths
H1, P1 = 24, 12          # conv1 out / pooled1 spatial
H2, P2 = 8, 4            # conv2 out / pooled2 spatial
CP = 128                 # lane-dense channel width (zero padded lanes stay zero)
KC = KSZ * C1            # 50  = packed (kw, cin) contraction width for conv2
FG = CP // P2            # 32  = per-column feature group width for fc1 packing


# ------------------------------ fused kernel -------------------------------- #

def _pool2x2(src_ref, n_out):
    """2x2 max pool of a (B, 2n, 2n, CP) VMEM scratch ref -> (B, n, n, CP) value."""
    v00 = src_ref[:, pl.ds(0, n_out, 2), pl.ds(0, n_out, 2), :]
    v01 = src_ref[:, pl.ds(0, n_out, 2), pl.ds(1, n_out, 2), :]
    v10 = src_ref[:, pl.ds(1, n_out, 2), pl.ds(0, n_out, 2), :]
    v11 = src_ref[:, pl.ds(1, n_out, 2), pl.ds(1, n_out, 2), :]
    return jnp.maximum(jnp.maximum(v00, v01), jnp.maximum(v10, v11))


def _net_kernel(p1_ref, w1_ref, b1_ref, w2_ref, b2_ref,
                wf1_ref, bf1_ref, wf2_ref, bf2_ref,
                out_ref,
                y1_ref, a1_ref, a1p_ref, y2_ref, a2_ref):
    B = y1_ref.shape[0]

    # ---- conv1: single MXU matmul over the im2col patch matrix -----------------
    # Weight/bias lanes >= C1 are zero, so y1/a1 lanes >= C1 are EXACTLY zero;
    # the roll-based lane packing below relies on this invariant.
    y1 = jnp.dot(p1_ref[...], w1_ref[...],
                 preferred_element_type=jnp.float32) + b1_ref[...]      # (B*576, 128)
    y1_ref[...] = y1.reshape(B, H1, H1, CP)                             # rows (b, oh, ow)

    # ---- maxpool(2) + relu ------------------------------------------------------
    a1_ref[...] = jnp.maximum(_pool2x2(y1_ref, P1), 0.0)                # (B,12,12,128)

    # ---- lane-pack (kw, cin):  a1p[b,h,ow, kw*C1+ci] = a1[b,h,ow+kw,ci] ---------
    a1p = a1_ref[:, :, pl.ds(0, H2), :].reshape(B * P1 * H2, CP)
    for kw in range(1, KSZ):
        win = a1_ref[:, :, pl.ds(kw, H2), :].reshape(B * P1 * H2, CP)
        a1p = a1p + pltpu.roll(win, shift=kw * C1, axis=1)              # zero lanes -> exact
    a1p_ref[...] = a1p.reshape(B, P1, H2, CP)

    # ---- conv2: 5 taps over kh, each one K=50 MXU matmul ------------------------
    acc = jnp.zeros((B * H2 * H2, CP), jnp.float32)
    for kh in range(KSZ):
        lhs = a1p_ref[:, pl.ds(kh, H2), :, :].reshape(B * H2 * H2, CP)[:, :KC]
        acc = acc + jnp.dot(lhs, w2_ref[kh], preferred_element_type=jnp.float32)
    y2_ref[...] = (acc + b2_ref[...]).reshape(B, H2, H2, CP)            # lanes>=C2 are zero

    # ---- dropout2d (eval: identity) -> maxpool(2) + relu ------------------------
    a2_ref[...] = jnp.maximum(_pool2x2(y2_ref, P2), 0.0)                # (B,4,4,128)

    # ---- fc1: 4 K=128 matmuls over lane-packed (w, c) feature groups ------------
    # tile_h[b, w*FG + c] = a2[b, h, w, c]  (c < C2 < FG, padded lanes are zero)
    h1 = jnp.zeros((B, F1), jnp.float32)
    for hh in range(P2):
        tile = a2_ref[:, hh, 0, :]
        for w in range(1, P2):
            tile = tile + pltpu.roll(a2_ref[:, hh, w, :], shift=w * FG, axis=1)
        h1 = h1 + jnp.dot(tile, wf1_ref[hh], preferred_element_type=jnp.float32)
    h1 = jnp.maximum(h1 + bf1_ref[...], 0.0)                            # (B, 50)

    # ---- dropout (eval: identity) -> fc2 -> log_softmax on logical (B,10) -------
    logits = jnp.dot(h1, wf2_ref[...], preferred_element_type=jnp.float32) + bf2_ref[...]
    m = jnp.max(logits, axis=-1, keepdims=True)
    s = logits - m
    out_ref[...] = s - jnp.log(jnp.sum(jnp.exp(s), axis=-1, keepdims=True))


# --------------------------------- wrappers ---------------------------------- #

def pack_params(p):
    """Pack weights into kernel layouts ONCE (cache the result; do NOT re-pack per call)."""
    w1p = jnp.pad(p["conv1_w"].reshape(C1, KSZ * KSZ).T, ((0, 0), (0, CP - C1)))    # (25,128)
    b1p = jnp.pad(p["conv1_b"].reshape(1, C1), ((0, 0), (0, CP - C1)))              # (1,128)
    w2p = p["conv2_w"].transpose(2, 3, 1, 0).reshape(KSZ, KC, C2)                   # (5,50,20) [kh, kw*ci, co]
    w2p = jnp.pad(w2p, ((0, 0), (0, 0), (0, CP - C2)))                              # (5,50,128)
    b2p = jnp.pad(p["conv2_b"].reshape(1, C2), ((0, 0), (0, CP - C2)))              # (1,128)
    wf1 = p["fc1_w"].reshape(F1, C2, P2, P2).transpose(2, 3, 1, 0)                  # (4,4,20,50) [h,w,c,f]
    wf1 = jnp.pad(wf1, ((0, 0), (0, 0), (0, FG - C2), (0, 0))).reshape(P2, CP, F1)  # (4,128,50)
    bf1 = p["fc1_b"].reshape(1, F1)                                                 # (1,50)
    wf2 = p["fc2_w"].T                                                              # (50,10)
    bf2 = p["fc2_b"].reshape(1, F2)                                                 # (1,10)
    return dict(w1=w1p, b1=b1p, w2=w2p, b2=b2p, wf1=wf1, bf1=bf1, wf2=wf2, bf2=bf2)


@jax.jit
def net_forward(x, pk):
    B = x.shape[0]
    # conv1 im2col emitted directly in NHWC (C=1, so NCHW->NHWC is a free reshape);
    # the (B,24,24,25)->(B*576,25) reshape is layout preserving -- no transpose op.
    x_nhwc = x.reshape(B, 28, 28, 1)
    patches = lax.conv_general_dilated_patches(
        x_nhwc, filter_shape=(KSZ, KSZ), window_strides=(1, 1), padding="VALID",
        dimension_numbers=("NHWC", "HWIO", "NHWC"))                    # (B,24,24,25), (kh,kw) order
    p1 = patches.reshape(B * H1 * H1, KSZ * KSZ)

    vmem = pl.BlockSpec(memory_space=pltpu.MemorySpace.VMEM)
    return pl.pallas_call(
        _net_kernel,
        out_shape=jax.ShapeDtypeStruct((B, F2), jnp.float32),
        in_specs=[vmem] * 9,
        out_specs=vmem,
        scratch_shapes=[
            pltpu.VMEM((B, H1, H1, CP), jnp.float32),   # conv1 output (pre-pool)
            pltpu.VMEM((B, P1, P1, CP), jnp.float32),   # pooled1
            pltpu.VMEM((B, P1, H2, CP), jnp.float32),   # pooled1, (kw,cin) lane-packed
            pltpu.VMEM((B, H2, H2, CP), jnp.float32),   # conv2 output (pre-pool)
            pltpu.VMEM((B, P2, P2, CP), jnp.float32),   # pooled2
        ],
    )(p1, pk["w1"], pk["b1"], pk["w2"], pk["b2"],
      pk["wf1"], pk["bf1"], pk["wf2"], pk["bf2"])


# ---------------------- parameters & pure-JAX reference ---------------------- #

def init_params(key):
    ks = jax.random.split(key, 8)

    def u(k, shape, fan_in):
        bound = 1.0 / jnp.sqrt(fan_in)
        return jax.random.uniform(k, shape, jnp.float32, -bound, bound)

    return {
        "conv1_w": u(ks[0], (10, 1, 5, 5), 1 * 5 * 5),
        "conv1_b": u(ks[1], (10,), 1 * 5 * 5),
        "conv2_w": u(ks[2], (20, 10, 5, 5), 10 * 5 * 5),
        "conv2_b": u(ks[3], (20,), 10 * 5 * 5),
        "fc1_w":   u(ks[4], (50, 320), 320),
        "fc1_b":   u(ks[5], (50,), 320),
        "fc2_w":   u(ks[6], (10, 50), 50),
        "fc2_b":   u(ks[7], (10,), 50),
    }


def reference_forward(x, p):
    dn = ("NCHW", "OIHW", "NCHW")
    y = lax.conv_general_dilated(x, p["conv1_w"], (1, 1), "VALID", dimension_numbers=dn)
    y = y + p["conv1_b"][None, :, None, None]
    y = lax.reduce_window(y, -jnp.inf, lax.max, (1, 1, 2, 2), (1, 1, 2, 2), "VALID")
    y = jax.nn.relu(y)
    y = lax.conv_general_dilated(y, p["conv2_w"], (1, 1), "VALID", dimension_numbers=dn)
    y = y + p["conv2_b"][None, :, None, None]
    y = lax.reduce_window(y, -jnp.inf, lax.max, (1, 1, 2, 2), (1, 1, 2, 2), "VALID")
    y = jax.nn.relu(y)
    y = y.reshape(-1, 320)
    y = jax.nn.relu(y @ p["fc1_w"].T + p["fc1_b"])
    y = y @ p["fc2_w"].T + p["fc2_b"]
    return jax.nn.log_softmax(y, axis=-1)


# ---------------------------------- main ------------------------------------ #

if __name__ == "__main__":
    key = jax.random.PRNGKey(0)
    k_x, k_p = jax.random.split(key)
    # 28x28 input is forced by the 320-feature flatten: 28 -conv5-> 24 -pool-> 12
    # -conv5-> 8 -pool-> 4, and 20*4*4 = 320.
    x = jax.random.normal(k_x, (2, 1, 28, 28), jnp.float32)
    params = init_params(k_p)
    packed = pack_params(params)        # packed once, outside the per-call jit

    out = jax.block_until_ready(net_forward(x, packed))
    ref = jax.block_until_ready(reference_forward(x, params))

    assert out.shape == (2, 10), out.shape
    assert jnp.allclose(out, ref, rtol=1e-4, atol=2e-4), float(jnp.max(jnp.abs(out - ref)))
    print("KERNEL_OK")
</pallas_src>

<mosaic_0001>
module attributes {stable_mosaic.version = 11 : i64} {
  func.func @_net_kernel(%arg0: memref<1152x25xf32, #tpu.memory_space<vmem>>, %arg1: memref<25x128xf32, #tpu.memory_space<vmem>>, %arg2: memref<1x128xf32, #tpu.memory_space<vmem>>, %arg3: memref<5x50x128xf32, #tpu.memory_space<vmem>>, %arg4: memref<1x128xf32, #tpu.memory_space<vmem>>, %arg5: memref<4x128x50xf32, #tpu.memory_space<vmem>>, %arg6: memref<1x50xf32, #tpu.memory_space<vmem>>, %arg7: memref<50x10xf32, #tpu.memory_space<vmem>>, %arg8: memref<1x10xf32, #tpu.memory_space<vmem>>, %arg9: memref<2x10xf32, #tpu.memory_space<vmem>>, %arg10: memref<2x24x24x128xf32, #tpu.memory_space<vmem>>, %arg11: memref<2x12x12x128xf32, #tpu.memory_space<vmem>>, %arg12: memref<2x12x8x128xf32, #tpu.memory_space<vmem>>, %arg13: memref<2x8x8x128xf32, #tpu.memory_space<vmem>>, %arg14: memref<2x4x4x128xf32, #tpu.memory_space<vmem>>) attributes {dimension_semantics = [], scalar_prefetch = 0 : i64, scratch_operands = 5 : i64, tpu.core_type = #tpu.core_type<tc>} {
    %c0 = arith.constant 0 : index
    %c0_0 = arith.constant 0 : index
    %0 = vector.load %arg0[%c0, %c0_0] : memref<1152x25xf32, #tpu.memory_space<vmem>>, vector<1152x25xf32>
    %c0_1 = arith.constant 0 : index
    %c0_2 = arith.constant 0 : index
    %1 = vector.load %arg1[%c0_1, %c0_2] : memref<25x128xf32, #tpu.memory_space<vmem>>, vector<25x128xf32>
    %cst = arith.constant dense<0.000000e+00> : vector<1152x128xf32>
    %2 = tpu.matmul %0, %1, %cst {dimension_numbers = #tpu.dot_dimension_numbers<[1], [0], [0], [1], [0, 0, 1, 1], [], []>} : vector<1152x25xf32>, vector<25x128xf32>, vector<1152x128xf32> -> vector<1152x128xf32>
    %c0_3 = arith.constant 0 : index
    %c0_4 = arith.constant 0 : index
    %3 = vector.load %arg2[%c0_3, %c0_4] : memref<1x128xf32, #tpu.memory_space<vmem>>, vector<1x128xf32>
    %4 = vector.broadcast %3 : vector<1x128xf32> to vector<1152x128xf32>
    %5 = arith.addf %2, %4 : vector<1152x128xf32>
    %6 = vector.shape_cast %5 : vector<1152x128xf32> to vector<2x24x24x128xf32>
    %c0_5 = arith.constant 0 : index
    %c0_6 = arith.constant 0 : index
    %c0_7 = arith.constant 0 : index
    %c0_8 = arith.constant 0 : index
    %7 = vector.load %arg10[%c0_5, %c0_6, %c0_7, %c0_8] : memref<2x24x24x128xf32, #tpu.memory_space<vmem>>, vector<2x24x24x128xf32>
    tpu.vector_store %arg10[%c0_5, %c0_6, %c0_7, %c0_8], %6 {strides = array<i32>} : memref<2x24x24x128xf32, #tpu.memory_space<vmem>>, vector<2x24x24x128xf32>,
    %c0_9 = arith.constant 0 : index
    %c0_10 = arith.constant 0 : index
    %c0_11 = arith.constant 0 : index
    %c0_12 = arith.constant 0 : index
    %8 = tpu.strided_load %arg10[%c0_9, %c0_10, %c0_11, %c0_12] {strides = array<i32: 1, 2, 2, 1>} : memref<2x24x24x128xf32, #tpu.memory_space<vmem>>, vector<2x12x12x128xf32>
    %c0_13 = arith.constant 0 : index
    %c0_14 = arith.constant 0 : index
    %c1 = arith.constant 1 : index
    %c0_15 = arith.constant 0 : index
    %9 = tpu.strided_load %arg10[%c0_13, %c0_14, %c1, %c0_15] {strides = array<i32: 1, 2, 2, 1>} : memref<2x24x24x128xf32, #tpu.memory_space<vmem>>, vector<2x12x12x128xf32>
    %c0_16 = arith.constant 0 : index
    %c1_17 = arith.constant 1 : index
    %c0_18 = arith.constant 0 : index
    %c0_19 = arith.constant 0 : index
    %10 = tpu.strided_load %arg10[%c0_16, %c1_17, %c0_18, %c0_19] {strides = array<i32: 1, 2, 2, 1>} : memref<2x24x24x128xf32, #tpu.memory_space<vmem>>, vector<2x12x12x128xf32>
    %c0_20 = arith.constant 0 : index
    %c1_21 = arith.constant 1 : index
    %c1_22 = arith.constant 1 : index
    %c0_23 = arith.constant 0 : index
    %11 = tpu.strided_load %arg10[%c0_20, %c1_21, %c1_22, %c0_23] {strides = array<i32: 1, 2, 2, 1>} : memref<2x24x24x128xf32, #tpu.memory_space<vmem>>, vector<2x12x12x128xf32>
    %12 = arith.maximumf %8, %9 : vector<2x12x12x128xf32>
    %13 = arith.maximumf %10, %11 : vector<2x12x12x128xf32>
    %14 = arith.maximumf %12, %13 : vector<2x12x12x128xf32>
    %cst_24 = arith.constant 0.000000e+00 : f32
    %15 = vector.broadcast %cst_24 : f32 to vector<2x12x12x128xf32>
    %16 = arith.maximumf %14, %15 : vector<2x12x12x128xf32>
    %c0_25 = arith.constant 0 : index
    %c0_26 = arith.constant 0 : index
    %c0_27 = arith.constant 0 : index
    %c0_28 = arith.constant 0 : index
    %17 = vector.load %arg11[%c0_25, %c0_26, %c0_27, %c0_28] : memref<2x12x12x128xf32, #tpu.memory_space<vmem>>, vector<2x12x12x128xf32>
    tpu.vector_store %arg11[%c0_25, %c0_26, %c0_27, %c0_28], %16 {strides = array<i32>} : memref<2x12x12x128xf32, #tpu.memory_space<vmem>>, vector<2x12x12x128xf32>,
    %c0_29 = arith.constant 0 : index
    %c0_30 = arith.constant 0 : index
    %c0_31 = arith.constant 0 : index
    %c0_32 = arith.constant 0 : index
    %18 = vector.load %arg11[%c0_29, %c0_30, %c0_31, %c0_32] : memref<2x12x12x128xf32, #tpu.memory_space<vmem>>, vector<2x12x8x128xf32>
    %19 = vector.shape_cast %18 : vector<2x12x8x128xf32> to vector<192x128xf32>
    %c0_33 = arith.constant 0 : index
    %c0_34 = arith.constant 0 : index
    %c1_35 = arith.constant 1 : index
    %c0_36 = arith.constant 0 : index
    %20 = vector.load %arg11[%c0_33, %c0_34, %c1_35, %c0_36] : memref<2x12x12x128xf32, #tpu.memory_space<vmem>>, vector<2x12x8x128xf32>
    %21 = vector.shape_cast %20 : vector<2x12x8x128xf32> to vector<192x128xf32>
    %c10_i32 = arith.constant 10 : i32
    %22 = tpu.dynamic_rotate %21 by %c10_i32 dim 1 : vector<192x128xf32>, i32 -> vector<192x128xf32>
    %23 = arith.addf %19, %22 : vector<192x128xf32>
    %c0_37 = arith.constant 0 : index
    %c0_38 = arith.constant 0 : index
    %c2 = arith.constant 2 : index
    %c0_39 = arith.constant 0 : index
    %24 = vector.load %arg11[%c0_37, %c0_38, %c2, %c0_39] : memref<2x12x12x128xf32, #tpu.memory_space<vmem>>, vector<2x12x8x128xf32>
    %25 = vector.shape_cast %24 : vector<2x12x8x128xf32> to vector<192x128xf32>
    %c20_i32 = arith.constant 20 : i32
    %26 = tpu.dynamic_rotate %25 by %c20_i32 dim 1 : vector<192x128xf32>, i32 -> vector<192x128xf32>
    %27 = arith.addf %23, %26 : vector<192x128xf32>
    %c0_40 = arith.constant 0 : index
    %c0_41 = arith.constant 0 : index
    %c3 = arith.constant 3 : index
    %c0_42 = arith.constant 0 : index
    %28 = vector.load %arg11[%c0_40, %c0_41, %c3, %c0_42] : memref<2x12x12x128xf32, #tpu.memory_space<vmem>>, vector<2x12x8x128xf32>
    %29 = vector.shape_cast %28 : vector<2x12x8x128xf32> to vector<192x128xf32>
    %c30_i32 = arith.constant 30 : i32
    %30 = tpu.dynamic_rotate %29 by %c30_i32 dim 1 : vector<192x128xf32>, i32 -> vector<192x128xf32>
    %31 = arith.addf %27, %30 : vector<192x128xf32>
    %c0_43 = arith.constant 0 : index
    %c0_44 = arith.constant 0 : index
    %c4 = arith.constant 4 : index
    %c0_45 = arith.constant 0 : index
    %32 = vector.load %arg11[%c0_43, %c0_44, %c4, %c0_45] : memref<2x12x12x128xf32, #tpu.memory_space<vmem>>, vector<2x12x8x128xf32>
    %33 = vector.shape_cast %32 : vector<2x12x8x128xf32> to vector<192x128xf32>
    %c40_i32 = arith.constant 40 : i32
    %34 = tpu.dynamic_rotate %33 by %c40_i32 dim 1 : vector<192x128xf32>, i32 -> vector<192x128xf32>
    %35 = arith.addf %31, %34 : vector<192x128xf32>
    %36 = vector.shape_cast %35 : vector<192x128xf32> to vector<2x12x8x128xf32>
    %c0_46 = arith.constant 0 : index
    %c0_47 = arith.constant 0 : index
    %c0_48 = arith.constant 0 : index
    %c0_49 = arith.constant 0 : index
    %37 = vector.load %arg12[%c0_46, %c0_47, %c0_48, %c0_49] : memref<2x12x8x128xf32, #tpu.memory_space<vmem>>, vector<2x12x8x128xf32>
    tpu.vector_store %arg12[%c0_46, %c0_47, %c0_48, %c0_49], %36 {strides = array<i32>} : memref<2x12x8x128xf32, #tpu.memory_space<vmem>>, vector<2x12x8x128xf32>,
    %cst_50 = arith.constant 0.000000e+00 : f32
    %38 = vector.broadcast %cst_50 : f32 to vector<128x128xf32>
    %c0_51 = arith.constant 0 : index
    %c0_52 = arith.constant 0 : index
    %c0_53 = arith.constant 0 : index
    %c0_54 = arith.constant 0 : index
    %39 = vector.load %arg12[%c0_51, %c0_52, %c0_53, %c0_54] : memref<2x12x8x128xf32, #tpu.memory_space<vmem>>, vector<2x8x8x128xf32>
    %40 = vector.shape_cast %39 : vector<2x8x8x128xf32> to vector<128x128xf32>
    %41 = vector.extract_strided_slice %40 {offsets = [0, 0], sizes = [128, 50], strides = [1, 1]} : vector<128x128xf32> to vector<128x50xf32>
    %c0_55 = arith.constant 0 : index
    %c0_56 = arith.constant 0 : index
    %c0_57 = arith.constant 0 : index
    %42 = vector.load %arg3[%c0_55, %c0_56, %c0_57] : memref<5x50x128xf32, #tpu.memory_space<vmem>>, vector<1x50x128xf32>
    %43 = vector.shape_cast %42 : vector<1x50x128xf32> to vector<50x128xf32>
    %cst_58 = arith.constant dense<0.000000e+00> : vector<128x128xf32>
    %44 = tpu.matmul %41, %43, %cst_58 {dimension_numbers = #tpu.dot_dimension_numbers<[1], [0], [0], [1], [0, 0, 1, 1], [], []>} : vector<128x50xf32>, vector<50x128xf32>, vector<128x128xf32> -> vector<128x128xf32>
    %45 = arith.addf %38, %44 : vector<128x128xf32>
    %c0_59 = arith.constant 0 : index
    %c1_60 = arith.constant 1 : index
    %c0_61 = arith.constant 0 : index
    %c0_62 = arith.constant 0 : index
    %46 = vector.load %arg12[%c0_59, %c1_60, %c0_61, %c0_62] : memref<2x12x8x128xf32, #tpu.memory_space<vmem>>, vector<2x8x8x128xf32>
    %47 = vector.shape_cast %46 : vector<2x8x8x128xf32> to vector<128x128xf32>
    %48 = vector.extract_strided_slice %47 {offsets = [0, 0], sizes = [128, 50], strides = [1, 1]} : vector<128x128xf32> to vector<128x50xf32>
    %c1_63 = arith.constant 1 : index
    %c0_64 = arith.constant 0 : index
    %c0_65 = arith.constant 0 : index
    %49 = vector.load %arg3[%c1_63, %c0_64, %c0_65] : memref<5x50x128xf32, #tpu.memory_space<vmem>>, vector<1x50x128xf32>
    %50 = vector.shape_cast %49 : vector<1x50x128xf32> to vector<50x128xf32>
    %cst_66 = arith.constant dense<0.000000e+00> : vector<128x128xf32>
    %51 = tpu.matmul %48, %50, %cst_66 {dimension_numbers = #tpu.dot_dimension_numbers<[1], [0], [0], [1], [0, 0, 1, 1], [], []>} : vector<128x50xf32>, vector<50x128xf32>, vector<128x128xf32> -> vector<128x128xf32>
    %52 = arith.addf %45, %51 : vector<128x128xf32>
    %c0_67 = arith.constant 0 : index
    %c2_68 = arith.constant 2 : index
    %c0_69 = arith.constant 0 : index
    %c0_70 = arith.constant 0 : index
    %53 = vector.load %arg12[%c0_67, %c2_68, %c0_69, %c0_70] : memref<2x12x8x128xf32, #tpu.memory_space<vmem>>, vector<2x8x8x128xf32>
    %54 = vector.shape_cast %53 : vector<2x8x8x128xf32> to vector<128x128xf32>
    %55 = vector.extract_strided_slice %54 {offsets = [0, 0], sizes = [128, 50], strides = [1, 1]} : vector<128x128xf32> to vector<128x50xf32>
    %c2_71 = arith.constant 2 : index
    %c0_72 = arith.constant 0 : index
    %c0_73 = arith.constant 0 : index
    %56 = vector.load %arg3[%c2_71, %c0_72, %c0_73] : memref<5x50x128xf32, #tpu.memory_space<vmem>>, vector<1x50x128xf32>
    %57 = vector.shape_cast %56 : vector<1x50x128xf32> to vector<50x128xf32>
    %cst_74 = arith.constant dense<0.000000e+00> : vector<128x128xf32>
    %58 = tpu.matmul %55, %57, %cst_74 {dimension_numbers = #tpu.dot_dimension_numbers<[1], [0], [0], [1], [0, 0, 1, 1], [], []>} : vector<128x50xf32>, vector<50x128xf32>, vector<128x128xf32> -> vector<128x128xf32>
    %59 = arith.addf %52, %58 : vector<128x128xf32>
    %c0_75 = arith.constant 0 : index
    %c3_76 = arith.constant 3 : index
    %c0_77 = arith.constant 0 : index
    %c0_78 = arith.constant 0 : index
    %60 = vector.load %arg12[%c0_75, %c3_76, %c0_77, %c0_78] : memref<2x12x8x128xf32, #tpu.memory_space<vmem>>, vector<2x8x8x128xf32>
    %61 = vector.shape_cast %60 : vector<2x8x8x128xf32> to vector<128x128xf32>
    %62 = vector.extract_strided_slice %61 {offsets = [0, 0], sizes = [128, 50], strides = [1, 1]} : vector<128x128xf32> to vector<128x50xf32>
    %c3_79 = arith.constant 3 : index
    %c0_80 = arith.constant 0 : index
    %c0_81 = arith.constant 0 : index
    %63 = vector.load %arg3[%c3_79, %c0_80, %c0_81] : memref<5x50x128xf32, #tpu.memory_space<vmem>>, vector<1x50x128xf32>
    %64 = vector.shape_cast %63 : vector<1x50x128xf32> to vector<50x128xf32>
    %cst_82 = arith.constant dense<0.000000e+00> : vector<128x128xf32>
    %65 = tpu.matmul %62, %64, %cst_82 {dimension_numbers = #tpu.dot_dimension_numbers<[1], [0], [0], [1], [0, 0, 1, 1], [], []>} : vector<128x50xf32>, vector<50x128xf32>, vector<128x128xf32> -> vector<128x128xf32>
    %66 = arith.addf %59, %65 : vector<128x128xf32>
    %c0_83 = arith.constant 0 : index
    %c4_84 = arith.constant 4 : index
    %c0_85 = arith.constant 0 : index
    %c0_86 = arith.constant 0 : index
    %67 = vector.load %arg12[%c0_83, %c4_84, %c0_85, %c0_86] : memref<2x12x8x128xf32, #tpu.memory_space<vmem>>, vector<2x8x8x128xf32>
    %68 = vector.shape_cast %67 : vector<2x8x8x128xf32> to vector<128x128xf32>
    %69 = vector.extract_strided_slice %68 {offsets = [0, 0], sizes = [128, 50], strides = [1, 1]} : vector<128x128xf32> to vector<128x50xf32>
    %c4_87 = arith.constant 4 : index
    %c0_88 = arith.constant 0 : index
    %c0_89 = arith.constant 0 : index
    %70 = vector.load %arg3[%c4_87, %c0_88, %c0_89] : memref<5x50x128xf32, #tpu.memory_space<vmem>>, vector<1x50x128xf32>
    %71 = vector.shape_cast %70 : vector<1x50x128xf32> to vector<50x128xf32>
    %cst_90 = arith.constant dense<0.000000e+00> : vector<128x128xf32>
    %72 = tpu.matmul %69, %71, %cst_90 {dimension_numbers = #tpu.dot_dimension_numbers<[1], [0], [0], [1], [0, 0, 1, 1], [], []>} : vector<128x50xf32>, vector<50x128xf32>, vector<128x128xf32> -> vector<128x128xf32>
    %73 = arith.addf %66, %72 : vector<128x128xf32>
    %c0_91 = arith.constant 0 : index
    %c0_92 = arith.constant 0 : index
    %74 = vector.load %arg4[%c0_91, %c0_92] : memref<1x128xf32, #tpu.memory_space<vmem>>, vector<1x128xf32>
    %75 = vector.broadcast %74 : vector<1x128xf32> to vector<128x128xf32>
    %76 = arith.addf %73, %75 : vector<128x128xf32>
    %77 = vector.shape_cast %76 : vector<128x128xf32> to vector<2x8x8x128xf32>
    %c0_93 = arith.constant 0 : index
    %c0_94 = arith.constant 0 : index
    %c0_95 = arith.constant 0 : index
    %c0_96 = arith.constant 0 : index
    %78 = vector.load %arg13[%c0_93, %c0_94, %c0_95, %c0_96] : memref<2x8x8x128xf32, #tpu.memory_space<vmem>>, vector<2x8x8x128xf32>
    tpu.vector_store %arg13[%c0_93, %c0_94, %c0_95, %c0_96], %77 {strides = array<i32>} : memref<2x8x8x128xf32, #tpu.memory_space<vmem>>, vector<2x8x8x128xf32>,
    %c0_97 = arith.constant 0 : index
    %c0_98 = arith.constant 0 : index
    %c0_99 = arith.constant 0 : index
    %c0_100 = arith.constant 0 : index
    %79 = tpu.strided_load %arg13[%c0_97, %c0_98, %c0_99, %c0_100] {strides = array<i32: 1, 2, 2, 1>} : memref<2x8x8x128xf32, #tpu.memory_space<vmem>>, vector<2x4x4x128xf32>
    %c0_101 = arith.constant 0 : index
    %c0_102 = arith.constant 0 : index
    %c1_103 = arith.constant 1 : index
    %c0_104 = arith.constant 0 : index
    %80 = tpu.strided_load %arg13[%c0_101, %c0_102, %c1_103, %c0_104] {strides = array<i32: 1, 2, 2, 1>} : memref<2x8x8x128xf32, #tpu.memory_space<vmem>>, vector<2x4x4x128xf32>
    %c0_105 = arith.constant 0 : index
    %c1_106 = arith.constant 1 : index
    %c0_107 = arith.constant 0 : index
    %c0_108 = arith.constant 0 : index
    %81 = tpu.strided_load %arg13[%c0_105, %c1_106, %c0_107, %c0_108] {strides = array<i32: 1, 2, 2, 1>} : memref<2x8x8x128xf32, #tpu.memory_space<vmem>>, vector<2x4x4x128xf32>
    %c0_109 = arith.constant 0 : index
    %c1_110 = arith.constant 1 : index
    %c1_111 = arith.constant 1 : index
    %c0_112 = arith.constant 0 : index
    %82 = tpu.strided_load %arg13[%c0_109, %c1_110, %c1_111, %c0_112] {strides = array<i32: 1, 2, 2, 1>} : memref<2x8x8x128xf32, #tpu.memory_space<vmem>>, vector<2x4x4x128xf32>
    %83 = arith.maximumf %79, %80 : vector<2x4x4x128xf32>
    %84 = arith.maximumf %81, %82 : vector<2x4x4x128xf32>
    %85 = arith.maximumf %83, %84 : vector<2x4x4x128xf32>
    %cst_113 = arith.constant 0.000000e+00 : f32
    %86 = vector.broadcast %cst_113 : f32 to vector<2x4x4x128xf32>
    %87 = arith.maximumf %85, %86 : vector<2x4x4x128xf32>
    %c0_114 = arith.constant 0 : index
    %c0_115 = arith.constant 0 : index
    %c0_116 = arith.constant 0 : index
    %c0_117 = arith.constant 0 : index
    %88 = vector.load %arg14[%c0_114, %c0_115, %c0_116, %c0_117] : memref<2x4x4x128xf32, #tpu.memory_space<vmem>>, vector<2x4x4x128xf32>
    tpu.vector_store %arg14[%c0_114, %c0_115, %c0_116, %c0_117], %87 {strides = array<i32>} : memref<2x4x4x128xf32, #tpu.memory_space<vmem>>, vector<2x4x4x128xf32>,
    %cst_118 = arith.constant 0.000000e+00 : f32
    %89 = vector.broadcast %cst_118 : f32 to vector<2x50xf32>
    %c0_119 = arith.constant 0 : index
    %c0_120 = arith.constant 0 : index
    %c0_121 = arith.constant 0 : index
    %c0_122 = arith.constant 0 : index
    %90 = vector.load %arg14[%c0_119, %c0_120, %c0_121, %c0_122] : memref<2x4x4x128xf32, #tpu.memory_space<vmem>>, vector<2x1x1x128xf32>
    %91 = vector.shape_cast %90 : vector<2x1x1x128xf32> to vector<2x128xf32>
    %c0_123 = arith.constant 0 : index
    %c0_124 = arith.constant 0 : index
    %c1_125 = arith.constant 1 : index
    %c0_126 = arith.constant 0 : index
    %92 = vector.load %arg14[%c0_123, %c0_124, %c1_125, %c0_126] : memref<2x4x4x128xf32, #tpu.memory_space<vmem>>, vector<2x1x1x128xf32>
    %93 = vector.shape_cast %92 : vector<2x1x1x128xf32> to vector<2x128xf32>
    %c32_i32 = arith.constant 32 : i32
    %94 = tpu.dynamic_rotate %93 by %c32_i32 dim 1 : vector<2x128xf32>, i32 -> vector<2x128xf32>
    %95 = arith.addf %91, %94 : vector<2x128xf32>
    %c0_127 = arith.constant 0 : index
    %c0_128 = arith.constant 0 : index
    %c2_129 = arith.constant 2 : index
    %c0_130 = arith.constant 0 : index
    %96 = vector.load %arg14[%c0_127, %c0_128, %c2_129, %c0_130] : memref<2x4x4x128xf32, #tpu.memory_space<vmem>>, vector<2x1x1x128xf32>
    %97 = vector.shape_cast %96 : vector<2x1x1x128xf32> to vector<2x128xf32>
    %c64_i32 = arith.constant 64 : i32
    %98 = tpu.dynamic_rotate %97 by %c64_i32 dim 1 : vector<2x128xf32>, i32 -> vector<2x128xf32>
    %99 = arith.addf %95, %98 : vector<2x128xf32>
    %c0_131 = arith.constant 0 : index
    %c0_132 = arith.constant 0 : index
    %c3_133 = arith.constant 3 : index
    %c0_134 = arith.constant 0 : index
    %100 = vector.load %arg14[%c0_131, %c0_132, %c3_133, %c0_134] : memref<2x4x4x128xf32, #tpu.memory_space<vmem>>, vector<2x1x1x128xf32>
    %101 = vector.shape_cast %100 : vector<2x1x1x128xf32> to vector<2x128xf32>
    %c96_i32 = arith.constant 96 : i32
    %102 = tpu.dynamic_rotate %101 by %c96_i32 dim 1 : vector<2x128xf32>, i32 -> vector<2x128xf32>
    %103 = arith.addf %99, %102 : vector<2x128xf32>
    %c0_135 = arith.constant 0 : index
    %c0_136 = arith.constant 0 : index
    %c0_137 = arith.constant 0 : index
    %104 = vector.load %arg5[%c0_135, %c0_136, %c0_137] : memref<4x128x50xf32, #tpu.memory_space<vmem>>, vector<1x128x50xf32>
    %105 = vector.shape_cast %104 : vector<1x128x50xf32> to vector<128x50xf32>
    %cst_138 = arith.constant dense<0.000000e+00> : vector<2x50xf32>
    %106 = tpu.matmul %103, %105, %cst_138 {dimension_numbers = #tpu.dot_dimension_numbers<[1], [0], [0], [1], [0, 0, 1, 1], [], []>} : vector<2x128xf32>, vector<128x50xf32>, vector<2x50xf32> -> vector<2x50xf32>
    %107 = arith.addf %89, %106 : vector<2x50xf32>
    %c0_139 = arith.constant 0 : index
    %c1_140 = arith.constant 1 : index
    %c0_141 = arith.constant 0 : index
    %c0_142 = arith.constant 0 : index
    %108 = vector.load %arg14[%c0_139, %c1_140, %c0_141, %c0_142] : memref<2x4x4x128xf32, #tpu.memory_space<vmem>>, vector<2x1x1x128xf32>
    %109 = vector.shape_cast %108 : vector<2x1x1x128xf32> to vector<2x128xf32>
    %c0_143 = arith.constant 0 : index
    %c1_144 = arith.constant 1 : index
    %c1_145 = arith.constant 1 : index
    %c0_146 = arith.constant 0 : index
    %110 = vector.load %arg14[%c0_143, %c1_144, %c1_145, %c0_146] : memref<2x4x4x128xf32, #tpu.memory_space<vmem>>, vector<2x1x1x128xf32>
    %111 = vector.shape_cast %110 : vector<2x1x1x128xf32> to vector<2x128xf32>
    %c32_i32_147 = arith.constant 32 : i32
    %112 = tpu.dynamic_rotate %111 by %c32_i32_147 dim 1 : vector<2x128xf32>, i32 -> vector<2x128xf32>
    %113 = arith.addf %109, %112 : vector<2x128xf32>
    %c0_148 = arith.constant 0 : index
    %c1_149 = arith.constant 1 : index
    %c2_150 = arith.constant 2 : index
    %c0_151 = arith.constant 0 : index
    %114 = vector.load %arg14[%c0_148, %c1_149, %c2_150, %c0_151] : memref<2x4x4x128xf32, #tpu.memory_space<vmem>>, vector<2x1x1x128xf32>
    %115 = vector.shape_cast %114 : vector<2x1x1x128xf32> to vector<2x128xf32>
    %c64_i32_152 = arith.constant 64 : i32
    %116 = tpu.dynamic_rotate %115 by %c64_i32_152 dim 1 : vector<2x128xf32>, i32 -> vector<2x128xf32>
    %117 = arith.addf %113, %116 : vector<2x128xf32>
    %c0_153 = arith.constant 0 : index
    %c1_154 = arith.constant 1 : index
    %c3_155 = arith.constant 3 : index
    %c0_156 = arith.constant 0 : index
    %118 = vector.load %arg14[%c0_153, %c1_154, %c3_155, %c0_156] : memref<2x4x4x128xf32, #tpu.memory_space<vmem>>, vector<2x1x1x128xf32>
    %119 = vector.shape_cast %118 : vector<2x1x1x128xf32> to vector<2x128xf32>
    %c96_i32_157 = arith.constant 96 : i32
    %120 = tpu.dynamic_rotate %119 by %c96_i32_157 dim 1 : vector<2x128xf32>, i32 -> vector<2x128xf32>
    %121 = arith.addf %117, %120 : vector<2x128xf32>
    %c1_158 = arith.constant 1 : index
    %c0_159 = arith.constant 0 : index
    %c0_160 = arith.constant 0 : index
    %122 = vector.load %arg5[%c1_158, %c0_159, %c0_160] : memref<4x128x50xf32, #tpu.memory_space<vmem>>, vector<1x128x50xf32>
    %123 = vector.shape_cast %122 : vector<1x128x50xf32> to vector<128x50xf32>
    %cst_161 = arith.constant dense<0.000000e+00> : vector<2x50xf32>
    %124 = tpu.matmul %121, %123, %cst_161 {dimension_numbers = #tpu.dot_dimension_numbers<[1], [0], [0], [1], [0, 0, 1, 1], [], []>} : vector<2x128xf32>, vector<128x50xf32>, vector<2x50xf32> -> vector<2x50xf32>
    %125 = arith.addf %107, %124 : vector<2x50xf32>
    %c0_162 = arith.constant 0 : index
    %c2_163 = arith.constant 2 : index
    %c0_164 = arith.constant 0 : index
    %c0_165 = arith.constant 0 : index
    %126 = vector.load %arg14[%c0_162, %c2_163, %c0_164, %c0_165] : memref<2x4x4x128xf32, #tpu.memory_space<vmem>>, vector<2x1x1x128xf32>
    %127 = vector.shape_cast %126 : vector<2x1x1x128xf32> to vector<2x128xf32>
    %c0_166 = arith.constant 0 : index
    %c2_167 = arith.constant 2 : index
    %c1_168 = arith.constant 1 : index
    %c0_169 = arith.constant 0 : index
    %128 = vector.load %arg14[%c0_166, %c2_167, %c1_168, %c0_169] : memref<2x4x4x128xf32, #tpu.memory_space<vmem>>, vector<2x1x1x128xf32>
    %129 = vector.shape_cast %128 : vector<2x1x1x128xf32> to vector<2x128xf32>
    %c32_i32_170 = arith.constant 32 : i32
    %130 = tpu.dynamic_rotate %129 by %c32_i32_170 dim 1 : vector<2x128xf32>, i32 -> vector<2x128xf32>
    %131 = arith.addf %127, %130 : vector<2x128xf32>
    %c0_171 = arith.constant 0 : index
    %c2_172 = arith.constant 2 : index
    %c2_173 = arith.constant 2 : index
    %c0_174 = arith.constant 0 : index
    %132 = vector.load %arg14[%c0_171, %c2_172, %c2_173, %c0_174] : memref<2x4x4x128xf32, #tpu.memory_space<vmem>>, vector<2x1x1x128xf32>
    %133 = vector.shape_cast %132 : vector<2x1x1x128xf32> to vector<2x128xf32>
    %c64_i32_175 = arith.constant 64 : i32
    %134 = tpu.dynamic_rotate %133 by %c64_i32_175 dim 1 : vector<2x128xf32>, i32 -> vector<2x128xf32>
    %135 = arith.addf %131, %134 : vector<2x128xf32>
    %c0_176 = arith.constant 0 : index
    %c2_177 = arith.constant 2 : index
    %c3_178 = arith.constant 3 : index
    %c0_179 = arith.constant 0 : index
    %136 = vector.load %arg14[%c0_176, %c2_177, %c3_178, %c0_179] : memref<2x4x4x128xf32, #tpu.memory_space<vmem>>, vector<2x1x1x128xf32>
    %137 = vector.shape_cast %136 : vector<2x1x1x128xf32> to vector<2x128xf32>
    %c96_i32_180 = arith.constant 96 : i32
    %138 = tpu.dynamic_rotate %137 by %c96_i32_180 dim 1 : vector<2x128xf32>, i32 -> vector<2x128xf32>
    %139 = arith.addf %135, %138 : vector<2x128xf32>
    %c2_181 = arith.constant 2 : index
    %c0_182 = arith.constant 0 : index
    %c0_183 = arith.constant 0 : index
    %140 = vector.load %arg5[%c2_181, %c0_182, %c0_183] : memref<4x128x50xf32, #tpu.memory_space<vmem>>, vector<1x128x50xf32>
    %141 = vector.shape_cast %140 : vector<1x128x50xf32> to vector<128x50xf32>
    %cst_184 = arith.constant dense<0.000000e+00> : vector<2x50xf32>
    %142 = tpu.matmul %139, %141, %cst_184 {dimension_numbers = #tpu.dot_dimension_numbers<[1], [0], [0], [1], [0, 0, 1, 1], [], []>} : vector<2x128xf32>, vector<128x50xf32>, vector<2x50xf32> -> vector<2x50xf32>
    %143 = arith.addf %125, %142 : vector<2x50xf32>
    %c0_185 = arith.constant 0 : index
    %c3_186 = arith.constant 3 : index
    %c0_187 = arith.constant 0 : index
    %c0_188 = arith.constant 0 : index
    %144 = vector.load %arg14[%c0_185, %c3_186, %c0_187, %c0_188] : memref<2x4x4x128xf32, #tpu.memory_space<vmem>>, vector<2x1x1x128xf32>
    %145 = vector.shape_cast %144 : vector<2x1x1x128xf32> to vector<2x128xf32>
    %c0_189 = arith.constant 0 : index
    %c3_190 = arith.constant 3 : index
    %c1_191 = arith.constant 1 : index
    %c0_192 = arith.constant 0 : index
    %146 = vector.load %arg14[%c0_189, %c3_190, %c1_191, %c0_192] : memref<2x4x4x128xf32, #tpu.memory_space<vmem>>, vector<2x1x1x128xf32>
    %147 = vector.shape_cast %146 : vector<2x1x1x128xf32> to vector<2x128xf32>
    %c32_i32_193 = arith.constant 32 : i32
    %148 = tpu.dynamic_rotate %147 by %c32_i32_193 dim 1 : vector<2x128xf32>, i32 -> vector<2x128xf32>
    %149 = arith.addf %145, %148 : vector<2x128xf32>
    %c0_194 = arith.constant 0 : index
    %c3_195 = arith.constant 3 : index
    %c2_196 = arith.constant 2 : index
    %c0_197 = arith.constant 0 : index
    %150 = vector.load %arg14[%c0_194, %c3_195, %c2_196, %c0_197] : memref<2x4x4x128xf32, #tpu.memory_space<vmem>>, vector<2x1x1x128xf32>
    %151 = vector.shape_cast %150 : vector<2x1x1x128xf32> to vector<2x128xf32>
    %c64_i32_198 = arith.constant 64 : i32
    %152 = tpu.dynamic_rotate %151 by %c64_i32_198 dim 1 : vector<2x128xf32>, i32 -> vector<2x128xf32>
    %153 = arith.addf %149, %152 : vector<2x128xf32>
    %c0_199 = arith.constant 0 : index
    %c3_200 = arith.constant 3 : index
    %c3_201 = arith.constant 3 : index
    %c0_202 = arith.constant 0 : index
    %154 = vector.load %arg14[%c0_199, %c3_200, %c3_201, %c0_202] : memref<2x4x4x128xf32, #tpu.memory_space<vmem>>, vector<2x1x1x128xf32>
    %155 = vector.shape_cast %154 : vector<2x1x1x128xf32> to vector<2x128xf32>
    %c96_i32_203 = arith.constant 96 : i32
    %156 = tpu.dynamic_rotate %155 by %c96_i32_203 dim 1 : vector<2x128xf32>, i32 -> vector<2x128xf32>
    %157 = arith.addf %153, %156 : vector<2x128xf32>
    %c3_204 = arith.constant 3 : index
    %c0_205 = arith.constant 0 : index
    %c0_206 = arith.constant 0 : index
    %158 = vector.load %arg5[%c3_204, %c0_205, %c0_206] : memref<4x128x50xf32, #tpu.memory_space<vmem>>, vector<1x128x50xf32>
    %159 = vector.shape_cast %158 : vector<1x128x50xf32> to vector<128x50xf32>
    %cst_207 = arith.constant dense<0.000000e+00> : vector<2x50xf32>
    %160 = tpu.matmul %157, %159, %cst_207 {dimension_numbers = #tpu.dot_dimension_numbers<[1], [0], [0], [1], [0, 0, 1, 1], [], []>} : vector<2x128xf32>, vector<128x50xf32>, vector<2x50xf32> -> vector<2x50xf32>
    %161 = arith.addf %143, %160 : vector<2x50xf32>
    %c0_208 = arith.constant 0 : index
    %c0_209 = arith.constant 0 : index
    %162 = vector.load %arg6[%c0_208, %c0_209] : memref<1x50xf32, #tpu.memory_space<vmem>>, vector<1x50xf32>
    %163 = vector.broadcast %162 : vector<1x50xf32> to vector<2x50xf32>
    %164 = arith.addf %161, %163 : vector<2x50xf32>
    %cst_210 = arith.constant 0.000000e+00 : f32
    %165 = vector.broadcast %cst_210 : f32 to vector<2x50xf32>
    %166 = arith.maximumf %164, %165 : vector<2x50xf32>
    %c0_211 = arith.constant 0 : index
    %c0_212 = arith.constant 0 : index
    %167 = vector.load %arg7[%c0_211, %c0_212] : memref<50x10xf32, #tpu.memory_space<vmem>>, vector<50x10xf32>
    %cst_213 = arith.constant dense<0.000000e+00> : vector<2x10xf32>
    %168 = tpu.matmul %166, %167, %cst_213 {dimension_numbers = #tpu.dot_dimension_numbers<[1], [0], [0], [1], [0, 0, 1, 1], [], []>} : vector<2x50xf32>, vector<50x10xf32>, vector<2x10xf32> -> vector<2x10xf32>
    %c0_214 = arith.constant 0 : index
    %c0_215 = arith.constant 0 : index
    %169 = vector.load %arg8[%c0_214, %c0_215] : memref<1x10xf32, #tpu.memory_space<vmem>>, vector<1x10xf32>
    %170 = vector.broadcast %169 : vector<1x10xf32> to vector<2x10xf32>
    %171 = arith.addf %168, %170 : vector<2x10xf32>
    %cst_216 = arith.constant dense<0xFF800000> : vector<2xf32>
    %172 = vector.multi_reduction <maximumf>, %171, %cst_216 [1] : vector<2x10xf32> to vector<2xf32>
    %173 = vector.shape_cast %172 : vector<2xf32> to vector<2x1xf32>
    %174 = vector.broadcast %173 : vector<2x1xf32> to vector<2x10xf32>
    %175 = arith.subf %171, %174 : vector<2x10xf32>
    %176 = math.exp %175 : vector<2x10xf32>
    %cst_217 = arith.constant dense<0.000000e+00> : vector<2xf32>
    %177 = vector.multi_reduction <add>, %176, %cst_217 [1] : vector<2x10xf32> to vector<2xf32>
    %178 = vector.shape_cast %177 : vector<2xf32> to vector<2x1xf32>
    %179 = math.log %178 : vector<2x1xf32>
    %180 = vector.broadcast %179 : vector<2x1xf32> to vector<2x10xf32>
    %181 = arith.subf %175, %180 : vector<2x10xf32>
    %c0_218 = arith.constant 0 : index
    %c0_219 = arith.constant 0 : index
    %182 = vector.load %arg9[%c0_218, %c0_219] : memref<2x10xf32, #tpu.memory_space<vmem>>, vector<2x10xf32>
    tpu.vector_store %arg9[%c0_218, %c0_219], %181 {strides = array<i32>} : memref<2x10xf32, #tpu.memory_space<vmem>>, vector<2x10xf32>,
    return
  }
}

</mosaic_0001>

<llo_original>
// kernel: net_forward.1
$region0: #{net_forward.1}
  #allocation0 [shape = 'u32[]', space=smem, size = 0x4, offset = 0x4, fixed_abs, tag = 'smem constant byte address 0x4 - core index']
  #allocation1 [shape = 'u32[144,128]{1,0:T(1,128)}', space=vmem, size = 0x12000, scoped, tag = 'internal scratch']
  #allocation2 [shape = 'f32[2,24,24,128]{3,2,1,0:T(8,128)}', space=vmem, size = 0x90000, scoped, tag = 'scratch operand']
  #allocation3 [shape = 'f32[2,12,12,128]{3,2,1,0:T(8,128)}', space=vmem, size = 0x30000, scoped, tag = 'scratch operand']
  #allocation4 [shape = 'f32[2,12,8,128]{3,2,1,0:T(8,128)}', space=vmem, size = 0x18000, scoped, tag = 'scratch operand']
  #allocation5 [shape = 'f32[2,8,8,128]{3,2,1,0:T(8,128)}', space=vmem, size = 0x10000, scoped, tag = 'scratch operand']
  #allocation6 [shape = 'f32[2,4,4,128]{3,2,1,0:T(4,128)}', space=vmem, size = 0x4000, scoped, tag = 'scratch operand']
  %s0 = inlined_call_operand.vmem [shape: f32[1152,25], index: 0, kind: input, shape index: {}]
  %s1 = inlined_call_operand.vmem [shape: f32[25,128], index: 1, kind: input, shape index: {}]
  %s2 = inlined_call_operand.vmem [shape: f32[1,128], index: 2, kind: input, shape index: {}]
  %s3 = inlined_call_operand.vmem [shape: f32[5,50,128], index: 3, kind: input, shape index: {}]
  %s4 = inlined_call_operand.vmem [shape: f32[1,128], index: 4, kind: input, shape index: {}]
  %s5 = inlined_call_operand.vmem [shape: f32[4,128,50], index: 5, kind: input, shape index: {}]
  %s6 = inlined_call_operand.vmem [shape: f32[1,50], index: 6, kind: input, shape index: {}]
  %s7 = inlined_call_operand.vmem [shape: f32[50,10], index: 7, kind: input, shape index: {}]
  %s8 = inlined_call_operand.vmem [shape: f32[1,10], index: 8, kind: input, shape index: {}]
  %s9 = inlined_call_operand.hbm [shape: f32[2,10], index: 9, kind: output, shape index: {}]
  %s10 = sld [smem:[#allocation0]]
  $region46: #{net_forward.1} parent=0
    _
  %s12 = ssub.s32 1, %s10
  %s13 = scalar_select 0, %s12, %s10
  $region1: #{net_forward.1} parent=0
    #allocation7 [shape = 'u8[1024]{0}', space=vmem, size = 0x400, scoped, tag = 'output window, operand 0, single buffered']
    #allocation8 [shape = 's32[1]{0}', space=sflag, size = 0x4, scoped, tag = 'scoped memory for net_forward.1']
    %14 = vsyncpa [#allocation8], 0
    // Predicated region
    $region2: #{net_forward.1} parent=1 // pred_check
      _
    $region3: #{net_forward.1} parent=1 // pred_check_branch
      %16 = sbr.rel (0) target = $region5
    $region4: #{net_forward.1} parent=1 // pred_region
      _
    $region5: #{net_forward.1} parent=1 // pred_fallthru
      _
    // Predicated region
    $region6: #{net_forward.1} parent=1 // pred_check
      _
    $region7: #{net_forward.1} parent=1 // pred_check_branch
      %18 = sbr.rel (0) target = $region9
    $region8: #{net_forward.1} parent=1 // pred_region
      _
    $region9: #{net_forward.1} parent=1 // pred_fallthru
      _
    // Predicated region
    $region10: #{net_forward.1} parent=1 // pred_check
      _
    $region11: #{net_forward.1} parent=1 // pred_check_branch
      %20 = sbr.rel (0) target = $region13
    $region12: #{net_forward.1} parent=1 // pred_region
      _
    $region13: #{net_forward.1} parent=1 // pred_fallthru
      _
    // Predicated region
    $region14: #{net_forward.1} parent=1 // pred_check
      _
    $region15: #{net_forward.1} parent=1 // pred_check_branch
      %22 = sbr.rel (0) target = $region17
    $region16: #{net_forward.1} parent=1 // pred_region
      _
    $region17: #{net_forward.1} parent=1 // pred_fallthru
      _
    // Predicated region
    $region18: #{net_forward.1} parent=1 // pred_check
      _
    $region19: #{net_forward.1} parent=1 // pred_check_branch
      %24 = sbr.rel (0) target = $region21
    $region20: #{net_forward.1} parent=1 // pred_region
      _
    $region21: #{net_forward.1} parent=1 // pred_fallthru
      _
    // Predicated region
    $region22: #{net_forward.1} parent=1 // pred_check
      _
    $region23: #{net_forward.1} parent=1 // pred_check_branch
      %26 = sbr.rel (0) target = $region25
    $region24: #{net_forward.1} parent=1 // pred_region
      _
    $region25: #{net_forward.1} parent=1 // pred_fallthru
      _
    // Predicated region
    $region26: #{net_forward.1} parent=1 // pred_check
      _
    $region27: #{net_forward.1} parent=1 // pred_check_branch
      %28 = sbr.rel (0) target = $region29
    $region28: #{net_forward.1} parent=1 // pred_region
      _
    $region29: #{net_forward.1} parent=1 // pred_fallthru
      _
    // Predicated region
    $region30: #{net_forward.1} parent=1 // pred_check
      _
    $region31: #{net_forward.1} parent=1 // pred_check_branch
      %30 = sbr.rel (0) target = $region33
    $region32: #{net_forward.1} parent=1 // pred_region
      _
    $region33: #{net_forward.1} parent=1 // pred_fallthru
      _
    // Predicated region
    $region34: #{net_forward.1} parent=1 // pred_check
      _
    $region35: #{net_forward.1} parent=1 // pred_check_branch
      %32 = sbr.rel (0) target = $region37
    $region36: #{net_forward.1} parent=1 // pred_region
      _
    $region37: #{net_forward.1} parent=1 // pred_fallthru
      _
    %v33 = vld [vmem:[%s0] sm:$0xff]
    %v34 = vld [vmem:[%s0 + $0x8] sm:$0xff]
    %v35 = vld [vmem:[%s0 + $0x10] sm:$0xff]
    %v36 = vld [vmem:[%s0 + $0x18] sm:$0xff]
    %v37 = vld [vmem:[%s0 + $0x20] sm:$0xff]
    %v38 = vld [vmem:[%s0 + $0x28] sm:$0xff]
    %v39 = vld [vmem:[%s0 + $0x30] sm:$0xff]
    %v40 = vld [vmem:[%s0 + $0x38] sm:$0xff]
    %v41 = vld [vmem:[%s0 + $0x40] sm:$0xff]
    %v42 = vld [vmem:[%s0 + $0x48] sm:$0xff]
    %v43 = vld [vmem:[%s0 + $0x50] sm:$0xff]
    %v44 = vld [vmem:[%s0 + $0x58] sm:$0xff]
    %v45 = vld [vmem:[%s0 + $0x60] sm:$0xff]
    %v46 = vld [vmem:[%s0 + $0x68] sm:$0xff]
    %v47 = vld [vmem:[%s0 + $0x70] sm:$0xff]
    %v48 = vld [vmem:[%s0 + $0x78] sm:$0xff]
    %v49 = vld [vmem:[%s0 + $0x80] sm:$0xff]
    %v50 = vld [vmem:[%s0 + $0x88] sm:$0xff]
    %v51 = vld [vmem:[%s0 + $0x90] sm:$0xff]
    %v52 = vld [vmem:[%s0 + $0x98] sm:$0xff]
    %v53 = vld [vmem:[%s0 + $0xa0] sm:$0xff]
    %v54 = vld [vmem:[%s0 + $0xa8] sm:$0xff]
    %v55 = vld [vmem:[%s0 + $0xb0] sm:$0xff]
    %v56 = vld [vmem:[%s0 + $0xb8] sm:$0xff]
    %v57 = vld [vmem:[%s0 + $0xc0] sm:$0xff]
    %v58 = vld [vmem:[%s0 + $0xc8] sm:$0xff]
    %v59 = vld [vmem:[%s0 + $0xd0] sm:$0xff]
    %v60 = vld [vmem:[%s0 + $0xd8] sm:$0xff]
    %v61 = vld [vmem:[%s0 + $0xe0] sm:$0xff]
    %v62 = vld [vmem:[%s0 + $0xe8] sm:$0xff]
    %v63 = vld [vmem:[%s0 + $0xf0] sm:$0xff]
    %v64 = vld [vmem:[%s0 + $0xf8] sm:$0xff]
    %v65 = vld [vmem:[%s0 + $0x100] sm:$0xff]
    %v66 = vld [vmem:[%s0 + $0x108] sm:$0xff]
    %v67 = vld [vmem:[%s0 + $0x110] sm:$0xff]
    %v68 = vld [vmem:[%s0 + $0x118] sm:$0xff]
    %v69 = vld [vmem:[%s0 + $0x120] sm:$0xff]
    %v70 = vld [vmem:[%s0 + $0x128] sm:$0xff]
    %v71 = vld [vmem:[%s0 + $0x130] sm:$0xff]
    %v72 = vld [vmem:[%s0 + $0x138] sm:$0xff]
    %v73 = vld [vmem:[%s0 + $0x140] sm:$0xff]
    %v74 = vld [vmem:[%s0 + $0x148] sm:$0xff]
    %v75 = vld [vmem:[%s0 + $0x150] sm:$0xff]
    %v76 = vld [vmem:[%s0 + $0x158] sm:$0xff]
    %v77 = vld [vmem:[%s0 + $0x160] sm:$0xff]
    %v78 = vld [vmem:[%s0 + $0x168] sm:$0xff]
    %v79 = vld [vmem:[%s0 + $0x170] sm:$0xff]
    %v80 = vld [vmem:[%s0 + $0x178] sm:$0xff]
    %v81 = vld [vmem:[%s0 + $0x180] sm:$0xff]
    %v82 = vld [vmem:[%s0 + $0x188] sm:$0xff]
    %v83 = vld [vmem:[%s0 + $0x190] sm:$0xff]
    %v84 = vld [vmem:[%s0 + $0x198] sm:$0xff]
    %v85 = vld [vmem:[%s0 + $0x1a0] sm:$0xff]
    %v86 = vld [vmem:[%s0 + $0x1a8] sm:$0xff]
    %v87 = vld [vmem:[%s0 + $0x1b0] sm:$0xff]
    %v88 = vld [vmem:[%s0 + $0x1b8] sm:$0xff]
    %v89 = vld [vmem:[%s0 + $0x1c0] sm:$0xff]
    %v90 = vld [vmem:[%s0 + $0x1c8] sm:$0xff]
    %v91 = vld [vmem:[%s0 + $0x1d0] sm:$0xff]
    %v92 = vld [vmem:[%s0 + $0x1d8] sm:$0xff]
    %v93 = vld [vmem:[%s0 + $0x1e0] sm:$0xff]
    %v94 = vld [vmem:[%s0 + $0x1e8] sm:$0xff]
    %v95 = vld [vmem:[%s0 + $0x1f0] sm:$0xff]
    %v96 = vld [vmem:[%s0 + $0x1f8] sm:$0xff]
    %v97 = vld [vmem:[%s0 + $0x200] sm:$0xff]
    %v98 = vld [vmem:[%s0 + $0x208] sm:$0xff]
    %v99 = vld [vmem:[%s0 + $0x210] sm:$0xff]
    %v100 = vld [vmem:[%s0 + $0x218] sm:$0xff]
    %v101 = vld [vmem:[%s0 + $0x220] sm:$0xff]
    %v102 = vld [vmem:[%s0 + $0x228] sm:$0xff]
    %v103 = vld [vmem:[%s0 + $0x230] sm:$0xff]
    %v104 = vld [vmem:[%s0 + $0x238] sm:$0xff]
    %v105 = vld [vmem:[%s0 + $0x240] sm:$0xff]
    %v106 = vld [vmem:[%s0 + $0x248] sm:$0xff]
    %v107 = vld [vmem:[%s0 + $0x250] sm:$0xff]
    %v108 = vld [vmem:[%s0 + $0x258] sm:$0xff]
    %v109 = vld [vmem:[%s0 + $0x260] sm:$0xff]
    %v110 = vld [vmem:[%s0 + $0x268] sm:$0xff]
    %v111 = vld [vmem:[%s0 + $0x270] sm:$0xff]
    %v112 = vld [vmem:[%s0 + $0x278] sm:$0xff]
    %v113 = vld [vmem:[%s0 + $0x280] sm:$0xff]
    %v114 = vld [vmem:[%s0 + $0x288] sm:$0xff]
    %v115 = vld [vmem:[%s0 + $0x290] sm:$0xff]
    %v116 = vld [vmem:[%s0 + $0x298] sm:$0xff]
    %v117 = vld [vmem:[%s0 + $0x2a0] sm:$0xff]
    %v118 = vld [vmem:[%s0 + $0x2a8] sm:$0xff]
    %v119 = vld [vmem:[%s0 + $0x2b0] sm:$0xff]
    %v120 = vld [vmem:[%s0 + $0x2b8] sm:$0xff]
    %v121 = vld [vmem:[%s0 + $0x2c0] sm:$0xff]
    %v122 = vld [vmem:[%s0 + $0x2c8] sm:$0xff]
    %v123 = vld [vmem:[%s0 + $0x2d0] sm:$0xff]
    %v124 = vld [vmem:[%s0 + $0x2d8] sm:$0xff]
    %v125 = vld [vmem:[%s0 + $0x2e0] sm:$0xff]
    %v126 = vld [vmem:[%s0 + $0x2e8] sm:$0xff]
    %v127 = vld [vmem:[%s0 + $0x2f0] sm:$0xff]
    %v128 = vld [vmem:[%s0 + $0x2f8] sm:$0xff]
    %v129 = vld [vmem:[%s0 + $0x300] sm:$0xff]
    %v130 = vld [vmem:[%s0 + $0x308] sm:$0xff]
    %v131 = vld [vmem:[%s0 + $0x310] sm:$0xff]
    %v132 = vld [vmem:[%s0 + $0x318] sm:$0xff]
    %v133 = vld [vmem:[%s0 + $0x320] sm:$0xff]
    %v134 = vld [vmem:[%s0 + $0x328] sm:$0xff]
    %v135 = vld [vmem:[%s0 + $0x330] sm:$0xff]
    %v136 = vld [vmem:[%s0 + $0x338] sm:$0xff]
    %v137 = vld [vmem:[%s0 + $0x340] sm:$0xff]
    %v138 = vld [vmem:[%s0 + $0x348] sm:$0xff]
    %v139 = vld [vmem:[%s0 + $0x350] sm:$0xff]
    %v140 = vld [vmem:[%s0 + $0x358] sm:$0xff]
    %v141 = vld [vmem:[%s0 + $0x360] sm:$0xff]
    %v142 = vld [vmem:[%s0 + $0x368] sm:$0xff]
    %v143 = vld [vmem:[%s0 + $0x370] sm:$0xff]
    %v144 = vld [vmem:[%s0 + $0x378] sm:$0xff]
    %v145 = vld [vmem:[%s0 + $0x380] sm:$0xff]
    %v146 = vld [vmem:[%s0 + $0x388] sm:$0xff]
    %v147 = vld [vmem:[%s0 + $0x390] sm:$0xff]
    %v148 = vld [vmem:[%s0 + $0x398] sm:$0xff]
    %v149 = vld [vmem:[%s0 + $0x3a0] sm:$0xff]
    %v150 = vld [vmem:[%s0 + $0x3a8] sm:$0xff]
    %v151 = vld [vmem:[%s0 + $0x3b0] sm:$0xff]
    %v152 = vld [vmem:[%s0 + $0x3b8] sm:$0xff]
    %v153 = vld [vmem:[%s0 + $0x3c0] sm:$0xff]
    %v154 = vld [vmem:[%s0 + $0x3c8] sm:$0xff]
    %v155 = vld [vmem:[%s0 + $0x3d0] sm:$0xff]
    %v156 = vld [vmem:[%s0 + $0x3d8] sm:$0xff]
    %v157 = vld [vmem:[%s0 + $0x3e0] sm:$0xff]
    %v158 = vld [vmem:[%s0 + $0x3e8] sm:$0xff]
    %v159 = vld [vmem:[%s0 + $0x3f0] sm:$0xff]
    %v160 = vld [vmem:[%s0 + $0x3f8] sm:$0xff]
    %v161 = vld [vmem:[%s0 + $0x400] sm:$0xff]
    %v162 = vld [vmem:[%s0 + $0x408] sm:$0xff]
    %v163 = vld [vmem:[%s0 + $0x410] sm:$0xff]
    %v164 = vld [vmem:[%s0 + $0x418] sm:$0xff]
    %v165 = vld [vmem:[%s0 + $0x420] sm:$0xff]
    %v166 = vld [vmem:[%s0 + $0x428] sm:$0xff]
    %v167 = vld [vmem:[%s0 + $0x430] sm:$0xff]
    %v168 = vld [vmem:[%s0 + $0x438] sm:$0xff]
    %v169 = vld [vmem:[%s0 + $0x440] sm:$0xff]
    %v170 = vld [vmem:[%s0 + $0x448] sm:$0xff]
    %v171 = vld [vmem:[%s0 + $0x450] sm:$0xff]
    %v172 = vld [vmem:[%s0 + $0x458] sm:$0xff]
    %v173 = vld [vmem:[%s0 + $0x460] sm:$0xff]
    %v174 = vld [vmem:[%s0 + $0x468] sm:$0xff]
    %v175 = vld [vmem:[%s0 + $0x470] sm:$0xff]
    %v176 = vld [vmem:[%s0 + $0x478] sm:$0xff]
    %v177 = vld [vmem:[%s1] sm:$0xff]
    %v178 = vld [vmem:[%s1 + $0x8] sm:$0xff]
    %v179 = vld [vmem:[%s1 + $0x10] sm:$0xff]
    %v180 = vld [vmem:[%s1 + $0x18] sm:$0x1]
    %v181 = vld [vmem:[%s2] sm:$0x1]
    %v183 = vlaneseq
    %v184 = vshrl.u32 %v183, 7
    %v185 = vsub.s32 0, %v184
    %v186 = vrot.slane %v181, %v185
    %vm188 = vcmask 203776
    %v190 = vsel %vm188, %v33, 0
    %v193 = vsel %vm188, %v34, 0
    %v196 = vsel %vm188, %v35, 0
    %v199 = vsel %vm188, %v36, 0
    %v202 = vsel %vm188, %v37, 0
    %v205 = vsel %vm188, %v38, 0
    %v208 = vsel %vm188, %v39, 0
    %v211 = vsel %vm188, %v40, 0
    %v214 = vsel %vm188, %v41, 0
    %v217 = vsel %vm188, %v42, 0
    %v220 = vsel %vm188, %v43, 0
    %v223 = vsel %vm188, %v44, 0
    %v226 = vsel %vm188, %v45, 0
    %v229 = vsel %vm188, %v46, 0
    %v232 = vsel %vm188, %v47, 0
    %v235 = vsel %vm188, %v48, 0
    %v238 = vsel %vm188, %v49, 0
    %v241 = vsel %vm188, %v50, 0
    %v244 = vsel %vm188, %v51, 0
    %v247 = vsel %vm188, %v52, 0
    %v250 = vsel %vm188, %v53, 0
    %v253 = vsel %vm188, %v54, 0
    %v256 = vsel %vm188, %v55, 0
    %v259 = vsel %vm188, %v56, 0
    %v262 = vsel %vm188, %v57, 0
    %v265 = vsel %vm188, %v58, 0
    %v268 = vsel %vm188, %v59, 0
    %v271 = vsel %vm188, %v60, 0
    %v274 = vsel %vm188, %v61, 0
    %v277 = vsel %vm188, %v62, 0
    %v280 = vsel %vm188, %v63, 0
    %v283 = vsel %vm188, %v64, 0
    %v286 = vsel %vm188, %v65, 0
    %v289 = vsel %vm188, %v66, 0
    %v292 = vsel %vm188, %v67, 0
    %v295 = vsel %vm188, %v68, 0
    %v298 = vsel %vm188, %v69, 0
    %v301 = vsel %vm188, %v70, 0
    %v304 = vsel %vm188, %v71, 0
    %v307 = vsel %vm188, %v72, 0
    %v310 = vsel %vm188, %v73, 0
    %v313 = vsel %vm188, %v74, 0
    %v316 = vsel %vm188, %v75, 0
    %v319 = vsel %vm188, %v76, 0
    %v322 = vsel %vm188, %v77, 0
    %v325 = vsel %vm188, %v78, 0
    %v328 = vsel %vm188, %v79, 0
    %v331 = vsel %vm188, %v80, 0
    %v334 = vsel %vm188, %v81, 0
    %v337 = vsel %vm188, %v82, 0
    %v340 = vsel %vm188, %v83, 0
    %v343 = vsel %vm188, %v84, 0
    %v346 = vsel %vm188, %v85, 0
    %v349 = vsel %vm188, %v86, 0
    %v352 = vsel %vm188, %v87, 0
    %v355 = vsel %vm188, %v88, 0
    %v358 = vsel %vm188, %v89, 0
    %v361 = vsel %vm188, %v90, 0
    %v364 = vsel %vm188, %v91, 0
    %v367 = vsel %vm188, %v92, 0
    %v370 = vsel %vm188, %v93, 0
    %v373 = vsel %vm188, %v94, 0
    %v376 = vsel %vm188, %v95, 0
    %v379 = vsel %vm188, %v96, 0
    %v382 = vsel %vm188, %v97, 0
    %v385 = vsel %vm188, %v98, 0
    %v388 = vsel %vm188, %v99, 0
    %v391 = vsel %vm188, %v100, 0
    %v394 = vsel %vm188, %v101, 0
    %v397 = vsel %vm188, %v102, 0
    %v400 = vsel %vm188, %v103, 0
    %v403 = vsel %vm188, %v104, 0
    %v406 = vsel %vm188, %v105, 0
    %v409 = vsel %vm188, %v106, 0
    %v412 = vsel %vm188, %v107, 0
    %v415 = vsel %vm188, %v108, 0
    %v418 = vsel %vm188, %v109, 0
    %v421 = vsel %vm188, %v110, 0
    %v424 = vsel %vm188, %v111, 0
    %v427 = vsel %vm188, %v112, 0
    %v430 = vsel %vm188, %v113, 0
    %v433 = vsel %vm188, %v114, 0
    %v436 = vsel %vm188, %v115, 0
    %v439 = vsel %vm188, %v116, 0
    %v442 = vsel %vm188, %v117, 0
    %v445 = vsel %vm188, %v118, 0
    %v448 = vsel %vm188, %v119, 0
    %v451 = vsel %vm188, %v120, 0
    %v454 = vsel %vm188, %v121, 0
    %v457 = vsel %vm188, %v122, 0
    %v460 = vsel %vm188, %v123, 0
    %v463 = vsel %vm188, %v124, 0
    %v466 = vsel %vm188, %v125, 0
    %v469 = vsel %vm188, %v126, 0
    %v472 = vsel %vm188, %v127, 0
    %v475 = vsel %vm188, %v128, 0
    %v478 = vsel %vm188, %v129, 0
    %v481 = vsel %vm188, %v130, 0
    %v484 = vsel %vm188, %v131, 0
    %v487 = vsel %vm188, %v132, 0
    %v490 = vsel %vm188, %v133, 0
    %v493 = vsel %vm188, %v134, 0
    %v496 = vsel %vm188, %v135, 0
    %v499 = vsel %vm188, %v136, 0
    %v502 = vsel %vm188, %v137, 0
    %v505 = vsel %vm188, %v138, 0
    %v508 = vsel %vm188, %v139, 0
    %v511 = vsel %vm188, %v140, 0
    %v514 = vsel %vm188, %v141, 0
    %v517 = vsel %vm188, %v142, 0
    %v520 = vsel %vm188, %v143, 0
    %v523 = vsel %vm188, %v144, 0
    %v526 = vsel %vm188, %v145, 0
    %v529 = vsel %vm188, %v146, 0
    %v532 = vsel %vm188, %v147, 0
    %v535 = vsel %vm188, %v148, 0
    %v538 = vsel %vm188, %v149, 0
    %v541 = vsel %vm188, %v150, 0
    %v544 = vsel %vm188, %v151, 0
    %v547 = vsel %vm188, %v152, 0
    %v550 = vsel %vm188, %v153, 0
    %v553 = vsel %vm188, %v154, 0
    %v556 = vsel %vm188, %v155, 0
    %v559 = vsel %vm188, %v156, 0
    %v562 = vsel %vm188, %v157, 0
    %v565 = vsel %vm188, %v158, 0
    %v568 = vsel %vm188, %v159, 0
    %v571 = vsel %vm188, %v160, 0
    %v574 = vsel %vm188, %v161, 0
    %v577 = vsel %vm188, %v162, 0
    %v580 = vsel %vm188, %v163, 0
    %v583 = vsel %vm188, %v164, 0
    %v586 = vsel %vm188, %v165, 0
    %v589 = vsel %vm188, %v166, 0
    %v592 = vsel %vm188, %v167, 0
    %v595 = vsel %vm188, %v168, 0
    %v598 = vsel %vm188, %v169, 0
    %v601 = vsel %vm188, %v170, 0
    %v604 = vsel %vm188, %v171, 0
    %v607 = vsel %vm188, %v172, 0
    %v610 = vsel %vm188, %v173, 0
    %v613 = vsel %vm188, %v174, 0
    %v616 = vsel %vm188, %v175, 0
    %v619 = vsel %vm188, %v176, 0
    %vm621 = vcmask 1040384
    %v623 = vsel %vm621, %v180, 0
    %625 = vmatprep.subr.mxu0 0.0
    %626 = vmatpush1.msra.mxu0 %v177
    %627 = vmatprep.subr.mxu0 0.0
    %628 = vmatpush1.msra.mxu0 %v178
    %629 = vmatprep.subr.mxu0 0.0
    %630 = vmatpush1.msra.mxu0 %v179
    %631 = vmatprep.subr.mxu0 0.0
    %632 = vmatpush1.msra.mxu0 %v623
    %633 = vmatprep.subr.mxu0 0.0
    %634 = vmatpush1.msra.mxu0 0.0
    %635 = vmatprep.subr.mxu0 0.0
    %636 = vmatpush1.msra.mxu0 0.0
    %637 = vmatprep.subr.mxu0 0.0
    %638 = vmatpush1.msra.mxu0 0.0
    %639 = vmatprep.subr.mxu0 0.0
    %640 = vmatpush1.msra.mxu0 0.0
    %641 = vmatprep.subr.mxu0 0.0
    %642 = vmatpush1.msra.mxu0 0.0
    %643 = vmatprep.subr.mxu0 0.0
    %644 = vmatpush1.msra.mxu0 0.0
    %645 = vmatprep.subr.mxu0 0.0
    %646 = vmatpush1.msra.mxu0 0.0
    %647 = vmatprep.subr.mxu0 0.0
    %648 = vmatpush1.msra.mxu0 0.0
    %649 = vmatprep.subr.mxu0 0.0
    %650 = vmatpush1.msra.mxu0 0.0
    %651 = vmatprep.subr.mxu0 0.0
    %652 = vmatpush1.msra.mxu0 0.0
    %653 = vmatprep.subr.mxu0 0.0
    %654 = vmatpush1.msra.mxu0 0.0
    %655 = vmatprep.subr.mxu0 0.0
    %656 = vmatpush1.msra.mxu0 0.0
    %657 = vmatprep.subr.mxu0 0.0
    %658 = vmatpush1.msra.mxu0 0.0
    %659 = vmatprep.subr.mxu0 0.0
    %660 = vmatpush1.msra.mxu0 0.0
    %661 = vmatprep.subr.mxu0 0.0
    %662 = vmatpush1.msra.mxu0 0.0
    %663 = vmatprep.subr.mxu0 0.0
    %664 = vmatpush1.msra.mxu0 0.0
    %665 = vmatprep.subr.mxu0 0.0
    %666 = vmatpush1.msra.mxu0 0.0
    %667 = vmatprep.subr.mxu0 0.0
    %668 = vmatpush1.msra.mxu0 0.0
    %669 = vmatprep.subr.mxu0 0.0
    %670 = vmatpush1.msra.mxu0 0.0
    %671 = vmatprep.subr.mxu0 0.0
    %672 = vmatpush1.msra.mxu0 0.0
    %673 = vmatprep.subr.mxu0 0.0
    %674 = vmatpush1.msra.mxu0 0.0
    %675 = vmatprep.subr.mxu0 0.0
    %676 = vmatpush1.msra.mxu0 0.0
    %677 = vmatprep.subr.mxu0 0.0
    %678 = vmatpush1.msra.mxu0 0.0
    %679 = vmatprep.subr.mxu0 0.0
    %680 = vmatpush1.msra.mxu0 0.0
    %681 = vmatprep.subr.mxu0 0.0
    %682 = vmatpush1.msra.mxu0 0.0
    %683 = vmatprep.subr.mxu0 0.0
    %684 = vmatpush1.msra.mxu0 0.0
    %685 = vmatprep.subr.mxu0 0.0
    %686 = vmatpush1.msra.mxu0 0.0
    %687 = vmatprep.subr.mxu0 0.0
    %688 = vmatpush1.msra.mxu0 0.0
    %689 = vmatprep.mubr.f32.mxu0 0.0
    %690 = vmatmul.mubr.f32.gmra.mrb[0].mxu0 %v190
    %v691 = vpop.f32.mrb[0].mxu0
    %v692 = vadd.f32 %v186, %v691
    %v693 = vpop.f32.mrb[0].mxu0
    %694 = vmatprep.mubr.f32.mxu0 0.0
    %695 = vmatmul.mubr.f32.gmra.mrb[0].mxu0 %v193
    %v696 = vpop.f32.mrb[0].mxu0
    %v697 = vadd.f32 %v186, %v696
    %v698 = vpop.f32.mrb[0].mxu0
    %699 = vmatprep.mubr.f32.mxu0 0.0
    %700 = vmatmul.mubr.f32.gmra.mrb[0].mxu0 %v196
    %v701 = vpop.f32.mrb[0].mxu0
    %v702 = vadd.f32 %v186, %v701
    %v703 = vpop.f32.mrb[0].mxu0
    %704 = vmatprep.mubr.f32.mxu0 0.0
    %705 = vmatmul.mubr.f32.gmra.mrb[0].mxu0 %v199
    %v706 = vpop.f32.mrb[0].mxu0
    %v707 = vadd.f32 %v186, %v706
    %v708 = vpop.f32.mrb[0].mxu0
    %709 = vmatprep.mubr.f32.mxu0 0.0
    %710 = vmatmul.mubr.f32.gmra.mrb[0].mxu0 %v202
    %v711 = vpop.f32.mrb[0].mxu0
    %v712 = vadd.f32 %v186, %v711
    %v713 = vpop.f32.mrb[0].mxu0
    %714 = vmatprep.mubr.f32.mxu0 0.0
    %715 = vmatmul.mubr.f32.gmra.mrb[0].mxu0 %v205
    %v716 = vpop.f32.mrb[0].mxu0
    %v717 = vadd.f32 %v186, %v716
    %v718 = vpop.f32.mrb[0].mxu0
    %719 = vmatprep.mubr.f32.mxu0 0.0
    %720 = vmatmul.mubr.f32.gmra.mrb[0].mxu0 %v208
    %v721 = vpop.f32.mrb[0].mxu0
    %v722 = vadd.f32 %v186, %v721
    %v723 = vpop.f32.mrb[0].mxu0
    %724 = vmatprep.mubr.f32.mxu0 0.0
    %725 = vmatmul.mubr.f32.gmra.mrb[0].mxu0 %v211
    %v726 = vpop.f32.mrb[0].mxu0
    %v727 = vadd.f32 %v186, %v726
    %v728 = vpop.f32.mrb[0].mxu0
    %729 = vmatprep.mubr.f32.mxu0 0.0
    %730 = vmatmul.mubr.f32.gmra.mrb[0].mxu0 %v214
    %v731 = vpop.f32.mrb[0].mxu0
    %v732 = vadd.f32 %v186, %v731
    %v733 = vpop.f32.mrb[0].mxu0
    %734 = vmatprep.mubr.f32.mxu0 0.0
    %735 = vmatmul.mubr.f32.gmra.mrb[0].mxu0 %v217
    %v736 = vpop.f32.mrb[0].mxu0
    %v737 = vadd.f32 %v186, %v736
    %v738 = vpop.f32.mrb[0].mxu0
    %739 = vmatprep.mubr.f32.mxu0 0.0
    %740 = vmatmul.mubr.f32.gmra.mrb[0].mxu0 %v220
    %v741 = vpop.f32.mrb[0].mxu0
    %v742 = vadd.f32 %v186, %v741
    %v743 = vpop.f32.mrb[0].mxu0
    %744 = vmatprep.mubr.f32.mxu0 0.0
    %745 = vmatmul.mubr.f32.gmra.mrb[0].mxu0 %v223
    %v746 = vpop.f32.mrb[0].mxu0
    %v747 = vadd.f32 %v186, %v746
    %v748 = vpop.f32.mrb[0].mxu0
    %749 = vmatprep.mubr.f32.mxu0 0.0
    %750 = vmatmul.mubr.f32.gmra.mrb[0].mxu0 %v226
    %v751 = vpop.f32.mrb[0].mxu0
    %v752 = vadd.f32 %v186, %v751
    %v753 = vpop.f32.mrb[0].mxu0
    %754 = vmatprep.mubr.f32.mxu0 0.0
    %755 = vmatmul.mubr.f32.gmra.mrb[0].mxu0 %v229
    %v756 = vpop.f32.mrb[0].mxu0
    %v757 = vadd.f32 %v186, %v756
    %v758 = vpop.f32.mrb[0].mxu0
    %759 = vmatprep.mubr.f32.mxu0 0.0
    %760 = vmatmul.mubr.f32.gmra.mrb[0].mxu0 %v232
    %v761 = vpop.f32.mrb[0].mxu0
    %v762 = vadd.f32 %v186, %v761
    %v763 = vpop.f32.mrb[0].mxu0
    %764 = vmatprep.mubr.f32.mxu0 0.0
    %765 = vmatmul.mubr.f32.gmra.mrb[0].mxu0 %v235
    %v766 = vpop.f32.mrb[0].mxu0
    %v767 = vadd.f32 %v186, %v766
    %v768 = vpop.f32.mrb[0].mxu0
    %769 = vmatprep.mubr.f32.mxu0 0.0
    %770 = vmatmul.mubr.f32.gmra.mrb[0].mxu0 %v238
    %v771 = vpop.f32.mrb[0].mxu0
    %v772 = vadd.f32 %v186, %v771
    %v773 = vpop.f32.mrb[0].mxu0
    %774 = vmatprep.mubr.f32.mxu0 0.0
    %775 = vmatmul.mubr.f32.gmra.mrb[0].mxu0 %v241
    %v776 = vpop.f32.mrb[0].mxu0
    %v777 = vadd.f32 %v186, %v776
    %v778 = vpop.f32.mrb[0].mxu0
    %779 = vmatprep.mubr.f32.mxu0 0.0
    %780 = vmatmul.mubr.f32.gmra.mrb[0].mxu0 %v244
    %v781 = vpop.f32.mrb[0].mxu0
    %v782 = vadd.f32 %v186, %v781
    %v783 = vpop.f32.mrb[0].mxu0
    %784 = vmatprep.mubr.f32.mxu0 0.0
    %785 = vmatmul.mubr.f32.gmra.mrb[0].mxu0 %v247
    %v786 = vpop.f32.mrb[0].mxu0
    %v787 = vadd.f32 %v186, %v786
    %v788 = vpop.f32.mrb[0].mxu0
    %789 = vmatprep.mubr.f32.mxu0 0.0
    %790 = vmatmul.mubr.f32.gmra.mrb[0].mxu0 %v250
    %v791 = vpop.f32.mrb[0].mxu0
    %v792 = vadd.f32 %v186, %v791
    %v793 = vpop.f32.mrb[0].mxu0
    %794 = vmatprep.mubr.f32.mxu0 0.0
    %795 = vmatmul.mubr.f32.gmra.mrb[0].mxu0 %v253
    %v796 = vpop.f32.mrb[0].mxu0
    %v797 = vadd.f32 %v186, %v796
    %v798 = vpop.f32.mrb[0].mxu0
    %799 = vmatprep.mubr.f32.mxu0 0.0
    %800 = vmatmul.mubr.f32.gmra.mrb[0].mxu0 %v256
    %v801 = vpop.f32.mrb[0].mxu0
    %v802 = vadd.f32 %v186, %v801
    %v803 = vpop.f32.mrb[0].mxu0
    %804 = vmatprep.mubr.f32.mxu0 0.0
    %805 = vmatmul.mubr.f32.gmra.mrb[0].mxu0 %v259
    %v806 = vpop.f32.mrb[0].mxu0
    %v807 = vadd.f32 %v186, %v806
    %v808 = vpop.f32.mrb[0].mxu0
    %809 = vmatprep.mubr.f32.mxu0 0.0
    %810 = vmatmul.mubr.f32.gmra.mrb[0].mxu0 %v262
    %v811 = vpop.f32.mrb[0].mxu0
    %v812 = vadd.f32 %v186, %v811
    %v813 = vpop.f32.mrb[0].mxu0
    %814 = vmatprep.mubr.f32.mxu0 0.0
    %815 = vmatmul.mubr.f32.gmra.mrb[0].mxu0 %v265
    %v816 = vpop.f32.mrb[0].mxu0
    %v817 = vadd.f32 %v186, %v816
    %v818 = vpop.f32.mrb[0].mxu0
    %819 = vmatprep.mubr.f32.mxu0 0.0
    %820 = vmatmul.mubr.f32.gmra.mrb[0].mxu0 %v268
    %v821 = vpop.f32.mrb[0].mxu0
    %v822 = vadd.f32 %v186, %v821
    %v823 = vpop.f32.mrb[0].mxu0
    %824 = vmatprep.mubr.f32.mxu0 0.0
    %825 = vmatmul.mubr.f32.gmra.mrb[0].mxu0 %v271
    %v826 = vpop.f32.mrb[0].mxu0
    %v827 = vadd.f32 %v186, %v826
    %v828 = vpop.f32.mrb[0].mxu0
    %829 = vmatprep.mubr.f32.mxu0 0.0
    %830 = vmatmul.mubr.f32.gmra.mrb[0].mxu0 %v274
    %v831 = vpop.f32.mrb[0].mxu0
    %v832 = vadd.f32 %v186, %v831
    %v833 = vpop.f32.mrb[0].mxu0
    %834 = vmatprep.mubr.f32.mxu0 0.0
    %835 = vmatmul.mubr.f32.gmra.mrb[0].mxu0 %v277
    %v836 = vpop.f32.mrb[0].mxu0
    %v837 = vadd.f32 %v186, %v836
    %v838 = vpop.f32.mrb[0].mxu0
    %839 = vmatprep.mubr.f32.mxu0 0.0
    %840 = vmatmul.mubr.f32.gmra.mrb[0].mxu0 %v280
    %v841 = vpop.f32.mrb[0].mxu0
    %v842 = vadd.f32 %v186, %v841
    %v843 = vpop.f32.mrb[0].mxu0
    %844 = vmatprep.mubr.f32.mxu0 0.0
    %845 = vmatmul.mubr.f32.gmra.mrb[0].mxu0 %v283
    %v846 = vpop.f32.mrb[0].mxu0
    %v847 = vadd.f32 %v186, %v846
    %v848 = vpop.f32.mrb[0].mxu0
    %849 = vmatprep.mubr.f32.mxu0 0.0
    %850 = vmatmul.mubr.f32.gmra.mrb[0].mxu0 %v286
    %v851 = vpop.f32.mrb[0].mxu0
    %v852 = vadd.f32 %v186, %v851
    %v853 = vpop.f32.mrb[0].mxu0
    %854 = vmatprep.mubr.f32.mxu0 0.0
    %855 = vmatmul.mubr.f32.gmra.mrb[0].mxu0 %v289
    %v856 = vpop.f32.mrb[0].mxu0
    %v857 = vadd.f32 %v186, %v856
    %v858 = vpop.f32.mrb[0].mxu0
    %859 = vmatprep.mubr.f32.mxu0 0.0
    %860 = vmatmul.mubr.f32.gmra.mrb[0].mxu0 %v292
    %v861 = vpop.f32.mrb[0].mxu0
    %v862 = vadd.f32 %v186, %v861
    %v863 = vpop.f32.mrb[0].mxu0
    %864 = vmatprep.mubr.f32.mxu0 0.0
    %865 = vmatmul.mubr.f32.gmra.mrb[0].mxu0 %v295
    %v866 = vpop.f32.mrb[0].mxu0
    %v867 = vadd.f32 %v186, %v866
    %v868 = vpop.f32.mrb[0].mxu0
    %869 = vmatprep.mubr.f32.mxu0 0.0
    %870 = vmatmul.mubr.f32.gmra.mrb[0].mxu0 %v298
    %v871 = vpop.f32.mrb[0].mxu0
    %v872 = vadd.f32 %v186, %v871
    %v873 = vpop.f32.mrb[0].mxu0
    %874 = vmatprep.mubr.f32.mxu0 0.0
    %875 = vmatmul.mubr.f32.gmra.mrb[0].mxu0 %v301
    %v876 = vpop.f32.mrb[0].mxu0
    %v877 = vadd.f32 %v186, %v876
    %v878 = vpop.f32.mrb[0].mxu0
    %879 = vmatprep.mubr.f32.mxu0 0.0
    %880 = vmatmul.mubr.f32.gmra.mrb[0].mxu0 %v304
    %v881 = vpop.f32.mrb[0].mxu0
    %v882 = vadd.f32 %v186, %v881
    %v883 = vpop.f32.mrb[0].mxu0
    %884 = vmatprep.mubr.f32.mxu0 0.0
    %885 = vmatmul.mubr.f32.gmra.mrb[0].mxu0 %v307
    %v886 = vpop.f32.mrb[0].mxu0
    %v887 = vadd.f32 %v186, %v886
    %v888 = vpop.f32.mrb[0].mxu0
    %889 = vmatprep.mubr.f32.mxu0 0.0
    %890 = vmatmul.mubr.f32.gmra.mrb[0].mxu0 %v310
    %v891 = vpop.f32.mrb[0].mxu0
    %v892 = vadd.f32 %v186, %v891
    %v893 = vpop.f32.mrb[0].mxu0
    %894 = vmatprep.mubr.f32.mxu0 0.0
    %895 = vmatmul.mubr.f32.gmra.mrb[0].mxu0 %v313
    %v896 = vpop.f32.mrb[0].mxu0
    %v897 = vadd.f32 %v186, %v896
    %v898 = vpop.f32.mrb[0].mxu0
    %899 = vmatprep.mubr.f32.mxu0 0.0
    %900 = vmatmul.mubr.f32.gmra.mrb[0].mxu0 %v316
    %v901 = vpop.f32.mrb[0].mxu0
    %v902 = vadd.f32 %v186, %v901
    %v903 = vpop.f32.mrb[0].mxu0
    %904 = vmatprep.mubr.f32.mxu0 0.0
    %905 = vmatmul.mubr.f32.gmra.mrb[0].mxu0 %v319
    %v906 = vpop.f32.mrb[0].mxu0
    %v907 = vadd.f32 %v186, %v906
    %v908 = vpop.f32.mrb[0].mxu0
    %909 = vmatprep.mubr.f32.mxu0 0.0
    %910 = vmatmul.mubr.f32.gmra.mrb[0].mxu0 %v322
    %v911 = vpop.f32.mrb[0].mxu0
    %v912 = vadd.f32 %v186, %v911
    %v913 = vpop.f32.mrb[0].mxu0
    %914 = vmatprep.mubr.f32.mxu0 0.0
    %915 = vmatmul.mubr.f32.gmra.mrb[0].mxu0 %v325
    %v916 = vpop.f32.mrb[0].mxu0
    %v917 = vadd.f32 %v186, %v916
    %v918 = vpop.f32.mrb[0].mxu0
    %919 = vmatprep.mubr.f32.mxu0 0.0
    %920 = vmatmul.mubr.f32.gmra.mrb[0].mxu0 %v328
    %v921 = vpop.f32.mrb[0].mxu0
    %v922 = vadd.f32 %v186, %v921
    %v923 = vpop.f32.mrb[0].mxu0
    %924 = vmatprep.mubr.f32.mxu0 0.0
    %925 = vmatmul.mubr.f32.gmra.mrb[0].mxu0 %v331
    %v926 = vpop.f32.mrb[0].mxu0
    %v927 = vadd.f32 %v186, %v926
    %v928 = vpop.f32.mrb[0].mxu0
    %929 = vmatprep.mubr.f32.mxu0 0.0
    %930 = vmatmul.mubr.f32.gmra.mrb[0].mxu0 %v334
    %v931 = vpop.f32.mrb[0].mxu0
    %v932 = vadd.f32 %v186, %v931
    %v933 = vpop.f32.mrb[0].mxu0
    %934 = vmatprep.mubr.f32.mxu0 0.0
    %935 = vmatmul.mubr.f32.gmra.mrb[0].mxu0 %v337
    %v936 = vpop.f32.mrb[0].mxu0
    %v937 = vadd.f32 %v186, %v936
    %v938 = vpop.f32.mrb[0].mxu0
    %939 = vmatprep.mubr.f32.mxu0 0.0
    %940 = vmatmul.mubr.f32.gmra.mrb[0].mxu0 %v340
    %v941 = vpop.f32.mrb[0].mxu0
    %v942 = vadd.f32 %v186, %v941
    %v943 = vpop.f32.mrb[0].mxu0
    %944 = vmatprep.mubr.f32.mxu0 0.0
    %945 = vmatmul.mubr.f32.gmra.mrb[0].mxu0 %v343
    %v946 = vpop.f32.mrb[0].mxu0
    %v947 = vadd.f32 %v186, %v946
    %v948 = vpop.f32.mrb[0].mxu0
    %949 = vmatprep.mubr.f32.mxu0 0.0
    %950 = vmatmul.mubr.f32.gmra.mrb[0].mxu0 %v346
    %v951 = vpop.f32.mrb[0].mxu0
    %v952 = vadd.f32 %v186, %v951
    %v953 = vpop.f32.mrb[0].mxu0
    %954 = vmatprep.mubr.f32.mxu0 0.0
    %955 = vmatmul.mubr.f32.gmra.mrb[0].mxu0 %v349
    %v956 = vpop.f32.mrb[0].mxu0
    %v957 = vadd.f32 %v186, %v956
    %v958 = vpop.f32.mrb[0].mxu0
    %959 = vmatprep.mubr.f32.mxu0 0.0
    %960 = vmatmul.mubr.f32.gmra.mrb[0].mxu0 %v352
    %v961 = vpop.f32.mrb[0].mxu0
    %v962 = vadd.f32 %v186, %v961
    %v963 = vpop.f32.mrb[0].mxu0
    %964 = vmatprep.mubr.f32.mxu0 0.0
    %965 = vmatmul.mubr.f32.gmra.mrb[0].mxu0 %v355
    %v966 = vpop.f32.mrb[0].mxu0
    %v967 = vadd.f32 %v186, %v966
    %v968 = vpop.f32.mrb[0].mxu0
    %969 = vmatprep.mubr.f32.mxu0 0.0
    %970 = vmatmul.mubr.f32.gmra.mrb[0].mxu0 %v358
    %v971 = vpop.f32.mrb[0].mxu0
    %v972 = vadd.f32 %v186, %v971
    %v973 = vpop.f32.mrb[0].mxu0
    %974 = vmatprep.mubr.f32.mxu0 0.0
    %975 = vmatmul.mubr.f32.gmra.mrb[0].mxu0 %v361
    %v976 = vpop.f32.mrb[0].mxu0
    %v977 = vadd.f32 %v186, %v976
    %v978 = vpop.f32.mrb[0].mxu0
    %979 = vmatprep.mubr.f32.mxu0 0.0
    %980 = vmatmul.mubr.f32.gmra.mrb[0].mxu0 %v364
    %v981 = vpop.f32.mrb[0].mxu0
    %v982 = vadd.f32 %v186, %v981
    %v983 = vpop.f32.mrb[0].mxu0
    %984 = vmatprep.mubr.f32.mxu0 0.0
    %985 = vmatmul.mubr.f32.gmra.mrb[0].mxu0 %v367
    %v986 = vpop.f32.mrb[0].mxu0
    %v987 = vadd.f32 %v186, %v986
    %v988 = vpop.f32.mrb[0].mxu0
    %989 = vmatprep.mubr.f32.mxu0 0.0
    %990 = vmatmul.mubr.f32.gmra.mrb[0].mxu0 %v370
    %v991 = vpop.f32.mrb[0].mxu0
    %v992 = vadd.f32 %v186, %v991
    %v993 = vpop.f32.mrb[0].mxu0
    %994 = vmatprep.mubr.f32.mxu0 0.0
    %995 = vmatmul.mubr.f32.gmra.mrb[0].mxu0 %v373
    %v996 = vpop.f32.mrb[0].mxu0
    %v997 = vadd.f32 %v186, %v996
    %v998 = vpop.f32.mrb[0].mxu0
    %999 = vmatprep.mubr.f32.mxu0 0.0
    %1000 = vmatmul.mubr.f32.gmra.mrb[0].mxu0 %v376
    %v1001 = vpop.f32.mrb[0].mxu0
    %v1002 = vadd.f32 %v186, %v1001
    %v1003 = vpop.f32.mrb[0].mxu0
    %1004 = vmatprep.mubr.f32.mxu0 0.0
    %1005 = vmatmul.mubr.f32.gmra.mrb[0].mxu0 %v379
    %v1006 = vpop.f32.mrb[0].mxu0
    %v1007 = vadd.f32 %v186, %v1006
    %v1008 = vpop.f32.mrb[0].mxu0
    %1009 = vmatprep.mubr.f32.mxu0 0.0
    %1010 = vmatmul.mubr.f32.gmra.mrb[0].mxu0 %v382
    %v1011 = vpop.f32.mrb[0].mxu0
    %v1012 = vadd.f32 %v186, %v1011
    %v1013 = vpop.f32.mrb[0].mxu0
    %1014 = vmatprep.mubr.f32.mxu0 0.0
    %1015 = vmatmul.mubr.f32.gmra.mrb[0].mxu0 %v385
    %v1016 = vpop.f32.mrb[0].mxu0
    %v1017 = vadd.f32 %v186, %v1016
    %v1018 = vpop.f32.mrb[0].mxu0
    %1019 = vmatprep.mubr.f32.mxu0 0.0
    %1020 = vmatmul.mubr.f32.gmra.mrb[0].mxu0 %v388
    %v1021 = vpop.f32.mrb[0].mxu0
    %v1022 = vadd.f32 %v186, %v1021
    %v1023 = vpop.f32.mrb[0].mxu0
    %1024 = vmatprep.mubr.f32.mxu0 0.0
    %1025 = vmatmul.mubr.f32.gmra.mrb[0].mxu0 %v391
    %v1026 = vpop.f32.mrb[0].mxu0
    %v1027 = vadd.f32 %v186, %v1026
    %v1028 = vpop.f32.mrb[0].mxu0
    %1029 = vmatprep.mubr.f32.mxu0 0.0
    %1030 = vmatmul.mubr.f32.gmra.mrb[0].mxu0 %v394
    %v1031 = vpop.f32.mrb[0].mxu0
    %v1032 = vadd.f32 %v186, %v1031
    %v1033 = vpop.f32.mrb[0].mxu0
    %1034 = vmatprep.mubr.f32.mxu0 0.0
    %1035 = vmatmul.mubr.f32.gmra.mrb[0].mxu0 %v397
    %v1036 = vpop.f32.mrb[0].mxu0
    %v1037 = vadd.f32 %v186, %v1036
    %v1038 = vpop.f32.mrb[0].mxu0
    %1039 = vmatprep.mubr.f32.mxu0 0.0
    %1040 = vmatmul.mubr.f32.gmra.mrb[0].mxu0 %v400
    %v1041 = vpop.f32.mrb[0].mxu0
    %v1042 = vadd.f32 %v186, %v1041
    %v1043 = vpop.f32.mrb[0].mxu0
    %1044 = vmatprep.mubr.f32.mxu0 0.0
    %1045 = vmatmul.mubr.f32.gmra.mrb[0].mxu0 %v403
    %v1046 = vpop.f32.mrb[0].mxu0
    %v1047 = vadd.f32 %v186, %v1046
    %v1048 = vpop.f32.mrb[0].mxu0
    %1049 = vmatprep.mubr.f32.mxu0 0.0
    %1050 = vmatmul.mubr.f32.gmra.mrb[0].mxu0 %v406
    %v1051 = vpop.f32.mrb[0].mxu0
    %v1052 = vadd.f32 %v186, %v1051
    %v1053 = vpop.f32.mrb[0].mxu0
    %1054 = vmatprep.mubr.f32.mxu0 0.0
    %1055 = vmatmul.mubr.f32.gmra.mrb[0].mxu0 %v409
    %v1056 = vpop.f32.mrb[0].mxu0
    %v1057 = vadd.f32 %v186, %v1056
    %v1058 = vpop.f32.mrb[0].mxu0
    %1059 = vmatprep.mubr.f32.mxu0 0.0
    %1060 = vmatmul.mubr.f32.gmra.mrb[0].mxu0 %v412
    %v1061 = vpop.f32.mrb[0].mxu0
    %v1062 = vadd.f32 %v186, %v1061
    %v1063 = vpop.f32.mrb[0].mxu0
    %1064 = vmatprep.mubr.f32.mxu0 0.0
    %1065 = vmatmul.mubr.f32.gmra.mrb[0].mxu0 %v415
    %v1066 = vpop.f32.mrb[0].mxu0
    %v1067 = vadd.f32 %v186, %v1066
    %v1068 = vpop.f32.mrb[0].mxu0
    %1069 = vmatprep.mubr.f32.mxu0 0.0
    %1070 = vmatmul.mubr.f32.gmra.mrb[0].mxu0 %v418
    %v1071 = vpop.f32.mrb[0].mxu0
    %v1072 = vadd.f32 %v186, %v1071
    %v1073 = vpop.f32.mrb[0].mxu0
    %1074 = vmatprep.mubr.f32.mxu0 0.0
    %1075 = vmatmul.mubr.f32.gmra.mrb[0].mxu0 %v421
    %v1076 = vpop.f32.mrb[0].mxu0
    %v1077 = vadd.f32 %v186, %v1076
    %v1078 = vpop.f32.mrb[0].mxu0
    %1079 = vmatprep.mubr.f32.mxu0 0.0
    %1080 = vmatmul.mubr.f32.gmra.mrb[0].mxu0 %v424
    %v1081 = vpop.f32.mrb[0].mxu0
    %v1082 = vadd.f32 %v186, %v1081
    %v1083 = vpop.f32.mrb[0].mxu0
    %1084 = vmatprep.mubr.f32.mxu0 0.0
    %1085 = vmatmul.mubr.f32.gmra.mrb[0].mxu0 %v427
    %v1086 = vpop.f32.mrb[0].mxu0
    %v1087 = vadd.f32 %v186, %v1086
    %v1088 = vpop.f32.mrb[0].mxu0
    %1089 = vmatprep.mubr.f32.mxu0 0.0
    %1090 = vmatmul.mubr.f32.gmra.mrb[0].mxu0 %v430
    %v1091 = vpop.f32.mrb[0].mxu0
    %v1092 = vadd.f32 %v186, %v1091
    %v1093 = vpop.f32.mrb[0].mxu0
    %1094 = vmatprep.mubr.f32.mxu0 0.0
    %1095 = vmatmul.mubr.f32.gmra.mrb[0].mxu0 %v433
    %v1096 = vpop.f32.mrb[0].mxu0
    %v1097 = vadd.f32 %v186, %v1096
    %v1098 = vpop.f32.mrb[0].mxu0
    %1099 = vmatprep.mubr.f32.mxu0 0.0
    %1100 = vmatmul.mubr.f32.gmra.mrb[0].mxu0 %v436
    %v1101 = vpop.f32.mrb[0].mxu0
    %v1102 = vadd.f32 %v186, %v1101
    %v1103 = vpop.f32.mrb[0].mxu0
    %1104 = vmatprep.mubr.f32.mxu0 0.0
    %1105 = vmatmul.mubr.f32.gmra.mrb[0].mxu0 %v439
    %v1106 = vpop.f32.mrb[0].mxu0
    %v1107 = vadd.f32 %v186, %v1106
    %v1108 = vpop.f32.mrb[0].mxu0
    %1109 = vmatprep.mubr.f32.mxu0 0.0
    %1110 = vmatmul.mubr.f32.gmra.mrb[0].mxu0 %v442
    %v1111 = vpop.f32.mrb[0].mxu0
    %v1112 = vadd.f32 %v186, %v1111
    %v1113 = vpop.f32.mrb[0].mxu0
    %1114 = vmatprep.mubr.f32.mxu0 0.0
    %1115 = vmatmul.mubr.f32.gmra.mrb[0].mxu0 %v445
    %v1116 = vpop.f32.mrb[0].mxu0
    %v1117 = vadd.f32 %v186, %v1116
    %v1118 = vpop.f32.mrb[0].mxu0
    %1119 = vmatprep.mubr.f32.mxu0 0.0
    %1120 = vmatmul.mubr.f32.gmra.mrb[0].mxu0 %v448
    %v1121 = vpop.f32.mrb[0].mxu0
    %v1122 = vadd.f32 %v186, %v1121
    %v1123 = vpop.f32.mrb[0].mxu0
    %1124 = vmatprep.mubr.f32.mxu0 0.0
    %1125 = vmatmul.mubr.f32.gmra.mrb[0].mxu0 %v451
    %v1126 = vpop.f32.mrb[0].mxu0
    %v1127 = vadd.f32 %v186, %v1126
    %v1128 = vpop.f32.mrb[0].mxu0
    %1129 = vmatprep.mubr.f32.mxu0 0.0
    %1130 = vmatmul.mubr.f32.gmra.mrb[0].mxu0 %v454
    %v1131 = vpop.f32.mrb[0].mxu0
    %v1132 = vadd.f32 %v186, %v1131
    %v1133 = vpop.f32.mrb[0].mxu0
    %1134 = vmatprep.mubr.f32.mxu0 0.0
    %1135 = vmatmul.mubr.f32.gmra.mrb[0].mxu0 %v457
    %v1136 = vpop.f32.mrb[0].mxu0
    %v1137 = vadd.f32 %v186, %v1136
    %v1138 = vpop.f32.mrb[0].mxu0
    %1139 = vmatprep.mubr.f32.mxu0 0.0
    %1140 = vmatmul.mubr.f32.gmra.mrb[0].mxu0 %v460
    %v1141 = vpop.f32.mrb[0].mxu0
    %v1142 = vadd.f32 %v186, %v1141
    %v1143 = vpop.f32.mrb[0].mxu0
    %1144 = vmatprep.mubr.f32.mxu0 0.0
    %1145 = vmatmul.mubr.f32.gmra.mrb[0].mxu0 %v463
    %v1146 = vpop.f32.mrb[0].mxu0
    %v1147 = vadd.f32 %v186, %v1146
    %v1148 = vpop.f32.mrb[0].mxu0
    %1149 = vmatprep.mubr.f32.mxu0 0.0
    %1150 = vmatmul.mubr.f32.gmra.mrb[0].mxu0 %v466
    %v1151 = vpop.f32.mrb[0].mxu0
    %v1152 = vadd.f32 %v186, %v1151
    %v1153 = vpop.f32.mrb[0].mxu0
    %1154 = vmatprep.mubr.f32.mxu0 0.0
    %1155 = vmatmul.mubr.f32.gmra.mrb[0].mxu0 %v469
    %v1156 = vpop.f32.mrb[0].mxu0
    %v1157 = vadd.f32 %v186, %v1156
    %v1158 = vpop.f32.mrb[0].mxu0
    %1159 = vmatprep.mubr.f32.mxu0 0.0
    %1160 = vmatmul.mubr.f32.gmra.mrb[0].mxu0 %v472
    %v1161 = vpop.f32.mrb[0].mxu0
    %v1162 = vadd.f32 %v186, %v1161
    %v1163 = vpop.f32.mrb[0].mxu0
    %1164 = vmatprep.mubr.f32.mxu0 0.0
    %1165 = vmatmul.mubr.f32.gmra.mrb[0].mxu0 %v475
    %v1166 = vpop.f32.mrb[0].mxu0
    %v1167 = vadd.f32 %v186, %v1166
    %v1168 = vpop.f32.mrb[0].mxu0
    %1169 = vmatprep.mubr.f32.mxu0 0.0
    %1170 = vmatmul.mubr.f32.gmra.mrb[0].mxu0 %v478
    %v1171 = vpop.f32.mrb[0].mxu0
    %v1172 = vadd.f32 %v186, %v1171
    %v1173 = vpop.f32.mrb[0].mxu0
    %1174 = vmatprep.mubr.f32.mxu0 0.0
    %1175 = vmatmul.mubr.f32.gmra.mrb[0].mxu0 %v481
    %v1176 = vpop.f32.mrb[0].mxu0
    %v1177 = vadd.f32 %v186, %v1176
    %v1178 = vpop.f32.mrb[0].mxu0
    %1179 = vmatprep.mubr.f32.mxu0 0.0
    %1180 = vmatmul.mubr.f32.gmra.mrb[0].mxu0 %v484
    %v1181 = vpop.f32.mrb[0].mxu0
    %v1182 = vadd.f32 %v186, %v1181
    %v1183 = vpop.f32.mrb[0].mxu0
    %1184 = vmatprep.mubr.f32.mxu0 0.0
    %1185 = vmatmul.mubr.f32.gmra.mrb[0].mxu0 %v487
    %v1186 = vpop.f32.mrb[0].mxu0
    %v1187 = vadd.f32 %v186, %v1186
    %v1188 = vpop.f32.mrb[0].mxu0
    %1189 = vmatprep.mubr.f32.mxu0 0.0
    %1190 = vmatmul.mubr.f32.gmra.mrb[0].mxu0 %v490
    %v1191 = vpop.f32.mrb[0].mxu0
    %v1192 = vadd.f32 %v186, %v1191
    %v1193 = vpop.f32.mrb[0].mxu0
    %1194 = vmatprep.mubr.f32.mxu0 0.0
    %1195 = vmatmul.mubr.f32.gmra.mrb[0].mxu0 %v493
    %v1196 = vpop.f32.mrb[0].mxu0
    %v1197 = vadd.f32 %v186, %v1196
    %v1198 = vpop.f32.mrb[0].mxu0
    %1199 = vmatprep.mubr.f32.mxu0 0.0
    %1200 = vmatmul.mubr.f32.gmra.mrb[0].mxu0 %v496
    %v1201 = vpop.f32.mrb[0].mxu0
    %v1202 = vadd.f32 %v186, %v1201
    %v1203 = vpop.f32.mrb[0].mxu0
    %1204 = vmatprep.mubr.f32.mxu0 0.0
    %1205 = vmatmul.mubr.f32.gmra.mrb[0].mxu0 %v499
    %v1206 = vpop.f32.mrb[0].mxu0
    %v1207 = vadd.f32 %v186, %v1206
    %v1208 = vpop.f32.mrb[0].mxu0
    %1209 = vmatprep.mubr.f32.mxu0 0.0
    %1210 = vmatmul.mubr.f32.gmra.mrb[0].mxu0 %v502
    %v1211 = vpop.f32.mrb[0].mxu0
    %v1212 = vadd.f32 %v186, %v1211
    %v1213 = vpop.f32.mrb[0].mxu0
    %1214 = vmatprep.mubr.f32.mxu0 0.0
    %1215 = vmatmul.mubr.f32.gmra.mrb[0].mxu0 %v505
    %v1216 = vpop.f32.mrb[0].mxu0
    %v1217 = vadd.f32 %v186, %v1216
    %v1218 = vpop.f32.mrb[0].mxu0
    %1219 = vmatprep.mubr.f32.mxu0 0.0
    %1220 = vmatmul.mubr.f32.gmra.mrb[0].mxu0 %v508
    %v1221 = vpop.f32.mrb[0].mxu0
    %v1222 = vadd.f32 %v186, %v1221
    %v1223 = vpop.f32.mrb[0].mxu0
    %1224 = vmatprep.mubr.f32.mxu0 0.0
    %1225 = vmatmul.mubr.f32.gmra.mrb[0].mxu0 %v511
    %v1226 = vpop.f32.mrb[0].mxu0
    %v1227 = vadd.f32 %v186, %v1226
    %v1228 = vpop.f32.mrb[0].mxu0
    %1229 = vmatprep.mubr.f32.mxu0 0.0
    %1230 = vmatmul.mubr.f32.gmra.mrb[0].mxu0 %v514
    %v1231 = vpop.f32.mrb[0].mxu0
    %v1232 = vadd.f32 %v186, %v1231
    %v1233 = vpop.f32.mrb[0].mxu0
    %1234 = vmatprep.mubr.f32.mxu0 0.0
    %1235 = vmatmul.mubr.f32.gmra.mrb[0].mxu0 %v517
    %v1236 = vpop.f32.mrb[0].mxu0
    %v1237 = vadd.f32 %v186, %v1236
    %v1238 = vpop.f32.mrb[0].mxu0
    %1239 = vmatprep.mubr.f32.mxu0 0.0
    %1240 = vmatmul.mubr.f32.gmra.mrb[0].mxu0 %v520
    %v1241 = vpop.f32.mrb[0].mxu0
    %v1242 = vadd.f32 %v186, %v1241
    %v1243 = vpop.f32.mrb[0].mxu0
    %1244 = vmatprep.mubr.f32.mxu0 0.0
    %1245 = vmatmul.mubr.f32.gmra.mrb[0].mxu0 %v523
    %v1246 = vpop.f32.mrb[0].mxu0
    %v1247 = vadd.f32 %v186, %v1246
    %v1248 = vpop.f32.mrb[0].mxu0
    %1249 = vmatprep.mubr.f32.mxu0 0.0
    %1250 = vmatmul.mubr.f32.gmra.mrb[0].mxu0 %v526
    %v1251 = vpop.f32.mrb[0].mxu0
    %v1252 = vadd.f32 %v186, %v1251
    %v1253 = vpop.f32.mrb[0].mxu0
    %1254 = vmatprep.mubr.f32.mxu0 0.0
    %1255 = vmatmul.mubr.f32.gmra.mrb[0].mxu0 %v529
    %v1256 = vpop.f32.mrb[0].mxu0
    %v1257 = vadd.f32 %v186, %v1256
    %v1258 = vpop.f32.mrb[0].mxu0
    %1259 = vmatprep.mubr.f32.mxu0 0.0
    %1260 = vmatmul.mubr.f32.gmra.mrb[0].mxu0 %v532
    %v1261 = vpop.f32.mrb[0].mxu0
    %v1262 = vadd.f32 %v186, %v1261
    %v1263 = vpop.f32.mrb[0].mxu0
    %1264 = vmatprep.mubr.f32.mxu0 0.0
    %1265 = vmatmul.mubr.f32.gmra.mrb[0].mxu0 %v535
    %v1266 = vpop.f32.mrb[0].mxu0
    %v1267 = vadd.f32 %v186, %v1266
    %v1268 = vpop.f32.mrb[0].mxu0
    %1269 = vmatprep.mubr.f32.mxu0 0.0
    %1270 = vmatmul.mubr.f32.gmra.mrb[0].mxu0 %v538
    %v1271 = vpop.f32.mrb[0].mxu0
    %v1272 = vadd.f32 %v186, %v1271
    %v1273 = vpop.f32.mrb[0].mxu0
    %1274 = vmatprep.mubr.f32.mxu0 0.0
    %1275 = vmatmul.mubr.f32.gmra.mrb[0].mxu0 %v541
    %v1276 = vpop.f32.mrb[0].mxu0
    %v1277 = vadd.f32 %v186, %v1276
    %v1278 = vpop.f32.mrb[0].mxu0
    %1279 = vmatprep.mubr.f32.mxu0 0.0
    %1280 = vmatmul.mubr.f32.gmra.mrb[0].mxu0 %v544
    %v1281 = vpop.f32.mrb[0].mxu0
    %v1282 = vadd.f32 %v186, %v1281
    %v1283 = vpop.f32.mrb[0].mxu0
    %1284 = vmatprep.mubr.f32.mxu0 0.0
    %1285 = vmatmul.mubr.f32.gmra.mrb[0].mxu0 %v547
    %v1286 = vpop.f32.mrb[0].mxu0
    %v1287 = vadd.f32 %v186, %v1286
    %v1288 = vpop.f32.mrb[0].mxu0
    %1289 = vmatprep.mubr.f32.mxu0 0.0
    %1290 = vmatmul.mubr.f32.gmra.mrb[0].mxu0 %v550
    %v1291 = vpop.f32.mrb[0].mxu0
    %v1292 = vadd.f32 %v186, %v1291
    %v1293 = vpop.f32.mrb[0].mxu0
    %1294 = vmatprep.mubr.f32.mxu0 0.0
    %1295 = vmatmul.mubr.f32.gmra.mrb[0].mxu0 %v553
    %v1296 = vpop.f32.mrb[0].mxu0
    %v1297 = vadd.f32 %v186, %v1296
    %v1298 = vpop.f32.mrb[0].mxu0
    %1299 = vmatprep.mubr.f32.mxu0 0.0
    %1300 = vmatmul.mubr.f32.gmra.mrb[0].mxu0 %v556
    %v1301 = vpop.f32.mrb[0].mxu0
    %v1302 = vadd.f32 %v186, %v1301
    %v1303 = vpop.f32.mrb[0].mxu0
    %1304 = vmatprep.mubr.f32.mxu0 0.0
    %1305 = vmatmul.mubr.f32.gmra.mrb[0].mxu0 %v559
    %v1306 = vpop.f32.mrb[0].mxu0
    %v1307 = vadd.f32 %v186, %v1306
    %v1308 = vpop.f32.mrb[0].mxu0
    %1309 = vmatprep.mubr.f32.mxu0 0.0
    %1310 = vmatmul.mubr.f32.gmra.mrb[0].mxu0 %v562
    %v1311 = vpop.f32.mrb[0].mxu0
    %v1312 = vadd.f32 %v186, %v1311
    %v1313 = vpop.f32.mrb[0].mxu0
    %1314 = vmatprep.mubr.f32.mxu0 0.0
    %1315 = vmatmul.mubr.f32.gmra.mrb[0].mxu0 %v565
    %v1316 = vpop.f32.mrb[0].mxu0
    %v1317 = vadd.f32 %v186, %v1316
    %v1318 = vpop.f32.mrb[0].mxu0
    %1319 = vmatprep.mubr.f32.mxu0 0.0
    %1320 = vmatmul.mubr.f32.gmra.mrb[0].mxu0 %v568
    %v1321 = vpop.f32.mrb[0].mxu0
    %v1322 = vadd.f32 %v186, %v1321
    %v1323 = vpop.f32.mrb[0].mxu0
    %1324 = vmatprep.mubr.f32.mxu0 0.0
    %1325 = vmatmul.mubr.f32.gmra.mrb[0].mxu0 %v571
    %v1326 = vpop.f32.mrb[0].mxu0
    %v1327 = vadd.f32 %v186, %v1326
    %v1328 = vpop.f32.mrb[0].mxu0
    %1329 = vmatprep.mubr.f32.mxu0 0.0
    %1330 = vmatmul.mubr.f32.gmra.mrb[0].mxu0 %v574
    %v1331 = vpop.f32.mrb[0].mxu0
    %v1332 = vadd.f32 %v186, %v1331
    %v1333 = vpop.f32.mrb[0].mxu0
    %1334 = vmatprep.mubr.f32.mxu0 0.0
    %1335 = vmatmul.mubr.f32.gmra.mrb[0].mxu0 %v577
    %v1336 = vpop.f32.mrb[0].mxu0
    %v1337 = vadd.f32 %v186, %v1336
    %v1338 = vpop.f32.mrb[0].mxu0
    %1339 = vmatprep.mubr.f32.mxu0 0.0
    %1340 = vmatmul.mubr.f32.gmra.mrb[0].mxu0 %v580
    %v1341 = vpop.f32.mrb[0].mxu0
    %v1342 = vadd.f32 %v186, %v1341
    %v1343 = vpop.f32.mrb[0].mxu0
    %1344 = vmatprep.mubr.f32.mxu0 0.0
    %1345 = vmatmul.mubr.f32.gmra.mrb[0].mxu0 %v583
    %v1346 = vpop.f32.mrb[0].mxu0
    %v1347 = vadd.f32 %v186, %v1346
    %v1348 = vpop.f32.mrb[0].mxu0
    %1349 = vmatprep.mubr.f32.mxu0 0.0
    %1350 = vmatmul.mubr.f32.gmra.mrb[0].mxu0 %v586
    %v1351 = vpop.f32.mrb[0].mxu0
    %v1352 = vadd.f32 %v186, %v1351
    %v1353 = vpop.f32.mrb[0].mxu0
    %1354 = vmatprep.mubr.f32.mxu0 0.0
    %1355 = vmatmul.mubr.f32.gmra.mrb[0].mxu0 %v589
    %v1356 = vpop.f32.mrb[0].mxu0
    %v1357 = vadd.f32 %v186, %v1356
    %v1358 = vpop.f32.mrb[0].mxu0
    %1359 = vmatprep.mubr.f32.mxu0 0.0
    %1360 = vmatmul.mubr.f32.gmra.mrb[0].mxu0 %v592
    %v1361 = vpop.f32.mrb[0].mxu0
    %v1362 = vadd.f32 %v186, %v1361
    %v1363 = vpop.f32.mrb[0].mxu0
    %1364 = vmatprep.mubr.f32.mxu0 0.0
    %1365 = vmatmul.mubr.f32.gmra.mrb[0].mxu0 %v595
    %v1366 = vpop.f32.mrb[0].mxu0
    %v1367 = vadd.f32 %v186, %v1366
    %v1368 = vpop.f32.mrb[0].mxu0
    %1369 = vmatprep.mubr.f32.mxu0 0.0
    %1370 = vmatmul.mubr.f32.gmra.mrb[0].mxu0 %v598
    %v1371 = vpop.f32.mrb[0].mxu0
    %v1372 = vadd.f32 %v186, %v1371
    %v1373 = vpop.f32.mrb[0].mxu0
    %1374 = vmatprep.mubr.f32.mxu0 0.0
    %1375 = vmatmul.mubr.f32.gmra.mrb[0].mxu0 %v601
    %v1376 = vpop.f32.mrb[0].mxu0
    %v1377 = vadd.f32 %v186, %v1376
    %v1378 = vpop.f32.mrb[0].mxu0
    %1379 = vmatprep.mubr.f32.mxu0 0.0
    %1380 = vmatmul.mubr.f32.gmra.mrb[0].mxu0 %v604
    %v1381 = vpop.f32.mrb[0].mxu0
    %v1382 = vadd.f32 %v186, %v1381
    %v1383 = vpop.f32.mrb[0].mxu0
    %1384 = vmatprep.mubr.f32.mxu0 0.0
    %1385 = vmatmul.mubr.f32.gmra.mrb[0].mxu0 %v607
    %v1386 = vpop.f32.mrb[0].mxu0
    %v1387 = vadd.f32 %v186, %v1386
    %v1388 = vpop.f32.mrb[0].mxu0
    %1389 = vmatprep.mubr.f32.mxu0 0.0
    %1390 = vmatmul.mubr.f32.gmra.mrb[0].mxu0 %v610
    %v1391 = vpop.f32.mrb[0].mxu0
    %v1392 = vadd.f32 %v186, %v1391
    %v1393 = vpop.f32.mrb[0].mxu0
    %1394 = vmatprep.mubr.f32.mxu0 0.0
    %1395 = vmatmul.mubr.f32.gmra.mrb[0].mxu0 %v613
    %v1396 = vpop.f32.mrb[0].mxu0
    %v1397 = vadd.f32 %v186, %v1396
    %v1398 = vpop.f32.mrb[0].mxu0
    %1399 = vmatprep.mubr.f32.mxu0 0.0
    %1400 = vmatmul.mubr.f32.gmra.mrb[0].mxu0 %v616
    %v1401 = vpop.f32.mrb[0].mxu0
    %v1402 = vadd.f32 %v186, %v1401
    %v1403 = vpop.f32.mrb[0].mxu0
    %1404 = vmatprep.mubr.f32.mxu0 0.0
    %1405 = vmatmul.mubr.f32.gmra.mrb[0].mxu0 %v619
    %v1406 = vpop.f32.mrb[0].mxu0
    %v1407 = vadd.f32 %v186, %v1406
    %v1408 = vpop.f32.mrb[0].mxu0
    %1409 = vdwg.mxu0
    %1410 = vst [vmem:[#allocation2] sm:$0xff] %v692
    %1411 = vst [vmem:[#allocation2 + $0x8] sm:$0xff] %v697
    %1412 = vst [vmem:[#allocation2 + $0x10] sm:$0xff] %v702
    %1413 = vst [vmem:[#allocation2 + $0x18] sm:$0xff] %v707
    %1414 = vst [vmem:[#allocation2 + $0x20] sm:$0xff] %v712
    %1415 = vst [vmem:[#allocation2 + $0x28] sm:$0xff] %v717
    %1416 = vst [vmem:[#allocation2 + $0x30] sm:$0xff] %v722
    %1417 = vst [vmem:[#allocation2 + $0x38] sm:$0xff] %v727
    %1418 = vst [vmem:[#allocation2 + $0x40] sm:$0xff] %v732
    %1419 = vst [vmem:[#allocation2 + $0x48] sm:$0xff] %v737
    %1420 = vst [vmem:[#allocation2 + $0x50] sm:$0xff] %v742
    %1421 = vst [vmem:[#allocation2 + $0x58] sm:$0xff] %v747
    %1422 = vst [vmem:[#allocation2 + $0x60] sm:$0xff] %v752
    %1423 = vst [vmem:[#allocation2 + $0x68] sm:$0xff] %v757
    %1424 = vst [vmem:[#allocation2 + $0x70] sm:$0xff] %v762
    %1425 = vst [vmem:[#allocation2 + $0x78] sm:$0xff] %v767
    %1426 = vst [vmem:[#allocation2 + $0x80] sm:$0xff] %v772
    %1427 = vst [vmem:[#allocation2 + $0x88] sm:$0xff] %v777
    %1428 = vst [vmem:[#allocation2 + $0x90] sm:$0xff] %v782
    %1429 = vst [vmem:[#allocation2 + $0x98] sm:$0xff] %v787
    %1430 = vst [vmem:[#allocation2 + $0xa0] sm:$0xff] %v792
    %1431 = vst [vmem:[#allocation2 + $0xa8] sm:$0xff] %v797
    %1432 = vst [vmem:[#allocation2 + $0xb0] sm:$0xff] %v802
    %1433 = vst [vmem:[#allocation2 + $0xb8] sm:$0xff] %v807
    %1434 = vst [vmem:[#allocation2 + $0xc0] sm:$0xff] %v812
    %1435 = vst [vmem:[#allocation2 + $0xc8] sm:$0xff] %v817
    %1436 = vst [vmem:[#allocation2 + $0xd0] sm:$0xff] %v822
    %1437 = vst [vmem:[#allocation2 + $0xd8] sm:$0xff] %v827
    %1438 = vst [vmem:[#allocation2 + $0xe0] sm:$0xff] %v832
    %1439 = vst [vmem:[#allocation2 + $0xe8] sm:$0xff] %v837
    %1440 = vst [vmem:[#allocation2 + $0xf0] sm:$0xff] %v842
    %1441 = vst [vmem:[#allocation2 + $0xf8] sm:$0xff] %v847
    %1442 = vst [vmem:[#allocation2 + $0x100] sm:$0xff] %v852
    %1443 = vst [vmem:[#allocation2 + $0x108] sm:$0xff] %v857
    %1444 = vst [vmem:[#allocation2 + $0x110] sm:$0xff] %v862
    %1445 = vst [vmem:[#allocation2 + $0x118] sm:$0xff] %v867
    %1446 = vst [vmem:[#allocation2 + $0x120] sm:$0xff] %v872
    %1447 = vst [vmem:[#allocation2 + $0x128] sm:$0xff] %v877
    %1448 = vst [vmem:[#allocation2 + $0x130] sm:$0xff] %v882
    %1449 = vst [vmem:[#allocation2 + $0x138] sm:$0xff] %v887
    %1450 = vst [vmem:[#allocation2 + $0x140] sm:$0xff] %v892
    %1451 = vst [vmem:[#allocation2 + $0x148] sm:$0xff] %v897
    %1452 = vst [vmem:[#allocation2 + $0x150] sm:$0xff] %v902
    %1453 = vst [vmem:[#allocation2 + $0x158] sm:$0xff] %v907
    %1454 = vst [vmem:[#allocation2 + $0x160] sm:$0xff] %v912
    %1455 = vst [vmem:[#allocation2 + $0x168] sm:$0xff] %v917
    %1456 = vst [vmem:[#allocation2 + $0x170] sm:$0xff] %v922
    %1457 = vst [vmem:[#allocation2 + $0x178] sm:$0xff] %v927
    %1458 = vst [vmem:[#allocation2 + $0x180] sm:$0xff] %v932
    %1459 = vst [vmem:[#allocation2 + $0x188] sm:$0xff] %v937
    %1460 = vst [vmem:[#allocation2 + $0x190] sm:$0xff] %v942
    %1461 = vst [vmem:[#allocation2 + $0x198] sm:$0xff] %v947
    %1462 = vst [vmem:[#allocation2 + $0x1a0] sm:$0xff] %v952
    %1463 = vst [vmem:[#allocation2 + $0x1a8] sm:$0xff] %v957
    %1464 = vst [vmem:[#allocation2 + $0x1b0] sm:$0xff] %v962
    %1465 = vst [vmem:[#allocation2 + $0x1b8] sm:$0xff] %v967
    %1466 = vst [vmem:[#allocation2 + $0x1c0] sm:$0xff] %v972
    %1467 = vst [vmem:[#allocation2 + $0x1c8] sm:$0xff] %v977
    %1468 = vst [vmem:[#allocation2 + $0x1d0] sm:$0xff] %v982
    %1469 = vst [vmem:[#allocation2 + $0x1d8] sm:$0xff] %v987
    %1470 = vst [vmem:[#allocation2 + $0x1e0] sm:$0xff] %v992
    %1471 = vst [vmem:[#allocation2 + $0x1e8] sm:$0xff] %v997
    %1472 = vst [vmem:[#allocation2 + $0x1f0] sm:$0xff] %v1002
    %1473 = vst [vmem:[#allocation2 + $0x1f8] sm:$0xff] %v1007
    %1474 = vst [vmem:[#allocation2 + $0x200] sm:$0xff] %v1012
    %1475 = vst [vmem:[#allocation2 + $0x208] sm:$0xff] %v1017
    %1476 = vst [vmem:[#allocation2 + $0x210] sm:$0xff] %v1022
    %1477 = vst [vmem:[#allocation2 + $0x218] sm:$0xff] %v1027
    %1478 = vst [vmem:[#allocation2 + $0x220] sm:$0xff] %v1032
    %1479 = vst [vmem:[#allocation2 + $0x228] sm:$0xff] %v1037
    %1480 = vst [vmem:[#allocation2 + $0x230] sm:$0xff] %v1042
    %1481 = vst [vmem:[#allocation2 + $0x238] sm:$0xff] %v1047
    %1482 = vst [vmem:[#allocation2 + $0x240] sm:$0xff] %v1052
    %1483 = vst [vmem:[#allocation2 + $0x248] sm:$0xff] %v1057
    %1484 = vst [vmem:[#allocation2 + $0x250] sm:$0xff] %v1062
    %1485 = vst [vmem:[#allocation2 + $0x258] sm:$0xff] %v1067
    %1486 = vst [vmem:[#allocation2 + $0x260] sm:$0xff] %v1072
    %1487 = vst [vmem:[#allocation2 + $0x268] sm:$0xff] %v1077
    %1488 = vst [vmem:[#allocation2 + $0x270] sm:$0xff] %v1082
    %1489 = vst [vmem:[#allocation2 + $0x278] sm:$0xff] %v1087
    %1490 = vst [vmem:[#allocation2 + $0x280] sm:$0xff] %v1092
    %1491 = vst [vmem:[#allocation2 + $0x288] sm:$0xff] %v1097
    %1492 = vst [vmem:[#allocation2 + $0x290] sm:$0xff] %v1102
    %1493 = vst [vmem:[#allocation2 + $0x298] sm:$0xff] %v1107
    %1494 = vst [vmem:[#allocation2 + $0x2a0] sm:$0xff] %v1112
    %1495 = vst [vmem:[#allocation2 + $0x2a8] sm:$0xff] %v1117
    %1496 = vst [vmem:[#allocation2 + $0x2b0] sm:$0xff] %v1122
    %1497 = vst [vmem:[#allocation2 + $0x2b8] sm:$0xff] %v1127
    %1498 = vst [vmem:[#allocation2 + $0x2c0] sm:$0xff] %v1132
    %1499 = vst [vmem:[#allocation2 + $0x2c8] sm:$0xff] %v1137
    %1500 = vst [vmem:[#allocation2 + $0x2d0] sm:$0xff] %v1142
    %1501 = vst [vmem:[#allocation2 + $0x2d8] sm:$0xff] %v1147
    %1502 = vst [vmem:[#allocation2 + $0x2e0] sm:$0xff] %v1152
    %1503 = vst [vmem:[#allocation2 + $0x2e8] sm:$0xff] %v1157
    %1504 = vst [vmem:[#allocation2 + $0x2f0] sm:$0xff] %v1162
    %1505 = vst [vmem:[#allocation2 + $0x2f8] sm:$0xff] %v1167
    %1506 = vst [vmem:[#allocation2 + $0x300] sm:$0xff] %v1172
    %1507 = vst [vmem:[#allocation2 + $0x308] sm:$0xff] %v1177
    %1508 = vst [vmem:[#allocation2 + $0x310] sm:$0xff] %v1182
    %1509 = vst [vmem:[#allocation2 + $0x318] sm:$0xff] %v1187
    %1510 = vst [vmem:[#allocation2 + $0x320] sm:$0xff] %v1192
    %1511 = vst [vmem:[#allocation2 + $0x328] sm:$0xff] %v1197
    %1512 = vst [vmem:[#allocation2 + $0x330] sm:$0xff] %v1202
    %1513 = vst [vmem:[#allocation2 + $0x338] sm:$0xff] %v1207
    %1514 = vst [vmem:[#allocation2 + $0x340] sm:$0xff] %v1212
    %1515 = vst [vmem:[#allocation2 + $0x348] sm:$0xff] %v1217
    %1516 = vst [vmem:[#allocation2 + $0x350] sm:$0xff] %v1222
    %1517 = vst [vmem:[#allocation2 + $0x358] sm:$0xff] %v1227
    %1518 = vst [vmem:[#allocation2 + $0x360] sm:$0xff] %v1232
    %1519 = vst [vmem:[#allocation2 + $0x368] sm:$0xff] %v1237
    %1520 = vst [vmem:[#allocation2 + $0x370] sm:$0xff] %v1242
    %1521 = vst [vmem:[#allocation2 + $0x378] sm:$0xff] %v1247
    %1522 = vst [vmem:[#allocation2 + $0x380] sm:$0xff] %v1252
    %1523 = vst [vmem:[#allocation2 + $0x388] sm:$0xff] %v1257
    %1524 = vst [vmem:[#allocation2 + $0x390] sm:$0xff] %v1262
    %1525 = vst [vmem:[#allocation2 + $0x398] sm:$0xff] %v1267
    %1526 = vst [vmem:[#allocation2 + $0x3a0] sm:$0xff] %v1272
    %1527 = vst [vmem:[#allocation2 + $0x3a8] sm:$0xff] %v1277
    %1528 = vst [vmem:[#allocation2 + $0x3b0] sm:$0xff] %v1282
    %1529 = vst [vmem:[#allocation2 + $0x3b8] sm:$0xff] %v1287
    %1530 = vst [vmem:[#allocation2 + $0x3c0] sm:$0xff] %v1292
    %1531 = vst [vmem:[#allocation2 + $0x3c8] sm:$0xff] %v1297
    %1532 = vst [vmem:[#allocation2 + $0x3d0] sm:$0xff] %v1302
    %1533 = vst [vmem:[#allocation2 + $0x3d8] sm:$0xff] %v1307
    %1534 = vst [vmem:[#allocation2 + $0x3e0] sm:$0xff] %v1312
    %1535 = vst [vmem:[#allocation2 + $0x3e8] sm:$0xff] %v1317
    %1536 = vst [vmem:[#allocation2 + $0x3f0] sm:$0xff] %v1322
    %1537 = vst [vmem:[#allocation2 + $0x3f8] sm:$0xff] %v1327
    %1538 = vst [vmem:[#allocation2 + $0x400] sm:$0xff] %v1332
    %1539 = vst [vmem:[#allocation2 + $0x408] sm:$0xff] %v1337
    %1540 = vst [vmem:[#allocation2 + $0x410] sm:$0xff] %v1342
    %1541 = vst [vmem:[#allocation2 + $0x418] sm:$0xff] %v1347
    %1542 = vst [vmem:[#allocation2 + $0x420] sm:$0xff] %v1352
    %1543 = vst [vmem:[#allocation2 + $0x428] sm:$0xff] %v1357
    %1544 = vst [vmem:[#allocation2 + $0x430] sm:$0xff] %v1362
    %1545 = vst [vmem:[#allocation2 + $0x438] sm:$0xff] %v1367
    %1546 = vst [vmem:[#allocation2 + $0x440] sm:$0xff] %v1372
    %1547 = vst [vmem:[#allocation2 + $0x448] sm:$0xff] %v1377
    %1548 = vst [vmem:[#allocation2 + $0x450] sm:$0xff] %v1382
    %1549 = vst [vmem:[#allocation2 + $0x458] sm:$0xff] %v1387
    %1550 = vst [vmem:[#allocation2 + $0x460] sm:$0xff] %v1392
    %1551 = vst [vmem:[#allocation2 + $0x468] sm:$0xff] %v1397
    %1552 = vst [vmem:[#allocation2 + $0x470] sm:$0xff] %v1402
    %1553 = vst [vmem:[#allocation2 + $0x478] sm:$0xff] %v1407
    %v1554 = vld [vmem:[#allocation2] ss:$2 sm:$0xff]
    %s1555 = scalar_lea.vmem [#allocation2], 16
    %v1556 = vld [vmem:[%s1555] ss:$2 sm:$0xf]
    %s1557 = scalar_lea.vmem [#allocation2], 48
    %v1558 = vld [vmem:[%s1557] ss:$2 sm:$0xff]
    %s1559 = scalar_lea.vmem [#allocation2], 64
    %v1560 = vld [vmem:[%s1559] ss:$2 sm:$0xf]
    %s1561 = scalar_lea.vmem [#allocation2], 96
    %v1562 = vld [vmem:[%s1561] ss:$2 sm:$0xff]
    %s1563 = scalar_lea.vmem [#allocation2], 112
    %v1564 = vld [vmem:[%s1563] ss:$2 sm:$0xf]
    %s1565 = scalar_lea.vmem [#allocation2], 144
    %v1566 = vld [vmem:[%s1565] ss:$2 sm:$0xff]
    %s1567 = scalar_lea.vmem [#allocation2], 160
    %v1568 = vld [vmem:[%s1567] ss:$2 sm:$0xf]
    %s1569 = scalar_lea.vmem [#allocation2], 192
    %v1570 = vld [vmem:[%s1569] ss:$2 sm:$0xff]
    %s1571 = scalar_lea.vmem [#allocation2], 208
    %v1572 = vld [vmem:[%s1571] ss:$2 sm:$0xf]
    %s1573 = scalar_lea.vmem [#allocation2], 240
    %v1574 = vld [vmem:[%s1573] ss:$2 sm:$0xff]
    %s1575 = scalar_lea.vmem [#allocation2], 256
    %v1576 = vld [vmem:[%s1575] ss:$2 sm:$0xf]
    %s1577 = scalar_lea.vmem [#allocation2], 288
    %v1578 = vld [vmem:[%s1577] ss:$2 sm:$0xff]
    %s1579 = scalar_lea.vmem [#allocation2], 304
    %v1580 = vld [vmem:[%s1579] ss:$2 sm:$0xf]
    %s1581 = scalar_lea.vmem [#allocation2], 336
    %v1582 = vld [vmem:[%s1581] ss:$2 sm:$0xff]
    %s1583 = scalar_lea.vmem [#allocation2], 352
    %v1584 = vld [vmem:[%s1583] ss:$2 sm:$0xf]
    %s1585 = scalar_lea.vmem [#allocation2], 384
    %v1586 = vld [vmem:[%s1585] ss:$2 sm:$0xff]
    %s1587 = scalar_lea.vmem [#allocation2], 400
    %v1588 = vld [vmem:[%s1587] ss:$2 sm:$0xf]
    %s1589 = scalar_lea.vmem [#allocation2], 432
    %v1590 = vld [vmem:[%s1589] ss:$2 sm:$0xff]
    %s1591 = scalar_lea.vmem [#allocation2], 448
    %v1592 = vld [vmem:[%s1591] ss:$2 sm:$0xf]
    %s1593 = scalar_lea.vmem [#allocation2], 480
    %v1594 = vld [vmem:[%s1593] ss:$2 sm:$0xff]
    %s1595 = scalar_lea.vmem [#allocation2], 496
    %v1596 = vld [vmem:[%s1595] ss:$2 sm:$0xf]
    %s1597 = scalar_lea.vmem [#allocation2], 528
    %v1598 = vld [vmem:[%s1597] ss:$2 sm:$0xff]
    %s1599 = scalar_lea.vmem [#allocation2], 544
    %v1600 = vld [vmem:[%s1599] ss:$2 sm:$0xf]
    %s1601 = scalar_lea.vmem [#allocation2], 576
    %v1602 = vld [vmem:[%s1601] ss:$2 sm:$0xff]
    %s1603 = scalar_lea.vmem [#allocation2], 592
    %v1604 = vld [vmem:[%s1603] ss:$2 sm:$0xf]
    %s1605 = scalar_lea.vmem [#allocation2], 624
    %v1606 = vld [vmem:[%s1605] ss:$2 sm:$0xff]
    %s1607 = scalar_lea.vmem [#allocation2], 640
    %v1608 = vld [vmem:[%s1607] ss:$2 sm:$0xf]
    %s1609 = scalar_lea.vmem [#allocation2], 672
    %v1610 = vld [vmem:[%s1609] ss:$2 sm:$0xff]
    %s1611 = scalar_lea.vmem [#allocation2], 688
    %v1612 = vld [vmem:[%s1611] ss:$2 sm:$0xf]
    %s1613 = scalar_lea.vmem [#allocation2], 720
    %v1614 = vld [vmem:[%s1613] ss:$2 sm:$0xff]
    %s1615 = scalar_lea.vmem [#allocation2], 736
    %v1616 = vld [vmem:[%s1615] ss:$2 sm:$0xf]
    %s1617 = scalar_lea.vmem [#allocation2], 768
    %v1618 = vld [vmem:[%s1617] ss:$2 sm:$0xff]
    %s1619 = scalar_lea.vmem [#allocation2], 784
    %v1620 = vld [vmem:[%s1619] ss:$2 sm:$0xf]
    %s1621 = scalar_lea.vmem [#allocation2], 816
    %v1622 = vld [vmem:[%s1621] ss:$2 sm:$0xff]
    %s1623 = scalar_lea.vmem [#allocation2], 832
    %v1624 = vld [vmem:[%s1623] ss:$2 sm:$0xf]
    %s1625 = scalar_lea.vmem [#allocation2], 864
    %v1626 = vld [vmem:[%s1625] ss:$2 sm:$0xff]
    %s1627 = scalar_lea.vmem [#allocation2], 880
    %v1628 = vld [vmem:[%s1627] ss:$2 sm:$0xf]
    %s1629 = scalar_lea.vmem [#allocation2], 912
    %v1630 = vld [vmem:[%s1629] ss:$2 sm:$0xff]
    %s1631 = scalar_lea.vmem [#allocation2], 928
    %v1632 = vld [vmem:[%s1631] ss:$2 sm:$0xf]
    %s1633 = scalar_lea.vmem [#allocation2], 960
    %v1634 = vld [vmem:[%s1633] ss:$2 sm:$0xff]
    %s1635 = scalar_lea.vmem [#allocation2], 976
    %v1636 = vld [vmem:[%s1635] ss:$2 sm:$0xf]
    %s1637 = scalar_lea.vmem [#allocation2], 1008
    %v1638 = vld [vmem:[%s1637] ss:$2 sm:$0xff]
    %s1639 = scalar_lea.vmem [#allocation2], 1024
    %v1640 = vld [vmem:[%s1639] ss:$2 sm:$0xf]
    %s1641 = scalar_lea.vmem [#allocation2], 1056
    %v1642 = vld [vmem:[%s1641] ss:$2 sm:$0xff]
    %s1643 = scalar_lea.vmem [#allocation2], 1072
    %v1644 = vld [vmem:[%s1643] ss:$2 sm:$0xf]
    %s1645 = scalar_lea.vmem [#allocation2], 1104
    %v1646 = vld [vmem:[%s1645] ss:$2 sm:$0xff]
    %s1647 = scalar_lea.vmem [#allocation2], 1120
    %v1648 = vld [vmem:[%s1647] ss:$2 sm:$0xf]
    %s1649 = scalar_lea.vmem [#allocation2], 1
    %v1650 = vld [vmem:[%s1649] ss:$2 sm:$0xff]
    %s1651 = scalar_lea.vmem [#allocation2], 17
    %v1652 = vld [vmem:[%s1651] ss:$2 sm:$0xf]
    %s1653 = scalar_lea.vmem [#allocation2], 49
    %v1654 = vld [vmem:[%s1653] ss:$2 sm:$0xff]
    %s1655 = scalar_lea.vmem [#allocation2], 65
    %v1656 = vld [vmem:[%s1655] ss:$2 sm:$0xf]
    %s1657 = scalar_lea.vmem [#allocation2], 97
    %v1658 = vld [vmem:[%s1657] ss:$2 sm:$0xff]
    %s1659 = scalar_lea.vmem [#allocation2], 113
    %v1660 = vld [vmem:[%s1659] ss:$2 sm:$0xf]
    %s1661 = scalar_lea.vmem [#allocation2], 145
    %v1662 = vld [vmem:[%s1661] ss:$2 sm:$0xff]
    %s1663 = scalar_lea.vmem [#allocation2], 161
    %v1664 = vld [vmem:[%s1663] ss:$2 sm:$0xf]
    %s1665 = scalar_lea.vmem [#allocation2], 193
    %v1666 = vld [vmem:[%s1665] ss:$2 sm:$0xff]
    %s1667 = scalar_lea.vmem [#allocation2], 209
    %v1668 = vld [vmem:[%s1667] ss:$2 sm:$0xf]
    %s1669 = scalar_lea.vmem [#allocation2], 241
    %v1670 = vld [vmem:[%s1669] ss:$2 sm:$0xff]
    %s1671 = scalar_lea.vmem [#allocation2], 257
    %v1672 = vld [vmem:[%s1671] ss:$2 sm:$0xf]
    %s1673 = scalar_lea.vmem [#allocation2], 289
    %v1674 = vld [vmem:[%s1673] ss:$2 sm:$0xff]
    %s1675 = scalar_lea.vmem [#allocation2], 305
    %v1676 = vld [vmem:[%s1675] ss:$2 sm:$0xf]
    %s1677 = scalar_lea.vmem [#allocation2], 337
    %v1678 = vld [vmem:[%s1677] ss:$2 sm:$0xff]
    %s1679 = scalar_lea.vmem [#allocation2], 353
    %v1680 = vld [vmem:[%s1679] ss:$2 sm:$0xf]
    %s1681 = scalar_lea.vmem [#allocation2], 385
    %v1682 = vld [vmem:[%s1681] ss:$2 sm:$0xff]
    %s1683 = scalar_lea.vmem [#allocation2], 401
    %v1684 = vld [vmem:[%s1683] ss:$2 sm:$0xf]
    %s1685 = scalar_lea.vmem [#allocation2], 433
    %v1686 = vld [vmem:[%s1685] ss:$2 sm:$0xff]
    %s1687 = scalar_lea.vmem [#allocation2], 449
    %v1688 = vld [vmem:[%s1687] ss:$2 sm:$0xf]
    %s1689 = scalar_lea.vmem [#allocation2], 481
    %v1690 = vld [vmem:[%s1689] ss:$2 sm:$0xff]
    %s1691 = scalar_lea.vmem [#allocation2], 497
    %v1692 = vld [vmem:[%s1691] ss:$2 sm:$0xf]
    %s1693 = scalar_lea.vmem [#allocation2], 529
    %v1694 = vld [vmem:[%s1693] ss:$2 sm:$0xff]
    %s1695 = scalar_lea.vmem [#allocation2], 545
    %v1696 = vld [vmem:[%s1695] ss:$2 sm:$0xf]
    %s1697 = scalar_lea.vmem [#allocation2], 577
    %v1698 = vld [vmem:[%s1697] ss:$2 sm:$0xff]
    %s1699 = scalar_lea.vmem [#allocation2], 593
    %v1700 = vld [vmem:[%s1699] ss:$2 sm:$0xf]
    %s1701 = scalar_lea.vmem [#allocation2], 625
    %v1702 = vld [vmem:[%s1701] ss:$2 sm:$0xff]
    %s1703 = scalar_lea.vmem [#allocation2], 641
    %v1704 = vld [vmem:[%s1703] ss:$2 sm:$0xf]
    %s1705 = scalar_lea.vmem [#allocation2], 673
    %v1706 = vld [vmem:[%s1705] ss:$2 sm:$0xff]
    %s1707 = scalar_lea.vmem [#allocation2], 689
    %v1708 = vld [vmem:[%s1707] ss:$2 sm:$0xf]
    %s1709 = scalar_lea.vmem [#allocation2], 721
    %v1710 = vld [vmem:[%s1709] ss:$2 sm:$0xff]
    %s1711 = scalar_lea.vmem [#allocation2], 737
    %v1712 = vld [vmem:[%s1711] ss:$2 sm:$0xf]
    %s1713 = scalar_lea.vmem [#allocation2], 769
    %v1714 = vld [vmem:[%s1713] ss:$2 sm:$0xff]
    %s1715 = scalar_lea.vmem [#allocation2], 785
    %v1716 = vld [vmem:[%s1715] ss:$2 sm:$0xf]
    %s1717 = scalar_lea.vmem [#allocation2], 817
    %v1718 = vld [vmem:[%s1717] ss:$2 sm:$0xff]
    %s1719 = scalar_lea.vmem [#allocation2], 833
    %v1720 = vld [vmem:[%s1719] ss:$2 sm:$0xf]
    %s1721 = scalar_lea.vmem [#allocation2], 865
    %v1722 = vld [vmem:[%s1721] ss:$2 sm:$0xff]
    %s1723 = scalar_lea.vmem [#allocation2], 881
    %v1724 = vld [vmem:[%s1723] ss:$2 sm:$0xf]
    %s1725 = scalar_lea.vmem [#allocation2], 913
    %v1726 = vld [vmem:[%s1725] ss:$2 sm:$0xff]
    %s1727 = scalar_lea.vmem [#allocation2], 929
    %v1728 = vld [vmem:[%s1727] ss:$2 sm:$0xf]
    %s1729 = scalar_lea.vmem [#allocation2], 961
    %v1730 = vld [vmem:[%s1729] ss:$2 sm:$0xff]
    %s1731 = scalar_lea.vmem [#allocation2], 977
    %v1732 = vld [vmem:[%s1731] ss:$2 sm:$0xf]
    %s1733 = scalar_lea.vmem [#allocation2], 1009
    %v1734 = vld [vmem:[%s1733] ss:$2 sm:$0xff]
    %s1735 = scalar_lea.vmem [#allocation2], 1025
    %v1736 = vld [vmem:[%s1735] ss:$2 sm:$0xf]
    %s1737 = scalar_lea.vmem [#allocation2], 1057
    %v1738 = vld [vmem:[%s1737] ss:$2 sm:$0xff]
    %s1739 = scalar_lea.vmem [#allocation2], 1073
    %v1740 = vld [vmem:[%s1739] ss:$2 sm:$0xf]
    %s1741 = scalar_lea.vmem [#allocation2], 1105
    %v1742 = vld [vmem:[%s1741] ss:$2 sm:$0xff]
    %s1743 = scalar_lea.vmem [#allocation2], 1121
    %v1744 = vld [vmem:[%s1743] ss:$2 sm:$0xf]
    %s1745 = scalar_lea.vmem [#allocation2], 24
    %v1746 = vld [vmem:[%s1745] ss:$2 sm:$0xff]
    %s1747 = scalar_lea.vmem %s1745, 16 [#allocation2]
    %v1748 = vld [vmem:[%s1747] ss:$2 sm:$0xf]
    %s1749 = scalar_lea.vmem %s1745, 48 [#allocation2]
    %v1750 = vld [vmem:[%s1749] ss:$2 sm:$0xff]
    %s1751 = scalar_lea.vmem %s1745, 64 [#allocation2]
    %v1752 = vld [vmem:[%s1751] ss:$2 sm:$0xf]
    %s1753 = scalar_lea.vmem %s1745, 96 [#allocation2]
    %v1754 = vld [vmem:[%s1753] ss:$2 sm:$0xff]
    %s1755 = scalar_lea.vmem %s1745, 112 [#allocation2]
    %v1756 = vld [vmem:[%s1755] ss:$2 sm:$0xf]
    %s1757 = scalar_lea.vmem %s1745, 144 [#allocation2]
    %v1758 = vld [vmem:[%s1757] ss:$2 sm:$0xff]
    %s1759 = scalar_lea.vmem %s1745, 160 [#allocation2]
    %v1760 = vld [vmem:[%s1759] ss:$2 sm:$0xf]
    %s1761 = scalar_lea.vmem %s1745, 192 [#allocation2]
    %v1762 = vld [vmem:[%s1761] ss:$2 sm:$0xff]
    %s1763 = scalar_lea.vmem %s1745, 208 [#allocation2]
    %v1764 = vld [vmem:[%s1763] ss:$2 sm:$0xf]
    %s1765 = scalar_lea.vmem %s1745, 240 [#allocation2]
    %v1766 = vld [vmem:[%s1765] ss:$2 sm:$0xff]
    %s1767 = scalar_lea.vmem %s1745, 256 [#allocation2]
    %v1768 = vld [vmem:[%s1767] ss:$2 sm:$0xf]
    %s1769 = scalar_lea.vmem %s1745, 288 [#allocation2]
    %v1770 = vld [vmem:[%s1769] ss:$2 sm:$0xff]
    %s1771 = scalar_lea.vmem %s1745, 304 [#allocation2]
    %v1772 = vld [vmem:[%s1771] ss:$2 sm:$0xf]
    %s1773 = scalar_lea.vmem %s1745, 336 [#allocation2]
    %v1774 = vld [vmem:[%s1773] ss:$2 sm:$0xff]
    %s1775 = scalar_lea.vmem %s1745, 352 [#allocation2]
    %v1776 = vld [vmem:[%s1775] ss:$2 sm:$0xf]
    %s1777 = scalar_lea.vmem %s1745, 384 [#allocation2]
    %v1778 = vld [vmem:[%s1777] ss:$2 sm:$0xff]
    %s1779 = scalar_lea.vmem %s1745, 400 [#allocation2]
    %v1780 = vld [vmem:[%s1779] ss:$2 sm:$0xf]
    %s1781 = scalar_lea.vmem %s1745, 432 [#allocation2]
    %v1782 = vld [vmem:[%s1781] ss:$2 sm:$0xff]
    %s1783 = scalar_lea.vmem %s1745, 448 [#allocation2]
    %v1784 = vld [vmem:[%s1783] ss:$2 sm:$0xf]
    %s1785 = scalar_lea.vmem %s1745, 480 [#allocation2]
    %v1786 = vld [vmem:[%s1785] ss:$2 sm:$0xff]
    %s1787 = scalar_lea.vmem %s1745, 496 [#allocation2]
    %v1788 = vld [vmem:[%s1787] ss:$2 sm:$0xf]
    %s1789 = scalar_lea.vmem %s1745, 528 [#allocation2]
    %v1790 = vld [vmem:[%s1789] ss:$2 sm:$0xff]
    %s1791 = scalar_lea.vmem %s1745, 544 [#allocation2]
    %v1792 = vld [vmem:[%s1791] ss:$2 sm:$0xf]
    %s1793 = scalar_lea.vmem %s1745, 576 [#allocation2]
    %v1794 = vld [vmem:[%s1793] ss:$2 sm:$0xff]
    %s1795 = scalar_lea.vmem %s1745, 592 [#allocation2]
    %v1796 = vld [vmem:[%s1795] ss:$2 sm:$0xf]
    %s1797 = scalar_lea.vmem %s1745, 624 [#allocation2]
    %v1798 = vld [vmem:[%s1797] ss:$2 sm:$0xff]
    %s1799 = scalar_lea.vmem %s1745, 640 [#allocation2]
    %v1800 = vld [vmem:[%s1799] ss:$2 sm:$0xf]
    %s1801 = scalar_lea.vmem %s1745, 672 [#allocation2]
    %v1802 = vld [vmem:[%s1801] ss:$2 sm:$0xff]
    %s1803 = scalar_lea.vmem %s1745, 688 [#allocation2]
    %v1804 = vld [vmem:[%s1803] ss:$2 sm:$0xf]
    %s1805 = scalar_lea.vmem %s1745, 720 [#allocation2]
    %v1806 = vld [vmem:[%s1805] ss:$2 sm:$0xff]
    %s1807 = scalar_lea.vmem %s1745, 736 [#allocation2]
    %v1808 = vld [vmem:[%s1807] ss:$2 sm:$0xf]
    %s1809 = scalar_lea.vmem %s1745, 768 [#allocation2]
    %v1810 = vld [vmem:[%s1809] ss:$2 sm:$0xff]
    %s1811 = scalar_lea.vmem %s1745, 784 [#allocation2]
    %v1812 = vld [vmem:[%s1811] ss:$2 sm:$0xf]
    %s1813 = scalar_lea.vmem %s1745, 816 [#allocation2]
    %v1814 = vld [vmem:[%s1813] ss:$2 sm:$0xff]
    %s1815 = scalar_lea.vmem %s1745, 832 [#allocation2]
    %v1816 = vld [vmem:[%s1815] ss:$2 sm:$0xf]
    %s1817 = scalar_lea.vmem %s1745, 864 [#allocation2]
    %v1818 = vld [vmem:[%s1817] ss:$2 sm:$0xff]
    %s1819 = scalar_lea.vmem %s1745, 880 [#allocation2]
    %v1820 = vld [vmem:[%s1819] ss:$2 sm:$0xf]
    %s1821 = scalar_lea.vmem %s1745, 912 [#allocation2]
    %v1822 = vld [vmem:[%s1821] ss:$2 sm:$0xff]
    %s1823 = scalar_lea.vmem %s1745, 928 [#allocation2]
    %v1824 = vld [vmem:[%s1823] ss:$2 sm:$0xf]
    %s1825 = scalar_lea.vmem %s1745, 960 [#allocation2]
    %v1826 = vld [vmem:[%s1825] ss:$2 sm:$0xff]
    %s1827 = scalar_lea.vmem %s1745, 976 [#allocation2]
    %v1828 = vld [vmem:[%s1827] ss:$2 sm:$0xf]
    %s1829 = scalar_lea.vmem %s1745, 1008 [#allocation2]
    %v1830 = vld [vmem:[%s1829] ss:$2 sm:$0xff]
    %s1831 = scalar_lea.vmem %s1745, 1024 [#allocation2]
    %v1832 = vld [vmem:[%s1831] ss:$2 sm:$0xf]
    %s1833 = scalar_lea.vmem %s1745, 1056 [#allocation2]
    %v1834 = vld [vmem:[%s1833] ss:$2 sm:$0xff]
    %s1835 = scalar_lea.vmem %s1745, 1072 [#allocation2]
    %v1836 = vld [vmem:[%s1835] ss:$2 sm:$0xf]
    %s1837 = scalar_lea.vmem %s1745, 1104 [#allocation2]
    %v1838 = vld [vmem:[%s1837] ss:$2 sm:$0xff]
    %s1839 = scalar_lea.vmem %s1745, 1120 [#allocation2]
    %v1840 = vld [vmem:[%s1839] ss:$2 sm:$0xf]
    %s1841 = scalar_lea.vmem %s1745, 1 [#allocation2]
    %v1842 = vld [vmem:[%s1841] ss:$2 sm:$0xff]
    %s1843 = scalar_lea.vmem %s1745, 17 [#allocation2]
    %v1844 = vld [vmem:[%s1843] ss:$2 sm:$0xf]
    %s1845 = scalar_lea.vmem %s1745, 49 [#allocation2]
    %v1846 = vld [vmem:[%s1845] ss:$2 sm:$0xff]
    %s1847 = scalar_lea.vmem %s1745, 65 [#allocation2]
    %v1848 = vld [vmem:[%s1847] ss:$2 sm:$0xf]
    %s1849 = scalar_lea.vmem %s1745, 97 [#allocation2]
    %v1850 = vld [vmem:[%s1849] ss:$2 sm:$0xff]
    %s1851 = scalar_lea.vmem %s1745, 113 [#allocation2]
    %v1852 = vld [vmem:[%s1851] ss:$2 sm:$0xf]
    %s1853 = scalar_lea.vmem %s1745, 145 [#allocation2]
    %v1854 = vld [vmem:[%s1853] ss:$2 sm:$0xff]
    %s1855 = scalar_lea.vmem %s1745, 161 [#allocation2]
    %v1856 = vld [vmem:[%s1855] ss:$2 sm:$0xf]
    %s1857 = scalar_lea.vmem %s1745, 193 [#allocation2]
    %v1858 = vld [vmem:[%s1857] ss:$2 sm:$0xff]
    %s1859 = scalar_lea.vmem %s1745, 209 [#allocation2]
    %v1860 = vld [vmem:[%s1859] ss:$2 sm:$0xf]
    %s1861 = scalar_lea.vmem %s1745, 241 [#allocation2]
    %v1862 = vld [vmem:[%s1861] ss:$2 sm:$0xff]
    %s1863 = scalar_lea.vmem %s1745, 257 [#allocation2]
    %v1864 = vld [vmem:[%s1863] ss:$2 sm:$0xf]
    %s1865 = scalar_lea.vmem %s1745, 289 [#allocation2]
    %v1866 = vld [vmem:[%s1865] ss:$2 sm:$0xff]
    %s1867 = scalar_lea.vmem %s1745, 305 [#allocation2]
    %v1868 = vld [vmem:[%s1867] ss:$2 sm:$0xf]
    %s1869 = scalar_lea.vmem %s1745, 337 [#allocation2]
    %v1870 = vld [vmem:[%s1869] ss:$2 sm:$0xff]
    %s1871 = scalar_lea.vmem %s1745, 353 [#allocation2]
    %v1872 = vld [vmem:[%s1871] ss:$2 sm:$0xf]
    %s1873 = scalar_lea.vmem %s1745, 385 [#allocation2]
    %v1874 = vld [vmem:[%s1873] ss:$2 sm:$0xff]
    %s1875 = scalar_lea.vmem %s1745, 401 [#allocation2]
    %v1876 = vld [vmem:[%s1875] ss:$2 sm:$0xf]
    %s1877 = scalar_lea.vmem %s1745, 433 [#allocation2]
    %v1878 = vld [vmem:[%s1877] ss:$2 sm:$0xff]
    %s1879 = scalar_lea.vmem %s1745, 449 [#allocation2]
    %v1880 = vld [vmem:[%s1879] ss:$2 sm:$0xf]
    %s1881 = scalar_lea.vmem %s1745, 481 [#allocation2]
    %v1882 = vld [vmem:[%s1881] ss:$2 sm:$0xff]
    %s1883 = scalar_lea.vmem %s1745, 497 [#allocation2]
    %v1884 = vld [vmem:[%s1883] ss:$2 sm:$0xf]
    %s1885 = scalar_lea.vmem %s1745, 529 [#allocation2]
    %v1886 = vld [vmem:[%s1885] ss:$2 sm:$0xff]
    %s1887 = scalar_lea.vmem %s1745, 545 [#allocation2]
    %v1888 = vld [vmem:[%s1887] ss:$2 sm:$0xf]
    %s1889 = scalar_lea.vmem %s1745, 577 [#allocation2]
    %v1890 = vld [vmem:[%s1889] ss:$2 sm:$0xff]
    %s1891 = scalar_lea.vmem %s1745, 593 [#allocation2]
    %v1892 = vld [vmem:[%s1891] ss:$2 sm:$0xf]
    %s1893 = scalar_lea.vmem %s1745, 625 [#allocation2]
    %v1894 = vld [vmem:[%s1893] ss:$2 sm:$0xff]
    %s1895 = scalar_lea.vmem %s1745, 641 [#allocation2]
    %v1896 = vld [vmem:[%s1895] ss:$2 sm:$0xf]
    %s1897 = scalar_lea.vmem %s1745, 673 [#allocation2]
    %v1898 = vld [vmem:[%s1897] ss:$2 sm:$0xff]
    %s1899 = scalar_lea.vmem %s1745, 689 [#allocation2]
    %v1900 = vld [vmem:[%s1899] ss:$2 sm:$0xf]
    %s1901 = scalar_lea.vmem %s1745, 721 [#allocation2]
    %v1902 = vld [vmem:[%s1901] ss:$2 sm:$0xff]
    %s1903 = scalar_lea.vmem %s1745, 737 [#allocation2]
    %v1904 = vld [vmem:[%s1903] ss:$2 sm:$0xf]
    %s1905 = scalar_lea.vmem %s1745, 769 [#allocation2]
    %v1906 = vld [vmem:[%s1905] ss:$2 sm:$0xff]
    %s1907 = scalar_lea.vmem %s1745, 785 [#allocation2]
    %v1908 = vld [vmem:[%s1907] ss:$2 sm:$0xf]
    %s1909 = scalar_lea.vmem %s1745, 817 [#allocation2]
    %v1910 = vld [vmem:[%s1909] ss:$2 sm:$0xff]
    %s1911 = scalar_lea.vmem %s1745, 833 [#allocation2]
    %v1912 = vld [vmem:[%s1911] ss:$2 sm:$0xf]
    %s1913 = scalar_lea.vmem %s1745, 865 [#allocation2]
    %v1914 = vld [vmem:[%s1913] ss:$2 sm:$0xff]
    %s1915 = scalar_lea.vmem %s1745, 881 [#allocation2]
    %v1916 = vld [vmem:[%s1915] ss:$2 sm:$0xf]
    %s1917 = scalar_lea.vmem %s1745, 913 [#allocation2]
    %v1918 = vld [vmem:[%s1917] ss:$2 sm:$0xff]
    %s1919 = scalar_lea.vmem %s1745, 929 [#allocation2]
    %v1920 = vld [vmem:[%s1919] ss:$2 sm:$0xf]
    %s1921 = scalar_lea.vmem %s1745, 961 [#allocation2]
    %v1922 = vld [vmem:[%s1921] ss:$2 sm:$0xff]
    %s1923 = scalar_lea.vmem %s1745, 977 [#allocation2]
    %v1924 = vld [vmem:[%s1923] ss:$2 sm:$0xf]
    %s1925 = scalar_lea.vmem %s1745, 1009 [#allocation2]
    %v1926 = vld [vmem:[%s1925] ss:$2 sm:$0xff]
    %s1927 = scalar_lea.vmem %s1745, 1025 [#allocation2]
    %v1928 = vld [vmem:[%s1927] ss:$2 sm:$0xf]
    %s1929 = scalar_lea.vmem %s1745, 1057 [#allocation2]
    %v1930 = vld [vmem:[%s1929] ss:$2 sm:$0xff]
    %s1931 = scalar_lea.vmem %s1745, 1073 [#allocation2]
    %v1932 = vld [vmem:[%s1931] ss:$2 sm:$0xf]
    %s1933 = scalar_lea.vmem %s1745, 1105 [#allocation2]
    %v1934 = vld [vmem:[%s1933] ss:$2 sm:$0xff]
    %s1935 = scalar_lea.vmem %s1745, 1121 [#allocation2]
    %v1936 = vld [vmem:[%s1935] ss:$2 sm:$0xf]
    %v1937 = vmax.f32 %v1554, %v1650
    %v1938 = vmax.f32 %v1556, %v1652
    %v1939 = vmax.f32 %v1558, %v1654
    %v1940 = vmax.f32 %v1560, %v1656
    %v1941 = vmax.f32 %v1562, %v1658
    %v1942 = vmax.f32 %v1564, %v1660
    %v1943 = vmax.f32 %v1566, %v1662
    %v1944 = vmax.f32 %v1568, %v1664
    %v1945 = vmax.f32 %v1570, %v1666
    %v1946 = vmax.f32 %v1572, %v1668
    %v1947 = vmax.f32 %v1574, %v1670
    %v1948 = vmax.f32 %v1576, %v1672
    %v1949 = vmax.f32 %v1578, %v1674
    %v1950 = vmax.f32 %v1580, %v1676
    %v1951 = vmax.f32 %v1582, %v1678
    %v1952 = vmax.f32 %v1584, %v1680
    %v1953 = vmax.f32 %v1586, %v1682
    %v1954 = vmax.f32 %v1588, %v1684
    %v1955 = vmax.f32 %v1590, %v1686
    %v1956 = vmax.f32 %v1592, %v1688
    %v1957 = vmax.f32 %v1594, %v1690
    %v1958 = vmax.f32 %v1596, %v1692
    %v1959 = vmax.f32 %v1598, %v1694
    %v1960 = vmax.f32 %v1600, %v1696
    %v1961 = vmax.f32 %v1602, %v1698
    %v1962 = vmax.f32 %v1604, %v1700
    %v1963 = vmax.f32 %v1606, %v1702
    %v1964 = vmax.f32 %v1608, %v1704
    %v1965 = vmax.f32 %v1610, %v1706
    %v1966 = vmax.f32 %v1612, %v1708
    %v1967 = vmax.f32 %v1614, %v1710
    %v1968 = vmax.f32 %v1616, %v1712
    %v1969 = vmax.f32 %v1618, %v1714
    %v1970 = vmax.f32 %v1620, %v1716
    %v1971 = vmax.f32 %v1622, %v1718
    %v1972 = vmax.f32 %v1624, %v1720
    %v1973 = vmax.f32 %v1626, %v1722
    %v1974 = vmax.f32 %v1628, %v1724
    %v1975 = vmax.f32 %v1630, %v1726
    %v1976 = vmax.f32 %v1632, %v1728
    %v1977 = vmax.f32 %v1634, %v1730
    %v1978 = vmax.f32 %v1636, %v1732
    %v1979 = vmax.f32 %v1638, %v1734
    %v1980 = vmax.f32 %v1640, %v1736
    %v1981 = vmax.f32 %v1642, %v1738
    %v1982 = vmax.f32 %v1644, %v1740
    %v1983 = vmax.f32 %v1646, %v1742
    %v1984 = vmax.f32 %v1648, %v1744
    %v1985 = vmax.f32 %v1746, %v1842
    %v1986 = vmax.f32 %v1748, %v1844
    %v1987 = vmax.f32 %v1750, %v1846
    %v1988 = vmax.f32 %v1752, %v1848
    %v1989 = vmax.f32 %v1754, %v1850
    %v1990 = vmax.f32 %v1756, %v1852
    %v1991 = vmax.f32 %v1758, %v1854
    %v1992 = vmax.f32 %v1760, %v1856
    %v1993 = vmax.f32 %v1762, %v1858
    %v1994 = vmax.f32 %v1764, %v1860
    %v1995 = vmax.f32 %v1766, %v1862
    %v1996 = vmax.f32 %v1768, %v1864
    %v1997 = vmax.f32 %v1770, %v1866
    %v1998 = vmax.f32 %v1772, %v1868
    %v1999 = vmax.f32 %v1774, %v1870
    %v2000 = vmax.f32 %v1776, %v1872
    %v2001 = vmax.f32 %v1778, %v1874
    %v2002 = vmax.f32 %v1780, %v1876
    %v2003 = vmax.f32 %v1782, %v1878
    %v2004 = vmax.f32 %v1784, %v1880
    %v2005 = vmax.f32 %v1786, %v1882
    %v2006 = vmax.f32 %v1788, %v1884
    %v2007 = vmax.f32 %v1790, %v1886
    %v2008 = vmax.f32 %v1792, %v1888
    %v2009 = vmax.f32 %v1794, %v1890
    %v2010 = vmax.f32 %v1796, %v1892
    %v2011 = vmax.f32 %v1798, %v1894
    %v2012 = vmax.f32 %v1800, %v1896
    %v2013 = vmax.f32 %v1802, %v1898
    %v2014 = vmax.f32 %v1804, %v1900
    %v2015 = vmax.f32 %v1806, %v1902
    %v2016 = vmax.f32 %v1808, %v1904
    %v2017 = vmax.f32 %v1810, %v1906
    %v2018 = vmax.f32 %v1812, %v1908
    %v2019 = vmax.f32 %v1814, %v1910
    %v2020 = vmax.f32 %v1816, %v1912
    %v2021 = vmax.f32 %v1818, %v1914
    %v2022 = vmax.f32 %v1820, %v1916
    %v2023 = vmax.f32 %v1822, %v1918
    %v2024 = vmax.f32 %v1824, %v1920
    %v2025 = vmax.f32 %v1826, %v1922
    %v2026 = vmax.f32 %v1828, %v1924
    %v2027 = vmax.f32 %v1830, %v1926
    %v2028 = vmax.f32 %v1832, %v1928
    %v2029 = vmax.f32 %v1834, %v1930
    %v2030 = vmax.f32 %v1836, %v1932
    %v2031 = vmax.f32 %v1838, %v1934
    %v2032 = vmax.f32 %v1840, %v1936
    %v2033 = vmax.f32 %v1937, %v1985
    %v2034 = vmax.f32 %v1938, %v1986
    %v2035 = vmax.f32 %v1939, %v1987
    %v2036 = vmax.f32 %v1940, %v1988
    %v2037 = vmax.f32 %v1941, %v1989
    %v2038 = vmax.f32 %v1942, %v1990
    %v2039 = vmax.f32 %v1943, %v1991
    %v2040 = vmax.f32 %v1944, %v1992
    %v2041 = vmax.f32 %v1945, %v1993
    %v2042 = vmax.f32 %v1946, %v1994
    %v2043 = vmax.f32 %v1947, %v1995
    %v2044 = vmax.f32 %v1948, %v1996
    %v2045 = vmax.f32 %v1949, %v1997
    %v2046 = vmax.f32 %v1950, %v1998
    %v2047 = vmax.f32 %v1951, %v1999
    %v2048 = vmax.f32 %v1952, %v2000
    %v2049 = vmax.f32 %v1953, %v2001
    %v2050 = vmax.f32 %v1954, %v2002
    %v2051 = vmax.f32 %v1955, %v2003
    %v2052 = vmax.f32 %v1956, %v2004
    %v2053 = vmax.f32 %v1957, %v2005
    %v2054 = vmax.f32 %v1958, %v2006
    %v2055 = vmax.f32 %v1959, %v2007
    %v2056 = vmax.f32 %v1960, %v2008
    %v2057 = vmax.f32 %v1961, %v2009
    %v2058 = vmax.f32 %v1962, %v2010
    %v2059 = vmax.f32 %v1963, %v2011
    %v2060 = vmax.f32 %v1964, %v2012
    %v2061 = vmax.f32 %v1965, %v2013
    %v2062 = vmax.f32 %v1966, %v2014
    %v2063 = vmax.f32 %v1967, %v2015
    %v2064 = vmax.f32 %v1968, %v2016
    %v2065 = vmax.f32 %v1969, %v2017
    %v2066 = vmax.f32 %v1970, %v2018
    %v2067 = vmax.f32 %v1971, %v2019
    %v2068 = vmax.f32 %v1972, %v2020
    %v2069 = vmax.f32 %v1973, %v2021
    %v2070 = vmax.f32 %v1974, %v2022
    %v2071 = vmax.f32 %v1975, %v2023
    %v2072 = vmax.f32 %v1976, %v2024
    %v2073 = vmax.f32 %v1977, %v2025
    %v2074 = vmax.f32 %v1978, %v2026
    %v2075 = vmax.f32 %v1979, %v2027
    %v2076 = vmax.f32 %v1980, %v2028
    %v2077 = vmax.f32 %v1981, %v2029
    %v2078 = vmax.f32 %v1982, %v2030
    %v2079 = vmax.f32 %v1983, %v2031
    %v2080 = vmax.f32 %v1984, %v2032
    %v2081 = vmax.f32 %v2033, 0.0
    %v2082 = vmax.f32 %v2034, 0.0
    %v2083 = vmax.f32 %v2035, 0.0
    %v2084 = vmax.f32 %v2036, 0.0
    %v2085 = vmax.f32 %v2037, 0.0
    %v2086 = vmax.f32 %v2038, 0.0
    %v2087 = vmax.f32 %v2039, 0.0
    %v2088 = vmax.f32 %v2040, 0.0
    %v2089 = vmax.f32 %v2041, 0.0
    %v2090 = vmax.f32 %v2042, 0.0
    %v2091 = vmax.f32 %v2043, 0.0
    %v2092 = vmax.f32 %v2044, 0.0
    %v2093 = vmax.f32 %v2045, 0.0
    %v2094 = vmax.f32 %v2046, 0.0
    %v2095 = vmax.f32 %v2047, 0.0
    %v2096 = vmax.f32 %v2048, 0.0
    %v2097 = vmax.f32 %v2049, 0.0
    %v2098 = vmax.f32 %v2050, 0.0
    %v2099 = vmax.f32 %v2051, 0.0
    %v2100 = vmax.f32 %v2052, 0.0
    %v2101 = vmax.f32 %v2053, 0.0
    %v2102 = vmax.f32 %v2054, 0.0
    %v2103 = vmax.f32 %v2055, 0.0
    %v2104 = vmax.f32 %v2056, 0.0
    %v2105 = vmax.f32 %v2057, 0.0
    %v2106 = vmax.f32 %v2058, 0.0
    %v2107 = vmax.f32 %v2059, 0.0
    %v2108 = vmax.f32 %v2060, 0.0
    %v2109 = vmax.f32 %v2061, 0.0
    %v2110 = vmax.f32 %v2062, 0.0
    %v2111 = vmax.f32 %v2063, 0.0
    %v2112 = vmax.f32 %v2064, 0.0
    %v2113 = vmax.f32 %v2065, 0.0
    %v2114 = vmax.f32 %v2066, 0.0
    %v2115 = vmax.f32 %v2067, 0.0
    %v2116 = vmax.f32 %v2068, 0.0
    %v2117 = vmax.f32 %v2069, 0.0
    %v2118 = vmax.f32 %v2070, 0.0
    %v2119 = vmax.f32 %v2071, 0.0
    %v2120 = vmax.f32 %v2072, 0.0
    %v2121 = vmax.f32 %v2073, 0.0
    %v2122 = vmax.f32 %v2074, 0.0
    %v2123 = vmax.f32 %v2075, 0.0
    %v2124 = vmax.f32 %v2076, 0.0
    %v2125 = vmax.f32 %v2077, 0.0
    %v2126 = vmax.f32 %v2078, 0.0
    %v2127 = vmax.f32 %v2079, 0.0
    %v2128 = vmax.f32 %v2080, 0.0
    %2129 = vst [vmem:[#allocation3] sm:$0xff] %v2081
    %2130 = vst [vmem:[#allocation3 + $0x8] sm:$0xf] %v2082
    %2131 = vst [vmem:[#allocation3 + $0x10] sm:$0xff] %v2083
    %2132 = vst [vmem:[#allocation3 + $0x18] sm:$0xf] %v2084
    %2133 = vst [vmem:[#allocation3 + $0x20] sm:$0xff] %v2085
    %2134 = vst [vmem:[#allocation3 + $0x28] sm:$0xf] %v2086
    %2135 = vst [vmem:[#allocation3 + $0x30] sm:$0xff] %v2087
    %2136 = vst [vmem:[#allocation3 + $0x38] sm:$0xf] %v2088
    %2137 = vst [vmem:[#allocation3 + $0x40] sm:$0xff] %v2089
    %2138 = vst [vmem:[#allocation3 + $0x48] sm:$0xf] %v2090
    %2139 = vst [vmem:[#allocation3 + $0x50] sm:$0xff] %v2091
    %2140 = vst [vmem:[#allocation3 + $0x58] sm:$0xf] %v2092
    %2141 = vst [vmem:[#allocation3 + $0x60] sm:$0xff] %v2093
    %2142 = vst [vmem:[#allocation3 + $0x68] sm:$0xf] %v2094
    %2143 = vst [vmem:[#allocation3 + $0x70] sm:$0xff] %v2095
    %2144 = vst [vmem:[#allocation3 + $0x78] sm:$0xf] %v2096
    %2145 = vst [vmem:[#allocation3 + $0x80] sm:$0xff] %v2097
    %2146 = vst [vmem:[#allocation3 + $0x88] sm:$0xf] %v2098
    %2147 = vst [vmem:[#allocation3 + $0x90] sm:$0xff] %v2099
    %2148 = vst [vmem:[#allocation3 + $0x98] sm:$0xf] %v2100
    %2149 = vst [vmem:[#allocation3 + $0xa0] sm:$0xff] %v2101
    %2150 = vst [vmem:[#allocation3 + $0xa8] sm:$0xf] %v2102
    %2151 = vst [vmem:[#allocation3 + $0xb0] sm:$0xff] %v2103
    %2152 = vst [vmem:[#allocation3 + $0xb8] sm:$0xf] %v2104
    %2153 = vst [vmem:[#allocation3 + $0xc0] sm:$0xff] %v2105
    %2154 = vst [vmem:[#allocation3 + $0xc8] sm:$0xf] %v2106
    %2155 = vst [vmem:[#allocation3 + $0xd0] sm:$0xff] %v2107
    %2156 = vst [vmem:[#allocation3 + $0xd8] sm:$0xf] %v2108
    %2157 = vst [vmem:[#allocation3 + $0xe0] sm:$0xff] %v2109
    %2158 = vst [vmem:[#allocation3 + $0xe8] sm:$0xf] %v2110
    %2159 = vst [vmem:[#allocation3 + $0xf0] sm:$0xff] %v2111
    %2160 = vst [vmem:[#allocation3 + $0xf8] sm:$0xf] %v2112
    %2161 = vst [vmem:[#allocation3 + $0x100] sm:$0xff] %v2113
    %2162 = vst [vmem:[#allocation3 + $0x108] sm:$0xf] %v2114
    %2163 = vst [vmem:[#allocation3 + $0x110] sm:$0xff] %v2115
    %2164 = vst [vmem:[#allocation3 + $0x118] sm:$0xf] %v2116
    %2165 = vst [vmem:[#allocation3 + $0x120] sm:$0xff] %v2117
    %2166 = vst [vmem:[#allocation3 + $0x128] sm:$0xf] %v2118
    %2167 = vst [vmem:[#allocation3 + $0x130] sm:$0xff] %v2119
    %2168 = vst [vmem:[#allocation3 + $0x138] sm:$0xf] %v2120
    %2169 = vst [vmem:[#allocation3 + $0x140] sm:$0xff] %v2121
    %2170 = vst [vmem:[#allocation3 + $0x148] sm:$0xf] %v2122
    %2171 = vst [vmem:[#allocation3 + $0x150] sm:$0xff] %v2123
    %2172 = vst [vmem:[#allocation3 + $0x158] sm:$0xf] %v2124
    %2173 = vst [vmem:[#allocation3 + $0x160] sm:$0xff] %v2125
    %2174 = vst [vmem:[#allocation3 + $0x168] sm:$0xf] %v2126
    %2175 = vst [vmem:[#allocation3 + $0x170] sm:$0xff] %v2127
    %2176 = vst [vmem:[#allocation3 + $0x178] sm:$0xf] %v2128
    %v2177 = vld [vmem:[#allocation3] sm:$0xff]
    %v2178 = vld [vmem:[#allocation3 + $0x10] sm:$0xff]
    %v2179 = vld [vmem:[#allocation3 + $0x20] sm:$0xff]
    %v2180 = vld [vmem:[#allocation3 + $0x30] sm:$0xff]
    %v2181 = vld [vmem:[#allocation3 + $0x40] sm:$0xff]
    %v2182 = vld [vmem:[#allocation3 + $0x50] sm:$0xff]
    %v2183 = vld [vmem:[#allocation3 + $0x60] sm:$0xff]
    %v2184 = vld [vmem:[#allocation3 + $0x70] sm:$0xff]
    %v2185 = vld [vmem:[#allocation3 + $0x80] sm:$0xff]
    %v2186 = vld [vmem:[#allocation3 + $0x90] sm:$0xff]
    %v2187 = vld [vmem:[#allocation3 + $0xa0] sm:$0xff]
    %v2188 = vld [vmem:[#allocation3 + $0xb0] sm:$0xff]
    %v2189 = vld [vmem:[#allocation3 + $0xc0] sm:$0xff]
    %v2190 = vld [vmem:[#allocation3 + $0xd0] sm:$0xff]
    %v2191 = vld [vmem:[#allocation3 + $0xe0] sm:$0xff]
    %v2192 = vld [vmem:[#allocation3 + $0xf0] sm:$0xff]
    %v2193 = vld [vmem:[#allocation3 + $0x100] sm:$0xff]
    %v2194 = vld [vmem:[#allocation3 + $0x110] sm:$0xff]
    %v2195 = vld [vmem:[#allocation3 + $0x120] sm:$0xff]
    %v2196 = vld [vmem:[#allocation3 + $0x130] sm:$0xff]
    %v2197 = vld [vmem:[#allocation3 + $0x140] sm:$0xff]
    %v2198 = vld [vmem:[#allocation3 + $0x150] sm:$0xff]
    %v2199 = vld [vmem:[#allocation3 + $0x160] sm:$0xff]
    %v2200 = vld [vmem:[#allocation3 + $0x170] sm:$0xff]
    %v2201 = vld [vmem:[#allocation3 + $0x1] sm:$0xff]
    %v2202 = vld [vmem:[#allocation3 + $0x11] sm:$0xff]
    %v2203 = vld [vmem:[#allocation3 + $0x21] sm:$0xff]
    %v2204 = vld [vmem:[#allocation3 + $0x31] sm:$0xff]
    %v2205 = vld [vmem:[#allocation3 + $0x41] sm:$0xff]
    %v2206 = vld [vmem:[#allocation3 + $0x51] sm:$0xff]
    %v2207 = vld [vmem:[#allocation3 + $0x61] sm:$0xff]
    %v2208 = vld [vmem:[#allocation3 + $0x71] sm:$0xff]
    %v2209 = vld [vmem:[#allocation3 + $0x81] sm:$0xff]
    %v2210 = vld [vmem:[#allocation3 + $0x91] sm:$0xff]
    %v2211 = vld [vmem:[#allocation3 + $0xa1] sm:$0xff]
    %v2212 = vld [vmem:[#allocation3 + $0xb1] sm:$0xff]
    %v2213 = vld [vmem:[#allocation3 + $0xc1] sm:$0xff]
    %v2214 = vld [vmem:[#allocation3 + $0xd1] sm:$0xff]
    %v2215 = vld [vmem:[#allocation3 + $0xe1] sm:$0xff]
    %v2216 = vld [vmem:[#allocation3 + $0xf1] sm:$0xff]
    %v2217 = vld [vmem:[#allocation3 + $0x101] sm:$0xff]
    %v2218 = vld [vmem:[#allocation3 + $0x111] sm:$0xff]
    %v2219 = vld [vmem:[#allocation3 + $0x121] sm:$0xff]
    %v2220 = vld [vmem:[#allocation3 + $0x131] sm:$0xff]
    %v2221 = vld [vmem:[#allocation3 + $0x141] sm:$0xff]
    %v2222 = vld [vmem:[#allocation3 + $0x151] sm:$0xff]
    %v2223 = vld [vmem:[#allocation3 + $0x161] sm:$0xff]
    %v2224 = vld [vmem:[#allocation3 + $0x171] sm:$0xff]
    %2225 = vrot.lane.b32.xlu0 %v2201, 10
    %v2226 = vpop.permute.xlu0 %2225
    %2227 = vrot.lane.b32.xlu0 %v2202, 10
    %v2228 = vpop.permute.xlu0 %2227
    %2229 = vrot.lane.b32.xlu0 %v2203, 10
    %v2230 = vpop.permute.xlu0 %2229
    %2231 = vrot.lane.b32.xlu0 %v2204, 10
    %v2232 = vpop.permute.xlu0 %2231
    %2233 = vrot.lane.b32.xlu0 %v2205, 10
    %v2234 = vpop.permute.xlu0 %2233
    %2235 = vrot.lane.b32.xlu0 %v2206, 10
    %v2236 = vpop.permute.xlu0 %2235
    %2237 = vrot.lane.b32.xlu0 %v2207, 10
    %v2238 = vpop.permute.xlu0 %2237
    %2239 = vrot.lane.b32.xlu0 %v2208, 10
    %v2240 = vpop.permute.xlu0 %2239
    %2241 = vrot.lane.b32.xlu0 %v2209, 10
    %v2242 = vpop.permute.xlu0 %2241
    %2243 = vrot.lane.b32.xlu0 %v2210, 10
    %v2244 = vpop.permute.xlu0 %2243
    %2245 = vrot.lane.b32.xlu0 %v2211, 10
    %v2246 = vpop.permute.xlu0 %2245
    %2247 = vrot.lane.b32.xlu0 %v2212, 10
    %v2248 = vpop.permute.xlu0 %2247
    %2249 = vrot.lane.b32.xlu0 %v2213, 10
    %v2250 = vpop.permute.xlu0 %2249
    %2251 = vrot.lane.b32.xlu0 %v2214, 10
    %v2252 = vpop.permute.xlu0 %2251
    %2253 = vrot.lane.b32.xlu0 %v2215, 10
    %v2254 = vpop.permute.xlu0 %2253
    %2255 = vrot.lane.b32.xlu0 %v2216, 10
    %v2256 = vpop.permute.xlu0 %2255
    %2257 = vrot.lane.b32.xlu0 %v2217, 10
    %v2258 = vpop.permute.xlu0 %2257
    %2259 = vrot.lane.b32.xlu0 %v2218, 10
    %v2260 = vpop.permute.xlu0 %2259
    %2261 = vrot.lane.b32.xlu0 %v2219, 10
    %v2262 = vpop.permute.xlu0 %2261
    %2263 = vrot.lane.b32.xlu0 %v2220, 10
    %v2264 = vpop.permute.xlu0 %2263
    %2265 = vrot.lane.b32.xlu0 %v2221, 10
    %v2266 = vpop.permute.xlu0 %2265
    %2267 = vrot.lane.b32.xlu0 %v2222, 10
    %v2268 = vpop.permute.xlu0 %2267
    %2269 = vrot.lane.b32.xlu0 %v2223, 10
    %v2270 = vpop.permute.xlu0 %2269
    %2271 = vrot.lane.b32.xlu0 %v2224, 10
    %v2272 = vpop.permute.xlu0 %2271
    %v2273 = vadd.f32 %v2177, %v2226
    %v2274 = vadd.f32 %v2178, %v2228
    %v2275 = vadd.f32 %v2179, %v2230
    %v2276 = vadd.f32 %v2180, %v2232
    %v2277 = vadd.f32 %v2181, %v2234
    %v2278 = vadd.f32 %v2182, %v2236
    %v2279 = vadd.f32 %v2183, %v2238
    %v2280 = vadd.f32 %v2184, %v2240
    %v2281 = vadd.f32 %v2185, %v2242
    %v2282 = vadd.f32 %v2186, %v2244
    %v2283 = vadd.f32 %v2187, %v2246
    %v2284 = vadd.f32 %v2188, %v2248
    %v2285 = vadd.f32 %v2189, %v2250
    %v2286 = vadd.f32 %v2190, %v2252
    %v2287 = vadd.f32 %v2191, %v2254
    %v2288 = vadd.f32 %v2192, %v2256
    %v2289 = vadd.f32 %v2193, %v2258
    %v2290 = vadd.f32 %v2194, %v2260
    %v2291 = vadd.f32 %v2195, %v2262
    %v2292 = vadd.f32 %v2196, %v2264
    %v2293 = vadd.f32 %v2197, %v2266
    %v2294 = vadd.f32 %v2198, %v2268
    %v2295 = vadd.f32 %v2199, %v2270
    %v2296 = vadd.f32 %v2200, %v2272
    %v2297 = vld [vmem:[#allocation3 + $0x2] sm:$0xff]
    %v2298 = vld [vmem:[#allocation3 + $0x12] sm:$0xff]
    %v2299 = vld [vmem:[#allocation3 + $0x22] sm:$0xff]
    %v2300 = vld [vmem:[#allocation3 + $0x32] sm:$0xff]
    %v2301 = vld [vmem:[#allocation3 + $0x42] sm:$0xff]
    %v2302 = vld [vmem:[#allocation3 + $0x52] sm:$0xff]
    %v2303 = vld [vmem:[#allocation3 + $0x62] sm:$0xff]
    %v2304 = vld [vmem:[#allocation3 + $0x72] sm:$0xff]
    %v2305 = vld [vmem:[#allocation3 + $0x82] sm:$0xff]
    %v2306 = vld [vmem:[#allocation3 + $0x92] sm:$0xff]
    %v2307 = vld [vmem:[#allocation3 + $0xa2] sm:$0xff]
    %v2308 = vld [vmem:[#allocation3 + $0xb2] sm:$0xff]
    %v2309 = vld [vmem:[#allocation3 + $0xc2] sm:$0xff]
    %v2310 = vld [vmem:[#allocation3 + $0xd2] sm:$0xff]
    %v2311 = vld [vmem:[#allocation3 + $0xe2] sm:$0xff]
    %v2312 = vld [vmem:[#allocation3 + $0xf2] sm:$0xff]
    %v2313 = vld [vmem:[#allocation3 + $0x102] sm:$0xff]
    %v2314 = vld [vmem:[#allocation3 + $0x112] sm:$0xff]
    %v2315 = vld [vmem:[#allocation3 + $0x122] sm:$0xff]
    %v2316 = vld [vmem:[#allocation3 + $0x132] sm:$0xff]
    %v2317 = vld [vmem:[#allocation3 + $0x142] sm:$0xff]
    %v2318 = vld [vmem:[#allocation3 + $0x152] sm:$0xff]
    %v2319 = vld [vmem:[#allocation3 + $0x162] sm:$0xff]
    %v2320 = vld [vmem:[#allocation3 + $0x172] sm:$0xff]
    %2321 = vrot.lane.b32.xlu0 %v2297, 20
    %v2322 = vpop.permute.xlu0 %2321
    %2323 = vrot.lane.b32.xlu0 %v2298, 20
    %v2324 = vpop.permute.xlu0 %2323
    %2325 = vrot.lane.b32.xlu0 %v2299, 20
    %v2326 = vpop.permute.xlu0 %2325
    %2327 = vrot.lane.b32.xlu0 %v2300, 20
    %v2328 = vpop.permute.xlu0 %2327
    %2329 = vrot.lane.b32.xlu0 %v2301, 20
    %v2330 = vpop.permute.xlu0 %2329
    %2331 = vrot.lane.b32.xlu0 %v2302, 20
    %v2332 = vpop.permute.xlu0 %2331
    %2333 = vrot.lane.b32.xlu0 %v2303, 20
    %v2334 = vpop.permute.xlu0 %2333
    %2335 = vrot.lane.b32.xlu0 %v2304, 20
    %v2336 = vpop.permute.xlu0 %2335
    %2337 = vrot.lane.b32.xlu0 %v2305, 20
    %v2338 = vpop.permute.xlu0 %2337
    %2339 = vrot.lane.b32.xlu0 %v2306, 20
    %v2340 = vpop.permute.xlu0 %2339
    %2341 = vrot.lane.b32.xlu0 %v2307, 20
    %v2342 = vpop.permute.xlu0 %2341
    %2343 = vrot.lane.b32.xlu0 %v2308, 20
    %v2344 = vpop.permute.xlu0 %2343
    %2345 = vrot.lane.b32.xlu0 %v2309, 20
    %v2346 = vpop.permute.xlu0 %2345
    %2347 = vrot.lane.b32.xlu0 %v2310, 20
    %v2348 = vpop.permute.xlu0 %2347
    %2349 = vrot.lane.b32.xlu0 %v2311, 20
    %v2350 = vpop.permute.xlu0 %2349
    %2351 = vrot.lane.b32.xlu0 %v2312, 20
    %v2352 = vpop.permute.xlu0 %2351
    %2353 = vrot.lane.b32.xlu0 %v2313, 20
    %v2354 = vpop.permute.xlu0 %2353
    %2355 = vrot.lane.b32.xlu0 %v2314, 20
    %v2356 = vpop.permute.xlu0 %2355
    %2357 = vrot.lane.b32.xlu0 %v2315, 20
    %v2358 = vpop.permute.xlu0 %2357
    %2359 = vrot.lane.b32.xlu0 %v2316, 20
    %v2360 = vpop.permute.xlu0 %2359
    %2361 = vrot.lane.b32.xlu0 %v2317, 20
    %v2362 = vpop.permute.xlu0 %2361
    %2363 = vrot.lane.b32.xlu0 %v2318, 20
    %v2364 = vpop.permute.xlu0 %2363
    %2365 = vrot.lane.b32.xlu0 %v2319, 20
    %v2366 = vpop.permute.xlu0 %2365
    %2367 = vrot.lane.b32.xlu0 %v2320, 20
    %v2368 = vpop.permute.xlu0 %2367
    %v2369 = vadd.f32 %v2273, %v2322
    %v2370 = vadd.f32 %v2274, %v2324
    %v2371 = vadd.f32 %v2275, %v2326
    %v2372 = vadd.f32 %v2276, %v2328
    %v2373 = vadd.f32 %v2277, %v2330
    %v2374 = vadd.f32 %v2278, %v2332
    %v2375 = vadd.f32 %v2279, %v2334
    %v2376 = vadd.f32 %v2280, %v2336
    %v2377 = vadd.f32 %v2281, %v2338
    %v2378 = vadd.f32 %v2282, %v2340
    %v2379 = vadd.f32 %v2283, %v2342
    %v2380 = vadd.f32 %v2284, %v2344
    %v2381 = vadd.f32 %v2285, %v2346
    %v2382 = vadd.f32 %v2286, %v2348
    %v2383 = vadd.f32 %v2287, %v2350
    %v2384 = vadd.f32 %v2288, %v2352
    %v2385 = vadd.f32 %v2289, %v2354
    %v2386 = vadd.f32 %v2290, %v2356
    %v2387 = vadd.f32 %v2291, %v2358
    %v2388 = vadd.f32 %v2292, %v2360
    %v2389 = vadd.f32 %v2293, %v2362
    %v2390 = vadd.f32 %v2294, %v2364
    %v2391 = vadd.f32 %v2295, %v2366
    %v2392 = vadd.f32 %v2296, %v2368
    %v2393 = vld [vmem:[#allocation3 + $0x3] sm:$0xff]
    %v2394 = vld [vmem:[#allocation3 + $0x13] sm:$0xff]
    %v2395 = vld [vmem:[#allocation3 + $0x23] sm:$0xff]
    %v2396 = vld [vmem:[#allocation3 + $0x33] sm:$0xff]
    %v2397 = vld [vmem:[#allocation3 + $0x43] sm:$0xff]
    %v2398 = vld [vmem:[#allocation3 + $0x53] sm:$0xff]
    %v2399 = vld [vmem:[#allocation3 + $0x63] sm:$0xff]
    %v2400 = vld [vmem:[#allocation3 + $0x73] sm:$0xff]
    %v2401 = vld [vmem:[#allocation3 + $0x83] sm:$0xff]
    %v2402 = vld [vmem:[#allocation3 + $0x93] sm:$0xff]
    %v2403 = vld [vmem:[#allocation3 + $0xa3] sm:$0xff]
    %v2404 = vld [vmem:[#allocation3 + $0xb3] sm:$0xff]
    %v2405 = vld [vmem:[#allocation3 + $0xc3] sm:$0xff]
    %v2406 = vld [vmem:[#allocation3 + $0xd3] sm:$0xff]
    %v2407 = vld [vmem:[#allocation3 + $0xe3] sm:$0xff]
    %v2408 = vld [vmem:[#allocation3 + $0xf3] sm:$0xff]
    %v2409 = vld [vmem:[#allocation3 + $0x103] sm:$0xff]
    %v2410 = vld [vmem:[#allocation3 + $0x113] sm:$0xff]
    %v2411 = vld [vmem:[#allocation3 + $0x123] sm:$0xff]
    %v2412 = vld [vmem:[#allocation3 + $0x133] sm:$0xff]
    %v2413 = vld [vmem:[#allocation3 + $0x143] sm:$0xff]
    %v2414 = vld [vmem:[#allocation3 + $0x153] sm:$0xff]
    %v2415 = vld [vmem:[#allocation3 + $0x163] sm:$0xff]
    %v2416 = vld [vmem:[#allocation3 + $0x173] sm:$0xff]
    %2417 = vrot.lane.b32.xlu0 %v2393, 30
    %v2418 = vpop.permute.xlu0 %2417
    %2419 = vrot.lane.b32.xlu0 %v2394, 30
    %v2420 = vpop.permute.xlu0 %2419
    %2421 = vrot.lane.b32.xlu0 %v2395, 30
    %v2422 = vpop.permute.xlu0 %2421
    %2423 = vrot.lane.b32.xlu0 %v2396, 30
    %v2424 = vpop.permute.xlu0 %2423
    %2425 = vrot.lane.b32.xlu0 %v2397, 30
    %v2426 = vpop.permute.xlu0 %2425
    %2427 = vrot.lane.b32.xlu0 %v2398, 30
    %v2428 = vpop.permute.xlu0 %2427
    %2429 = vrot.lane.b32.xlu0 %v2399, 30
    %v2430 = vpop.permute.xlu0 %2429
    %2431 = vrot.lane.b32.xlu0 %v2400, 30
    %v2432 = vpop.permute.xlu0 %2431
    %2433 = vrot.lane.b32.xlu0 %v2401, 30
    %v2434 = vpop.permute.xlu0 %2433
    %2435 = vrot.lane.b32.xlu0 %v2402, 30
    %v2436 = vpop.permute.xlu0 %2435
    %2437 = vrot.lane.b32.xlu0 %v2403, 30
    %v2438 = vpop.permute.xlu0 %2437
    %2439 = vrot.lane.b32.xlu0 %v2404, 30
    %v2440 = vpop.permute.xlu0 %2439
    %2441 = vrot.lane.b32.xlu0 %v2405, 30
    %v2442 = vpop.permute.xlu0 %2441
    %2443 = vrot.lane.b32.xlu0 %v2406, 30
    %v2444 = vpop.permute.xlu0 %2443
    %2445 = vrot.lane.b32.xlu0 %v2407, 30
    %v2446 = vpop.permute.xlu0 %2445
    %2447 = vrot.lane.b32.xlu0 %v2408, 30
    %v2448 = vpop.permute.xlu0 %2447
    %2449 = vrot.lane.b32.xlu0 %v2409, 30
    %v2450 = vpop.permute.xlu0 %2449
    %2451 = vrot.lane.b32.xlu0 %v2410, 30
    %v2452 = vpop.permute.xlu0 %2451
    %2453 = vrot.lane.b32.xlu0 %v2411, 30
    %v2454 = vpop.permute.xlu0 %2453
    %2455 = vrot.lane.b32.xlu0 %v2412, 30
    %v2456 = vpop.permute.xlu0 %2455
    %2457 = vrot.lane.b32.xlu0 %v2413, 30
    %v2458 = vpop.permute.xlu0 %2457
    %2459 = vrot.lane.b32.xlu0 %v2414, 30
    %v2460 = vpop.permute.xlu0 %2459
    %2461 = vrot.lane.b32.xlu0 %v2415, 30
    %v2462 = vpop.permute.xlu0 %2461
    %2463 = vrot.lane.b32.xlu0 %v2416, 30
    %v2464 = vpop.permute.xlu0 %2463
    %v2465 = vadd.f32 %v2369, %v2418
    %v2466 = vadd.f32 %v2370, %v2420
    %v2467 = vadd.f32 %v2371, %v2422
    %v2468 = vadd.f32 %v2372, %v2424
    %v2469 = vadd.f32 %v2373, %v2426
    %v2470 = vadd.f32 %v2374, %v2428
    %v2471 = vadd.f32 %v2375, %v2430
    %v2472 = vadd.f32 %v2376, %v2432
    %v2473 = vadd.f32 %v2377, %v2434
    %v2474 = vadd.f32 %v2378, %v2436
    %v2475 = vadd.f32 %v2379, %v2438
    %v2476 = vadd.f32 %v2380, %v2440
    %v2477 = vadd.f32 %v2381, %v2442
    %v2478 = vadd.f32 %v2382, %v2444
    %v2479 = vadd.f32 %v2383, %v2446
    %v2480 = vadd.f32 %v2384, %v2448
    %v2481 = vadd.f32 %v2385, %v2450
    %v2482 = vadd.f32 %v2386, %v2452
    %v2483 = vadd.f32 %v2387, %v2454
    %v2484 = vadd.f32 %v2388, %v2456
    %v2485 = vadd.f32 %v2389, %v2458
    %v2486 = vadd.f32 %v2390, %v2460
    %v2487 = vadd.f32 %v2391, %v2462
    %v2488 = vadd.f32 %v2392, %v2464
    %v2489 = vld [vmem:[#allocation3 + $0x4] sm:$0xff]
    %v2490 = vld [vmem:[#allocation3 + $0x14] sm:$0xff]
    %v2491 = vld [vmem:[#allocation3 + $0x24] sm:$0xff]
    %v2492 = vld [vmem:[#allocation3 + $0x34] sm:$0xff]
    %v2493 = vld [vmem:[#allocation3 + $0x44] sm:$0xff]
    %v2494 = vld [vmem:[#allocation3 + $0x54] sm:$0xff]
    %v2495 = vld [vmem:[#allocation3 + $0x64] sm:$0xff]
    %v2496 = vld [vmem:[#allocation3 + $0x74] sm:$0xff]
    %v2497 = vld [vmem:[#allocation3 + $0x84] sm:$0xff]
    %v2498 = vld [vmem:[#allocation3 + $0x94] sm:$0xff]
    %v2499 = vld [vmem:[#allocation3 + $0xa4] sm:$0xff]
    %v2500 = vld [vmem:[#allocation3 + $0xb4] sm:$0xff]
    %v2501 = vld [vmem:[#allocation3 + $0xc4] sm:$0xff]
    %v2502 = vld [vmem:[#allocation3 + $0xd4] sm:$0xff]
    %v2503 = vld [vmem:[#allocation3 + $0xe4] sm:$0xff]
    %v2504 = vld [vmem:[#allocation3 + $0xf4] sm:$0xff]
    %v2505 = vld [vmem:[#allocation3 + $0x104] sm:$0xff]
    %v2506 = vld [vmem:[#allocation3 + $0x114] sm:$0xff]
    %v2507 = vld [vmem:[#allocation3 + $0x124] sm:$0xff]
    %v2508 = vld [vmem:[#allocation3 + $0x134] sm:$0xff]
    %v2509 = vld [vmem:[#allocation3 + $0x144] sm:$0xff]
    %v2510 = vld [vmem:[#allocation3 + $0x154] sm:$0xff]
    %v2511 = vld [vmem:[#allocation3 + $0x164] sm:$0xff]
    %v2512 = vld [vmem:[#allocation3 + $0x174] sm:$0xff]
    %2513 = vrot.lane.b32.xlu0 %v2489, 40
    %v2514 = vpop.permute.xlu0 %2513
    %2515 = vrot.lane.b32.xlu0 %v2490, 40
    %v2516 = vpop.permute.xlu0 %2515
    %2517 = vrot.lane.b32.xlu0 %v2491, 40
    %v2518 = vpop.permute.xlu0 %2517
    %2519 = vrot.lane.b32.xlu0 %v2492, 40
    %v2520 = vpop.permute.xlu0 %2519
    %2521 = vrot.lane.b32.xlu0 %v2493, 40
    %v2522 = vpop.permute.xlu0 %2521
    %2523 = vrot.lane.b32.xlu0 %v2494, 40
    %v2524 = vpop.permute.xlu0 %2523
    %2525 = vrot.lane.b32.xlu0 %v2495, 40
    %v2526 = vpop.permute.xlu0 %2525
    %2527 = vrot.lane.b32.xlu0 %v2496, 40
    %v2528 = vpop.permute.xlu0 %2527
    %2529 = vrot.lane.b32.xlu0 %v2497, 40
    %v2530 = vpop.permute.xlu0 %2529
    %2531 = vrot.lane.b32.xlu0 %v2498, 40
    %v2532 = vpop.permute.xlu0 %2531
    %2533 = vrot.lane.b32.xlu0 %v2499, 40
    %v2534 = vpop.permute.xlu0 %2533
    %2535 = vrot.lane.b32.xlu0 %v2500, 40
    %v2536 = vpop.permute.xlu0 %2535
    %2537 = vrot.lane.b32.xlu0 %v2501, 40
    %v2538 = vpop.permute.xlu0 %2537
    %2539 = vrot.lane.b32.xlu0 %v2502, 40
    %v2540 = vpop.permute.xlu0 %2539
    %2541 = vrot.lane.b32.xlu0 %v2503, 40
    %v2542 = vpop.permute.xlu0 %2541
    %2543 = vrot.lane.b32.xlu0 %v2504, 40
    %v2544 = vpop.permute.xlu0 %2543
    %2545 = vrot.lane.b32.xlu0 %v2505, 40
    %v2546 = vpop.permute.xlu0 %2545
    %2547 = vrot.lane.b32.xlu0 %v2506, 40
    %v2548 = vpop.permute.xlu0 %2547
    %2549 = vrot.lane.b32.xlu0 %v2507, 40
    %v2550 = vpop.permute.xlu0 %2549
    %2551 = vrot.lane.b32.xlu0 %v2508, 40
    %v2552 = vpop.permute.xlu0 %2551
    %2553 = vrot.lane.b32.xlu0 %v2509, 40
    %v2554 = vpop.permute.xlu0 %2553
    %2555 = vrot.lane.b32.xlu0 %v2510, 40
    %v2556 = vpop.permute.xlu0 %2555
    %2557 = vrot.lane.b32.xlu0 %v2511, 40
    %v2558 = vpop.permute.xlu0 %2557
    %2559 = vrot.lane.b32.xlu0 %v2512, 40
    %v2560 = vpop.permute.xlu0 %2559
    %v2561 = vadd.f32 %v2465, %v2514
    %v2562 = vadd.f32 %v2466, %v2516
    %v2563 = vadd.f32 %v2467, %v2518
    %v2564 = vadd.f32 %v2468, %v2520
    %v2565 = vadd.f32 %v2469, %v2522
    %v2566 = vadd.f32 %v2470, %v2524
    %v2567 = vadd.f32 %v2471, %v2526
    %v2568 = vadd.f32 %v2472, %v2528
    %v2569 = vadd.f32 %v2473, %v2530
    %v2570 = vadd.f32 %v2474, %v2532
    %v2571 = vadd.f32 %v2475, %v2534
    %v2572 = vadd.f32 %v2476, %v2536
    %v2573 = vadd.f32 %v2477, %v2538
    %v2574 = vadd.f32 %v2478, %v2540
    %v2575 = vadd.f32 %v2479, %v2542
    %v2576 = vadd.f32 %v2480, %v2544
    %v2577 = vadd.f32 %v2481, %v2546
    %v2578 = vadd.f32 %v2482, %v2548
    %v2579 = vadd.f32 %v2483, %v2550
    %v2580 = vadd.f32 %v2484, %v2552
    %v2581 = vadd.f32 %v2485, %v2554
    %v2582 = vadd.f32 %v2486, %v2556
    %v2583 = vadd.f32 %v2487, %v2558
    %v2584 = vadd.f32 %v2488, %v2560
    %2585 = vst [vmem:[#allocation4] sm:$0xff] %v2561
    %2586 = vst [vmem:[#allocation4 + $0x8] sm:$0xff] %v2562
    %2587 = vst [vmem:[#allocation4 + $0x10] sm:$0xff] %v2563
    %2588 = vst [vmem:[#allocation4 + $0x18] sm:$0xff] %v2564
    %2589 = vst [vmem:[#allocation4 + $0x20] sm:$0xff] %v2565
    %2590 = vst [vmem:[#allocation4 + $0x28] sm:$0xff] %v2566
    %2591 = vst [vmem:[#allocation4 + $0x30] sm:$0xff] %v2567
    %2592 = vst [vmem:[#allocation4 + $0x38] sm:$0xff] %v2568
    %2593 = vst [vmem:[#allocation4 + $0x40] sm:$0xff] %v2569
    %2594 = vst [vmem:[#allocation4 + $0x48] sm:$0xff] %v2570
    %2595 = vst [vmem:[#allocation4 + $0x50] sm:$0xff] %v2571
    %2596 = vst [vmem:[#allocation4 + $0x58] sm:$0xff] %v2572
    %2597 = vst [vmem:[#allocation4 + $0x60] sm:$0xff] %v2573
    %2598 = vst [vmem:[#allocation4 + $0x68] sm:$0xff] %v2574
    %2599 = vst [vmem:[#allocation4 + $0x70] sm:$0xff] %v2575
    %2600 = vst [vmem:[#allocation4 + $0x78] sm:$0xff] %v2576
    %2601 = vst [vmem:[#allocation4 + $0x80] sm:$0xff] %v2577
    %2602 = vst [vmem:[#allocation4 + $0x88] sm:$0xff] %v2578
    %2603 = vst [vmem:[#allocation4 + $0x90] sm:$0xff] %v2579
    %2604 = vst [vmem:[#allocation4 + $0x98] sm:$0xff] %v2580
    %2605 = vst [vmem:[#allocation4 + $0xa0] sm:$0xff] %v2581
    %2606 = vst [vmem:[#allocation4 + $0xa8] sm:$0xff] %v2582
    %2607 = vst [vmem:[#allocation4 + $0xb0] sm:$0xff] %v2583
    %2608 = vst [vmem:[#allocation4 + $0xb8] sm:$0xff] %v2584
    %v2609 = vld [vmem:[#allocation4] sm:$0xff]
    %v2610 = vld [vmem:[#allocation4 + $0x8] sm:$0xff]
    %v2611 = vld [vmem:[#allocation4 + $0x10] sm:$0xff]
    %v2612 = vld [vmem:[#allocation4 + $0x18] sm:$0xff]
    %v2613 = vld [vmem:[#allocation4 + $0x20] sm:$0xff]
    %v2614 = vld [vmem:[#allocation4 + $0x28] sm:$0xff]
    %v2615 = vld [vmem:[#allocation4 + $0x30] sm:$0xff]
    %v2616 = vld [vmem:[#allocation4 + $0x38] sm:$0xff]
    %v2617 = vld [vmem:[#allocation4 + $0x60] sm:$0xff]
    %v2618 = vld [vmem:[#allocation4 + $0x68] sm:$0xff]
    %v2619 = vld [vmem:[#allocation4 + $0x70] sm:$0xff]
    %v2620 = vld [vmem:[#allocation4 + $0x78] sm:$0xff]
    %v2621 = vld [vmem:[#allocation4 + $0x80] sm:$0xff]
    %v2622 = vld [vmem:[#allocation4 + $0x88] sm:$0xff]
    %v2623 = vld [vmem:[#allocation4 + $0x90] sm:$0xff]
    %v2624 = vld [vmem:[#allocation4 + $0x98] sm:$0xff]
    %v2625 = vld [vmem:[%s3] sm:$0xff]
    %v2626 = vld [vmem:[%s3 + $0x8] sm:$0xff]
    %v2627 = vld [vmem:[%s3 + $0x10] sm:$0xff]
    %v2628 = vld [vmem:[%s3 + $0x18] sm:$0xff]
    %v2629 = vld [vmem:[%s3 + $0x20] sm:$0xff]
    %v2630 = vld [vmem:[%s3 + $0x28] sm:$0xff]
    %v2631 = vld [vmem:[%s3 + $0x30] sm:$0x3]
    %s2632 = scalar_lea.vmem [#allocation4], 8
    %v2633 = vld [vmem:[%s2632] sm:$0xff]
    %v2634 = vld [vmem:[%s2632 + $0x8] sm:$0xff]
    %v2635 = vld [vmem:[%s2632 + $0x10] sm:$0xff]
    %v2636 = vld [vmem:[%s2632 + $0x18] sm:$0xff]
    %v2637 = vld [vmem:[%s2632 + $0x20] sm:$0xff]
    %v2638 = vld [vmem:[%s2632 + $0x28] sm:$0xff]
    %v2639 = vld [vmem:[%s2632 + $0x30] sm:$0xff]
    %v2640 = vld [vmem:[%s2632 + $0x38] sm:$0xff]
    %v2641 = vld [vmem:[%s2632 + $0x60] sm:$0xff]
    %v2642 = vld [vmem:[%s2632 + $0x68] sm:$0xff]
    %v2643 = vld [vmem:[%s2632 + $0x70] sm:$0xff]
    %v2644 = vld [vmem:[%s2632 + $0x78] sm:$0xff]
    %v2645 = vld [vmem:[%s2632 + $0x80] sm:$0xff]
    %v2646 = vld [vmem:[%s2632 + $0x88] sm:$0xff]
    %v2647 = vld [vmem:[%s2632 + $0x90] sm:$0xff]
    %v2648 = vld [vmem:[%s2632 + $0x98] sm:$0xff]
    %s2649 = scalar_lea.vmem %s3, 56
    %v2650 = vld [vmem:[%s2649] sm:$0xff]
    %v2651 = vld [vmem:[%s2649 + $0x8] sm:$0xff]
    %v2652 = vld [vmem:[%s2649 + $0x10] sm:$0xff]
    %v2653 = vld [vmem:[%s2649 + $0x18] sm:$0xff]
    %v2654 = vld [vmem:[%s2649 + $0x20] sm:$0xff]
    %v2655 = vld [vmem:[%s2649 + $0x28] sm:$0xff]
    %v2656 = vld [vmem:[%s2649 + $0x30] sm:$0x3]
    %vm2657 = vcmask 408576
    %v2659 = vsel %vm2657, %v2633, 0
    %v2662 = vsel %vm2657, %v2634, 0
    %v2665 = vsel %vm2657, %v2635, 0
    %v2668 = vsel %vm2657, %v2636, 0
    %v2671 = vsel %vm2657, %v2637, 0
    %v2674 = vsel %vm2657, %v2638, 0
    %v2677 = vsel %vm2657, %v2639, 0
    %v2680 = vsel %vm2657, %v2640, 0
    %v2683 = vsel %vm2657, %v2641, 0
    %v2686 = vsel %vm2657, %v2642, 0
    %v2689 = vsel %vm2657, %v2643, 0
    %v2692 = vsel %vm2657, %v2644, 0
    %v2695 = vsel %vm2657, %v2645, 0
    %v2698 = vsel %vm2657, %v2646, 0
    %v2701 = vsel %vm2657, %v2647, 0
    %v2704 = vsel %vm2657, %v2648, 0
    %vm2706 = vcmask 1041408
    %v2708 = vsel %vm2706, %v2656, 0
    %2710 = vmatprep.subr.mxu0 0.0
    %2711 = vmatpush1.msra.mxu0 %v2650
    %2712 = vmatprep.subr.mxu0 0.0
    %2713 = vmatpush1.msra.mxu0 %v2651
    %2714 = vmatprep.subr.mxu0 0.0
    %2715 = vmatpush1.msra.mxu0 %v2652
    %2716 = vmatprep.subr.mxu0 0.0
    %2717 = vmatpush1.msra.mxu0 %v2653
    %2718 = vmatprep.subr.mxu0 0.0
    %2719 = vmatpush1.msra.mxu0 %v2654
    %2720 = vmatprep.subr.mxu0 0.0
    %2721 = vmatpush1.msra.mxu0 %v2655
    %2722 = vmatprep.subr.mxu0 0.0
    %2723 = vmatpush1.msra.mxu0 %v2708
    %2724 = vmatprep.subr.mxu0 0.0
    %2725 = vmatpush1.msra.mxu0 0.0
    %2726 = vmatprep.subr.mxu0 0.0
    %2727 = vmatpush1.msra.mxu0 0.0
    %2728 = vmatprep.subr.mxu0 0.0
    %2729 = vmatpush1.msra.mxu0 0.0
    %2730 = vmatprep.subr.mxu0 0.0
    %2731 = vmatpush1.msra.mxu0 0.0
    %2732 = vmatprep.subr.mxu0 0.0
    %2733 = vmatpush1.msra.mxu0 0.0
    %2734 = vmatprep.subr.mxu0 0.0
    %2735 = vmatpush1.msra.mxu0 0.0
    %2736 = vmatprep.subr.mxu0 0.0
    %2737 = vmatpush1.msra.mxu0 0.0
    %2738 = vmatprep.subr.mxu0 0.0
    %2739 = vmatpush1.msra.mxu0 0.0
    %2740 = vmatprep.subr.mxu0 0.0
    %2741 = vmatpush1.msra.mxu0 0.0
    %2742 = vmatprep.subr.mxu0 0.0
    %2743 = vmatpush1.msra.mxu0 0.0
    %2744 = vmatprep.subr.mxu0 0.0
    %2745 = vmatpush1.msra.mxu0 0.0
    %2746 = vmatprep.subr.mxu0 0.0
    %2747 = vmatpush1.msra.mxu0 0.0
    %2748 = vmatprep.subr.mxu0 0.0
    %2749 = vmatpush1.msra.mxu0 0.0
    %2750 = vmatprep.subr.mxu0 0.0
    %2751 = vmatpush1.msra.mxu0 0.0
    %2752 = vmatprep.subr.mxu0 0.0
    %2753 = vmatpush1.msra.mxu0 0.0
    %2754 = vmatprep.subr.mxu0 0.0
    %2755 = vmatpush1.msra.mxu0 0.0
    %2756 = vmatprep.subr.mxu0 0.0
    %2757 = vmatpush1.msra.mxu0 0.0
    %2758 = vmatprep.subr.mxu0 0.0
    %2759 = vmatpush1.msra.mxu0 0.0
    %2760 = vmatprep.subr.mxu0 0.0
    %2761 = vmatpush1.msra.mxu0 0.0
    %2762 = vmatprep.subr.mxu0 0.0
    %2763 = vmatpush1.msra.mxu0 0.0
    %2764 = vmatprep.subr.mxu0 0.0
    %2765 = vmatpush1.msra.mxu0 0.0
    %2766 = vmatprep.subr.mxu0 0.0
    %2767 = vmatpush1.msra.mxu0 0.0
    %2768 = vmatprep.subr.mxu0 0.0
    %2769 = vmatpush1.msra.mxu0 0.0
    %2770 = vmatprep.subr.mxu0 0.0
    %2771 = vmatpush1.msra.mxu0 0.0
    %2772 = vmatprep.subr.mxu0 0.0
    %2773 = vmatpush1.msra.mxu0 0.0
    %2774 = vmatprep.mubr.f32.mxu0 0.0
    %2775 = vmatmul.mubr.f32.gmra.mrb[0].mxu0 %v2659
    %v2776 = vpop.f32.mrb[0].mxu0
    %v2777 = vadd.f32 0.0, %v2776
    %v2778 = vpop.f32.mrb[0].mxu0
    %2779 = vmatprep.mubr.f32.mxu0 0.0
    %2780 = vmatmul.mubr.f32.gmra.mrb[0].mxu0 %v2662
    %v2781 = vpop.f32.mrb[0].mxu0
    %v2782 = vadd.f32 0.0, %v2781
    %v2783 = vpop.f32.mrb[0].mxu0
    %2784 = vmatprep.mubr.f32.mxu0 0.0
    %2785 = vmatmul.mubr.f32.gmra.mrb[0].mxu0 %v2665
    %v2786 = vpop.f32.mrb[0].mxu0
    %v2787 = vadd.f32 0.0, %v2786
    %v2788 = vpop.f32.mrb[0].mxu0
    %2789 = vmatprep.mubr.f32.mxu0 0.0
    %2790 = vmatmul.mubr.f32.gmra.mrb[0].mxu0 %v2668
    %v2791 = vpop.f32.mrb[0].mxu0
    %v2792 = vadd.f32 0.0, %v2791
    %v2793 = vpop.f32.mrb[0].mxu0
    %2794 = vmatprep.mubr.f32.mxu0 0.0
    %2795 = vmatmul.mubr.f32.gmra.mrb[0].mxu0 %v2671
    %v2796 = vpop.f32.mrb[0].mxu0
    %v2797 = vadd.f32 0.0, %v2796
    %v2798 = vpop.f32.mrb[0].mxu0
    %2799 = vmatprep.mubr.f32.mxu0 0.0
    %2800 = vmatmul.mubr.f32.gmra.mrb[0].mxu0 %v2674
    %v2801 = vpop.f32.mrb[0].mxu0
    %v2802 = vadd.f32 0.0, %v2801
    %v2803 = vpop.f32.mrb[0].mxu0
    %2804 = vmatprep.mubr.f32.mxu0 0.0
    %2805 = vmatmul.mubr.f32.gmra.mrb[0].mxu0 %v2677
    %v2806 = vpop.f32.mrb[0].mxu0
    %v2807 = vadd.f32 0.0, %v2806
    %v2808 = vpop.f32.mrb[0].mxu0
    %2809 = vmatprep.mubr.f32.mxu0 0.0
    %2810 = vmatmul.mubr.f32.gmra.mrb[0].mxu0 %v2680
    %v2811 = vpop.f32.mrb[0].mxu0
    %v2812 = vadd.f32 0.0, %v2811
    %v2813 = vpop.f32.mrb[0].mxu0
    %2814 = vmatprep.mubr.f32.mxu0 0.0
    %2815 = vmatmul.mubr.f32.gmra.mrb[0].mxu0 %v2683
    %v2816 = vpop.f32.mrb[0].mxu0
    %v2817 = vadd.f32 0.0, %v2816
    %v2818 = vpop.f32.mrb[0].mxu0
    %2819 = vmatprep.mubr.f32.mxu0 0.0
    %2820 = vmatmul.mubr.f32.gmra.mrb[0].mxu0 %v2686
    %v2821 = vpop.f32.mrb[0].mxu0
    %v2822 = vadd.f32 0.0, %v2821
    %v2823 = vpop.f32.mrb[0].mxu0
    %2824 = vmatprep.mubr.f32.mxu0 0.0
    %2825 = vmatmul.mubr.f32.gmra.mrb[0].mxu0 %v2689
    %v2826 = vpop.f32.mrb[0].mxu0
    %v2827 = vadd.f32 0.0, %v2826
    %v2828 = vpop.f32.mrb[0].mxu0
    %2829 = vmatprep.mubr.f32.mxu0 0.0
    %2830 = vmatmul.mubr.f32.gmra.mrb[0].mxu0 %v2692
    %v2831 = vpop.f32.mrb[0].mxu0
    %v2832 = vadd.f32 0.0, %v2831
    %v2833 = vpop.f32.mrb[0].mxu0
    %2834 = vmatprep.mubr.f32.mxu0 0.0
    %2835 = vmatmul.mubr.f32.gmra.mrb[0].mxu0 %v2695
    %v2836 = vpop.f32.mrb[0].mxu0
    %v2837 = vadd.f32 0.0, %v2836
    %v2838 = vpop.f32.mrb[0].mxu0
    %2839 = vmatprep.mubr.f32.mxu0 0.0
    %2840 = vmatmul.mubr.f32.gmra.mrb[0].mxu0 %v2698
    %v2841 = vpop.f32.mrb[0].mxu0
    %v2842 = vadd.f32 0.0, %v2841
    %v2843 = vpop.f32.mrb[0].mxu0
    %2844 = vmatprep.mubr.f32.mxu0 0.0
    %2845 = vmatmul.mubr.f32.gmra.mrb[0].mxu0 %v2701
    %v2846 = vpop.f32.mrb[0].mxu0
    %v2847 = vadd.f32 0.0, %v2846
    %v2848 = vpop.f32.mrb[0].mxu0
    %2849 = vmatprep.mubr.f32.mxu0 0.0
    %2850 = vmatmul.mubr.f32.gmra.mrb[0].mxu0 %v2704
    %v2851 = vpop.f32.mrb[0].mxu0
    %v2852 = vadd.f32 0.0, %v2851
    %v2853 = vpop.f32.mrb[0].mxu0
    %2854 = vdwg.mxu0
    %v2856 = vsel %vm2657, %v2609, 0
    %v2859 = vsel %vm2657, %v2610, 0
    %v2862 = vsel %vm2657, %v2611, 0
    %v2865 = vsel %vm2657, %v2612, 0
    %v2868 = vsel %vm2657, %v2613, 0
    %v2871 = vsel %vm2657, %v2614, 0
    %v2874 = vsel %vm2657, %v2615, 0
    %v2877 = vsel %vm2657, %v2616, 0
    %v2880 = vsel %vm2657, %v2617, 0
    %v2883 = vsel %vm2657, %v2618, 0
    %v2886 = vsel %vm2657, %v2619, 0
    %v2889 = vsel %vm2657, %v2620, 0
    %v2892 = vsel %vm2657, %v2621, 0
    %v2895 = vsel %vm2657, %v2622, 0
    %v2898 = vsel %vm2657, %v2623, 0
    %v2901 = vsel %vm2657, %v2624, 0
    %v2904 = vsel %vm2706, %v2631, 0
    %2906 = vmatprep.subr.mxu0 0.0
    %2907 = vmatpush1.msra.mxu0 %v2625
    %2908 = vmatprep.subr.mxu0 0.0
    %2909 = vmatpush1.msra.mxu0 %v2626
    %2910 = vmatprep.subr.mxu0 0.0
    %2911 = vmatpush1.msra.mxu0 %v2627
    %2912 = vmatprep.subr.mxu0 0.0
    %2913 = vmatpush1.msra.mxu0 %v2628
    %2914 = vmatprep.subr.mxu0 0.0
    %2915 = vmatpush1.msra.mxu0 %v2629
    %2916 = vmatprep.subr.mxu0 0.0
    %2917 = vmatpush1.msra.mxu0 %v2630
    %2918 = vmatprep.subr.mxu0 0.0
    %2919 = vmatpush1.msra.mxu0 %v2904
    %2920 = vmatprep.subr.mxu0 0.0
    %2921 = vmatpush1.msra.mxu0 0.0
    %2922 = vmatprep.subr.mxu0 0.0
    %2923 = vmatpush1.msra.mxu0 0.0
    %2924 = vmatprep.subr.mxu0 0.0
    %2925 = vmatpush1.msra.mxu0 0.0
    %2926 = vmatprep.subr.mxu0 0.0
    %2927 = vmatpush1.msra.mxu0 0.0
    %2928 = vmatprep.subr.mxu0 0.0
    %2929 = vmatpush1.msra.mxu0 0.0
    %2930 = vmatprep.subr.mxu0 0.0
    %2931 = vmatpush1.msra.mxu0 0.0
    %2932 = vmatprep.subr.mxu0 0.0
    %2933 = vmatpush1.msra.mxu0 0.0
    %2934 = vmatprep.subr.mxu0 0.0
    %2935 = vmatpush1.msra.mxu0 0.0
    %2936 = vmatprep.subr.mxu0 0.0
    %2937 = vmatpush1.msra.mxu0 0.0
    %2938 = vmatprep.subr.mxu0 0.0
    %2939 = vmatpush1.msra.mxu0 0.0
    %2940 = vmatprep.subr.mxu0 0.0
    %2941 = vmatpush1.msra.mxu0 0.0
    %2942 = vmatprep.subr.mxu0 0.0
    %2943 = vmatpush1.msra.mxu0 0.0
    %2944 = vmatprep.subr.mxu0 0.0
    %2945 = vmatpush1.msra.mxu0 0.0
    %2946 = vmatprep.subr.mxu0 0.0
    %2947 = vmatpush1.msra.mxu0 0.0
    %2948 = vmatprep.subr.mxu0 0.0
    %2949 = vmatpush1.msra.mxu0 0.0
    %2950 = vmatprep.subr.mxu0 0.0
    %2951 = vmatpush1.msra.mxu0 0.0
    %2952 = vmatprep.subr.mxu0 0.0
    %2953 = vmatpush1.msra.mxu0 0.0
    %2954 = vmatprep.subr.mxu0 0.0
    %2955 = vmatpush1.msra.mxu0 0.0
    %2956 = vmatprep.subr.mxu0 0.0
    %2957 = vmatpush1.msra.mxu0 0.0
    %2958 = vmatprep.subr.mxu0 0.0
    %2959 = vmatpush1.msra.mxu0 0.0
    %2960 = vmatprep.subr.mxu0 0.0
    %2961 = vmatpush1.msra.mxu0 0.0
    %2962 = vmatprep.subr.mxu0 0.0
    %2963 = vmatpush1.msra.mxu0 0.0
    %2964 = vmatprep.subr.mxu0 0.0
    %2965 = vmatpush1.msra.mxu0 0.0
    %2966 = vmatprep.subr.mxu0 0.0
    %2967 = vmatpush1.msra.mxu0 0.0
    %2968 = vmatprep.subr.mxu0 0.0
    %2969 = vmatpush1.msra.mxu0 0.0
    %2970 = vmatprep.mubr.f32.mxu0 0.0
    %2971 = vmatmul.mubr.f32.gmra.mrb[0].mxu0 %v2856
    %v2972 = vpop.f32.mrb[0].mxu0
    %v2973 = vadd.f32 %v2777, %v2972
    %v2974 = vpop.f32.mrb[0].mxu0
    %2975 = vmatprep.mubr.f32.mxu0 0.0
    %2976 = vmatmul.mubr.f32.gmra.mrb[0].mxu0 %v2859
    %v2977 = vpop.f32.mrb[0].mxu0
    %v2978 = vadd.f32 %v2782, %v2977
    %v2979 = vpop.f32.mrb[0].mxu0
    %2980 = vmatprep.mubr.f32.mxu0 0.0
    %2981 = vmatmul.mubr.f32.gmra.mrb[0].mxu0 %v2862
    %v2982 = vpop.f32.mrb[0].mxu0
    %v2983 = vadd.f32 %v2787, %v2982
    %v2984 = vpop.f32.mrb[0].mxu0
    %2985 = vmatprep.mubr.f32.mxu0 0.0
    %2986 = vmatmul.mubr.f32.gmra.mrb[0].mxu0 %v2865
    %v2987 = vpop.f32.mrb[0].mxu0
    %v2988 = vadd.f32 %v2792, %v2987
    %v2989 = vpop.f32.mrb[0].mxu0
    %2990 = vmatprep.mubr.f32.mxu0 0.0
    %2991 = vmatmul.mubr.f32.gmra.mrb[0].mxu0 %v2868
    %v2992 = vpop.f32.mrb[0].mxu0
    %v2993 = vadd.f32 %v2797, %v2992
    %v2994 = vpop.f32.mrb[0].mxu0
    %2995 = vmatprep.mubr.f32.mxu0 0.0
    %2996 = vmatmul.mubr.f32.gmra.mrb[0].mxu0 %v2871
    %v2997 = vpop.f32.mrb[0].mxu0
    %v2998 = vadd.f32 %v2802, %v2997
    %v2999 = vpop.f32.mrb[0].mxu0
    %3000 = vmatprep.mubr.f32.mxu0 0.0
    %3001 = vmatmul.mubr.f32.gmra.mrb[0].mxu0 %v2874
    %v3002 = vpop.f32.mrb[0].mxu0
    %v3003 = vadd.f32 %v2807, %v3002
    %v3004 = vpop.f32.mrb[0].mxu0
    %3005 = vmatprep.mubr.f32.mxu0 0.0
    %3006 = vmatmul.mubr.f32.gmra.mrb[0].mxu0 %v2877
    %v3007 = vpop.f32.mrb[0].mxu0
    %v3008 = vadd.f32 %v2812, %v3007
    %v3009 = vpop.f32.mrb[0].mxu0
    %3010 = vmatprep.mubr.f32.mxu0 0.0
    %3011 = vmatmul.mubr.f32.gmra.mrb[0].mxu0 %v2880
    %v3012 = vpop.f32.mrb[0].mxu0
    %v3013 = vadd.f32 %v2817, %v3012
    %v3014 = vpop.f32.mrb[0].mxu0
    %3015 = vmatprep.mubr.f32.mxu0 0.0
    %3016 = vmatmul.mubr.f32.gmra.mrb[0].mxu0 %v2883
    %v3017 = vpop.f32.mrb[0].mxu0
    %v3018 = vadd.f32 %v2822, %v3017
    %v3019 = vpop.f32.mrb[0].mxu0
    %3020 = vmatprep.mubr.f32.mxu0 0.0
    %3021 = vmatmul.mubr.f32.gmra.mrb[0].mxu0 %v2886
    %v3022 = vpop.f32.mrb[0].mxu0
    %v3023 = vadd.f32 %v2827, %v3022
    %v3024 = vpop.f32.mrb[0].mxu0
    %3025 = vmatprep.mubr.f32.mxu0 0.0
    %3026 = vmatmul.mubr.f32.gmra.mrb[0].mxu0 %v2889
    %v3027 = vpop.f32.mrb[0].mxu0
    %v3028 = vadd.f32 %v2832, %v3027
    %v3029 = vpop.f32.mrb[0].mxu0
    %3030 = vmatprep.mubr.f32.mxu0 0.0
    %3031 = vmatmul.mubr.f32.gmra.mrb[0].mxu0 %v2892
    %v3032 = vpop.f32.mrb[0].mxu0
    %v3033 = vadd.f32 %v2837, %v3032
    %v3034 = vpop.f32.mrb[0].mxu0
    %3035 = vmatprep.mubr.f32.mxu0 0.0
    %3036 = vmatmul.mubr.f32.gmra.mrb[0].mxu0 %v2895
    %v3037 = vpop.f32.mrb[0].mxu0
    %v3038 = vadd.f32 %v2842, %v3037
    %v3039 = vpop.f32.mrb[0].mxu0
    %3040 = vmatprep.mubr.f32.mxu0 0.0
    %3041 = vmatmul.mubr.f32.gmra.mrb[0].mxu0 %v2898
    %v3042 = vpop.f32.mrb[0].mxu0
    %v3043 = vadd.f32 %v2847, %v3042
    %v3044 = vpop.f32.mrb[0].mxu0
    %3045 = vmatprep.mubr.f32.mxu0 0.0
    %3046 = vmatmul.mubr.f32.gmra.mrb[0].mxu0 %v2901
    %v3047 = vpop.f32.mrb[0].mxu0
    %v3048 = vadd.f32 %v2852, %v3047
    %v3049 = vpop.f32.mrb[0].mxu0
    %3050 = vdwg.mxu0
    %s3051 = scalar_lea.vmem [#allocation4], 16
    %v3052 = vld [vmem:[%s3051] sm:$0xff]
    %v3053 = vld [vmem:[%s3051 + $0x8] sm:$0xff]
    %v3054 = vld [vmem:[%s3051 + $0x10] sm:$0xff]
    %v3055 = vld [vmem:[%s3051 + $0x18] sm:$0xff]
    %v3056 = vld [vmem:[%s3051 + $0x20] sm:$0xff]
    %v3057 = vld [vmem:[%s3051 + $0x28] sm:$0xff]
    %v3058 = vld [vmem:[%s3051 + $0x30] sm:$0xff]
    %v3059 = vld [vmem:[%s3051 + $0x38] sm:$0xff]
    %v3060 = vld [vmem:[%s3051 + $0x60] sm:$0xff]
    %v3061 = vld [vmem:[%s3051 + $0x68] sm:$0xff]
    %v3062 = vld [vmem:[%s3051 + $0x70] sm:$0xff]
    %v3063 = vld [vmem:[%s3051 + $0x78] sm:$0xff]
    %v3064 = vld [vmem:[%s3051 + $0x80] sm:$0xff]
    %v3065 = vld [vmem:[%s3051 + $0x88] sm:$0xff]
    %v3066 = vld [vmem:[%s3051 + $0x90] sm:$0xff]
    %v3067 = vld [vmem:[%s3051 + $0x98] sm:$0xff]
    %s3068 = scalar_lea.vmem %s3, 112
    %v3069 = vld [vmem:[%s3068] sm:$0xff]
    %v3070 = vld [vmem:[%s3068 + $0x8] sm:$0xff]
    %v3071 = vld [vmem:[%s3068 + $0x10] sm:$0xff]
    %v3072 = vld [vmem:[%s3068 + $0x18] sm:$0xff]
    %v3073 = vld [vmem:[%s3068 + $0x20] sm:$0xff]
    %v3074 = vld [vmem:[%s3068 + $0x28] sm:$0xff]
    %v3075 = vld [vmem:[%s3068 + $0x30] sm:$0x3]
    %v3077 = vsel %vm2657, %v3052, 0
    %v3080 = vsel %vm2657, %v3053, 0
    %v3083 = vsel %vm2657, %v3054, 0
    %v3086 = vsel %vm2657, %v3055, 0
    %v3089 = vsel %vm2657, %v3056, 0
    %v3092 = vsel %vm2657, %v3057, 0
    %v3095 = vsel %vm2657, %v3058, 0
    %v3098 = vsel %vm2657, %v3059, 0
    %v3101 = vsel %vm2657, %v3060, 0
    %v3104 = vsel %vm2657, %v3061, 0
    %v3107 = vsel %vm2657, %v3062, 0
    %v3110 = vsel %vm2657, %v3063, 0
    %v3113 = vsel %vm2657, %v3064, 0
    %v3116 = vsel %vm2657, %v3065, 0
    %v3119 = vsel %vm2657, %v3066, 0
    %v3122 = vsel %vm2657, %v3067, 0
    %v3125 = vsel %vm2706, %v3075, 0
    %3127 = vmatprep.subr.mxu0 0.0
    %3128 = vmatpush1.msra.mxu0 %v3069
    %3129 = vmatprep.subr.mxu0 0.0
    %3130 = vmatpush1.msra.mxu0 %v3070
    %3131 = vmatprep.subr.mxu0 0.0
    %3132 = vmatpush1.msra.mxu0 %v3071
    %3133 = vmatprep.subr.mxu0 0.0
    %3134 = vmatpush1.msra.mxu0 %v3072
    %3135 = vmatprep.subr.mxu0 0.0
    %3136 = vmatpush1.msra.mxu0 %v3073
    %3137 = vmatprep.subr.mxu0 0.0
    %3138 = vmatpush1.msra.mxu0 %v3074
    %3139 = vmatprep.subr.mxu0 0.0
    %3140 = vmatpush1.msra.mxu0 %v3125
    %3141 = vmatprep.subr.mxu0 0.0
    %3142 = vmatpush1.msra.mxu0 0.0
    %3143 = vmatprep.subr.mxu0 0.0
    %3144 = vmatpush1.msra.mxu0 0.0
    %3145 = vmatprep.subr.mxu0 0.0
    %3146 = vmatpush1.msra.mxu0 0.0
    %3147 = vmatprep.subr.mxu0 0.0
    %3148 = vmatpush1.msra.mxu0 0.0
    %3149 = vmatprep.subr.mxu0 0.0
    %3150 = vmatpush1.msra.mxu0 0.0
    %3151 = vmatprep.subr.mxu0 0.0
    %3152 = vmatpush1.msra.mxu0 0.0
    %3153 = vmatprep.subr.mxu0 0.0
    %3154 = vmatpush1.msra.mxu0 0.0
    %3155 = vmatprep.subr.mxu0 0.0
    %3156 = vmatpush1.msra.mxu0 0.0
    %3157 = vmatprep.subr.mxu0 0.0
    %3158 = vmatpush1.msra.mxu0 0.0
    %3159 = vmatprep.subr.mxu0 0.0
    %3160 = vmatpush1.msra.mxu0 0.0
    %3161 = vmatprep.subr.mxu0 0.0
    %3162 = vmatpush1.msra.mxu0 0.0
    %3163 = vmatprep.subr.mxu0 0.0
    %3164 = vmatpush1.msra.mxu0 0.0
    %3165 = vmatprep.subr.mxu0 0.0
    %3166 = vmatpush1.msra.mxu0 0.0
    %3167 = vmatprep.subr.mxu0 0.0
    %3168 = vmatpush1.msra.mxu0 0.0
    %3169 = vmatprep.subr.mxu0 0.0
    %3170 = vmatpush1.msra.mxu0 0.0
    %3171 = vmatprep.subr.mxu0 0.0
    %3172 = vmatpush1.msra.mxu0 0.0
    %3173 = vmatprep.subr.mxu0 0.0
    %3174 = vmatpush1.msra.mxu0 0.0
    %3175 = vmatprep.subr.mxu0 0.0
    %3176 = vmatpush1.msra.mxu0 0.0
    %3177 = vmatprep.subr.mxu0 0.0
    %3178 = vmatpush1.msra.mxu0 0.0
    %3179 = vmatprep.subr.mxu0 0.0
    %3180 = vmatpush1.msra.mxu0 0.0
    %3181 = vmatprep.subr.mxu0 0.0
    %3182 = vmatpush1.msra.mxu0 0.0
    %3183 = vmatprep.subr.mxu0 0.0
    %3184 = vmatpush1.msra.mxu0 0.0
    %3185 = vmatprep.subr.mxu0 0.0
    %3186 = vmatpush1.msra.mxu0 0.0
    %3187 = vmatprep.subr.mxu0 0.0
    %3188 = vmatpush1.msra.mxu0 0.0
    %3189 = vmatprep.subr.mxu0 0.0
    %3190 = vmatpush1.msra.mxu0 0.0
    %3191 = vmatprep.mubr.f32.mxu0 0.0
    %3192 = vmatmul.mubr.f32.gmra.mrb[0].mxu0 %v3077
    %v3193 = vpop.f32.mrb[0].mxu0
    %v3194 = vadd.f32 0.0, %v3193
    %v3195 = vpop.f32.mrb[0].mxu0
    %3196 = vmatprep.mubr.f32.mxu0 0.0
    %3197 = vmatmul.mubr.f32.gmra.mrb[0].mxu0 %v3080
    %v3198 = vpop.f32.mrb[0].mxu0
    %v3199 = vadd.f32 0.0, %v3198
    %v3200 = vpop.f32.mrb[0].mxu0
    %3201 = vmatprep.mubr.f32.mxu0 0.0
    %3202 = vmatmul.mubr.f32.gmra.mrb[0].mxu0 %v3083
    %v3203 = vpop.f32.mrb[0].mxu0
    %v3204 = vadd.f32 0.0, %v3203
    %v3205 = vpop.f32.mrb[0].mxu0
    %3206 = vmatprep.mubr.f32.mxu0 0.0
    %3207 = vmatmul.mubr.f32.gmra.mrb[0].mxu0 %v3086
    %v3208 = vpop.f32.mrb[0].mxu0
    %v3209 = vadd.f32 0.0, %v3208
    %v3210 = vpop.f32.mrb[0].mxu0
    %3211 = vmatprep.mubr.f32.mxu0 0.0
    %3212 = vmatmul.mubr.f32.gmra.mrb[0].mxu0 %v3089
    %v3213 = vpop.f32.mrb[0].mxu0
    %v3214 = vadd.f32 0.0, %v3213
    %v3215 = vpop.f32.mrb[0].mxu0
    %3216 = vmatprep.mubr.f32.mxu0 0.0
    %3217 = vmatmul.mubr.f32.gmra.mrb[0].mxu0 %v3092
    %v3218 = vpop.f32.mrb[0].mxu0
    %v3219 = vadd.f32 0.0, %v3218
    %v3220 = vpop.f32.mrb[0].mxu0
    %3221 = vmatprep.mubr.f32.mxu0 0.0
    %3222 = vmatmul.mubr.f32.gmra.mrb[0].mxu0 %v3095
    %v3223 = vpop.f32.mrb[0].mxu0
    %v3224 = vadd.f32 0.0, %v3223
    %v3225 = vpop.f32.mrb[0].mxu0
    %3226 = vmatprep.mubr.f32.mxu0 0.0
    %3227 = vmatmul.mubr.f32.gmra.mrb[0].mxu0 %v3098
    %v3228 = vpop.f32.mrb[0].mxu0
    %v3229 = vadd.f32 0.0, %v3228
    %v3230 = vpop.f32.mrb[0].mxu0
    %3231 = vmatprep.mubr.f32.mxu0 0.0
    %3232 = vmatmul.mubr.f32.gmra.mrb[0].mxu0 %v3101
    %v3233 = vpop.f32.mrb[0].mxu0
    %v3234 = vadd.f32 0.0, %v3233
    %v3235 = vpop.f32.mrb[0].mxu0
    %3236 = vmatprep.mubr.f32.mxu0 0.0
    %3237 = vmatmul.mubr.f32.gmra.mrb[0].mxu0 %v3104
    %v3238 = vpop.f32.mrb[0].mxu0
    %v3239 = vadd.f32 0.0, %v3238
    %v3240 = vpop.f32.mrb[0].mxu0
    %3241 = vmatprep.mubr.f32.mxu0 0.0
    %3242 = vmatmul.mubr.f32.gmra.mrb[0].mxu0 %v3107
    %v3243 = vpop.f32.mrb[0].mxu0
    %v3244 = vadd.f32 0.0, %v3243
    %v3245 = vpop.f32.mrb[0].mxu0
    %3246 = vmatprep.mubr.f32.mxu0 0.0
    %3247 = vmatmul.mubr.f32.gmra.mrb[0].mxu0 %v3110
    %v3248 = vpop.f32.mrb[0].mxu0
    %v3249 = vadd.f32 0.0, %v3248
    %v3250 = vpop.f32.mrb[0].mxu0
    %3251 = vmatprep.mubr.f32.mxu0 0.0
    %3252 = vmatmul.mubr.f32.gmra.mrb[0].mxu0 %v3113
    %v3253 = vpop.f32.mrb[0].mxu0
    %v3254 = vadd.f32 0.0, %v3253
    %v3255 = vpop.f32.mrb[0].mxu0
    %3256 = vmatprep.mubr.f32.mxu0 0.0
    %3257 = vmatmul.mubr.f32.gmra.mrb[0].mxu0 %v3116
    %v3258 = vpop.f32.mrb[0].mxu0
    %v3259 = vadd.f32 0.0, %v3258
    %v3260 = vpop.f32.mrb[0].mxu0
    %3261 = vmatprep.mubr.f32.mxu0 0.0
    %3262 = vmatmul.mubr.f32.gmra.mrb[0].mxu0 %v3119
    %v3263 = vpop.f32.mrb[0].mxu0
    %v3264 = vadd.f32 0.0, %v3263
    %v3265 = vpop.f32.mrb[0].mxu0
    %3266 = vmatprep.mubr.f32.mxu0 0.0
    %3267 = vmatmul.mubr.f32.gmra.mrb[0].mxu0 %v3122
    %v3268 = vpop.f32.mrb[0].mxu0
    %v3269 = vadd.f32 0.0, %v3268
    %v3270 = vpop.f32.mrb[0].mxu0
    %3271 = vdwg.mxu0
    %v3272 = vadd.f32 %v2973, %v3194
    %v3273 = vadd.f32 %v2978, %v3199
    %v3274 = vadd.f32 %v2983, %v3204
    %v3275 = vadd.f32 %v2988, %v3209
    %v3276 = vadd.f32 %v2993, %v3214
    %v3277 = vadd.f32 %v2998, %v3219
    %v3278 = vadd.f32 %v3003, %v3224
    %v3279 = vadd.f32 %v3008, %v3229
    %v3280 = vadd.f32 %v3013, %v3234
    %v3281 = vadd.f32 %v3018, %v3239
    %v3282 = vadd.f32 %v3023, %v3244
    %v3283 = vadd.f32 %v3028, %v3249
    %v3284 = vadd.f32 %v3033, %v3254
    %v3285 = vadd.f32 %v3038, %v3259
    %v3286 = vadd.f32 %v3043, %v3264
    %v3287 = vadd.f32 %v3048, %v3269
    %s3288 = scalar_lea.vmem [#allocation4], 24
    %v3289 = vld [vmem:[%s3288] sm:$0xff]
    %v3290 = vld [vmem:[%s3288 + $0x8] sm:$0xff]
    %v3291 = vld [vmem:[%s3288 + $0x10] sm:$0xff]
    %v3292 = vld [vmem:[%s3288 + $0x18] sm:$0xff]
    %v3293 = vld [vmem:[%s3288 + $0x20] sm:$0xff]
    %v3294 = vld [vmem:[%s3288 + $0x28] sm:$0xff]
    %v3295 = vld [vmem:[%s3288 + $0x30] sm:$0xff]
    %v3296 = vld [vmem:[%s3288 + $0x38] sm:$0xff]
    %v3297 = vld [vmem:[%s3288 + $0x60] sm:$0xff]
    %v3298 = vld [vmem:[%s3288 + $0x68] sm:$0xff]
    %v3299 = vld [vmem:[%s3288 + $0x70] sm:$0xff]
    %v3300 = vld [vmem:[%s3288 + $0x78] sm:$0xff]
    %v3301 = vld [vmem:[%s3288 + $0x80] sm:$0xff]
    %v3302 = vld [vmem:[%s3288 + $0x88] sm:$0xff]
    %v3303 = vld [vmem:[%s3288 + $0x90] sm:$0xff]
    %v3304 = vld [vmem:[%s3288 + $0x98] sm:$0xff]
    %s3305 = scalar_lea.vmem %s3, 168
    %v3306 = vld [vmem:[%s3305] sm:$0xff]
    %v3307 = vld [vmem:[%s3305 + $0x8] sm:$0xff]
    %v3308 = vld [vmem:[%s3305 + $0x10] sm:$0xff]
    %v3309 = vld [vmem:[%s3305 + $0x18] sm:$0xff]
    %v3310 = vld [vmem:[%s3305 + $0x20] sm:$0xff]
    %v3311 = vld [vmem:[%s3305 + $0x28] sm:$0xff]
    %v3312 = vld [vmem:[%s3305 + $0x30] sm:$0x3]
    %v3314 = vsel %vm2657, %v3289, 0
    %v3317 = vsel %vm2657, %v3290, 0
    %v3320 = vsel %vm2657, %v3291, 0
    %v3323 = vsel %vm2657, %v3292, 0
    %v3326 = vsel %vm2657, %v3293, 0
    %v3329 = vsel %vm2657, %v3294, 0
    %v3332 = vsel %vm2657, %v3295, 0
    %v3335 = vsel %vm2657, %v3296, 0
    %v3338 = vsel %vm2657, %v3297, 0
    %v3341 = vsel %vm2657, %v3298, 0
    %v3344 = vsel %vm2657, %v3299, 0
    %v3347 = vsel %vm2657, %v3300, 0
    %v3350 = vsel %vm2657, %v3301, 0
    %v3353 = vsel %vm2657, %v3302, 0
    %v3356 = vsel %vm2657, %v3303, 0
    %v3359 = vsel %vm2657, %v3304, 0
    %v3362 = vsel %vm2706, %v3312, 0
    %3364 = vmatprep.subr.mxu0 0.0
    %3365 = vmatpush1.msra.mxu0 %v3306
    %3366 = vmatprep.subr.mxu0 0.0
    %3367 = vmatpush1.msra.mxu0 %v3307
    %3368 = vmatprep.subr.mxu0 0.0
    %3369 = vmatpush1.msra.mxu0 %v3308
    %3370 = vmatprep.subr.mxu0 0.0
    %3371 = vmatpush1.msra.mxu0 %v3309
    %3372 = vmatprep.subr.mxu0 0.0
    %3373 = vmatpush1.msra.mxu0 %v3310
    %3374 = vmatprep.subr.mxu0 0.0
    %3375 = vmatpush1.msra.mxu0 %v3311
    %3376 = vmatprep.subr.mxu0 0.0
    %3377 = vmatpush1.msra.mxu0 %v3362
    %3378 = vmatprep.subr.mxu0 0.0
    %3379 = vmatpush1.msra.mxu0 0.0
    %3380 = vmatprep.subr.mxu0 0.0
    %3381 = vmatpush1.msra.mxu0 0.0
    %3382 = vmatprep.subr.mxu0 0.0
    %3383 = vmatpush1.msra.mxu0 0.0
    %3384 = vmatprep.subr.mxu0 0.0
    %3385 = vmatpush1.msra.mxu0 0.0
    %3386 = vmatprep.subr.mxu0 0.0
    %3387 = vmatpush1.msra.mxu0 0.0
    %3388 = vmatprep.subr.mxu0 0.0
    %3389 = vmatpush1.msra.mxu0 0.0
    %3390 = vmatprep.subr.mxu0 0.0
    %3391 = vmatpush1.msra.mxu0 0.0
    %3392 = vmatprep.subr.mxu0 0.0
    %3393 = vmatpush1.msra.mxu0 0.0
    %3394 = vmatprep.subr.mxu0 0.0
    %3395 = vmatpush1.msra.mxu0 0.0
    %3396 = vmatprep.subr.mxu0 0.0
    %3397 = vmatpush1.msra.mxu0 0.0
    %3398 = vmatprep.subr.mxu0 0.0
    %3399 = vmatpush1.msra.mxu0 0.0
    %3400 = vmatprep.subr.mxu0 0.0
    %3401 = vmatpush1.msra.mxu0 0.0
    %3402 = vmatprep.subr.mxu0 0.0
    %3403 = vmatpush1.msra.mxu0 0.0
    %3404 = vmatprep.subr.mxu0 0.0
    %3405 = vmatpush1.msra.mxu0 0.0
    %3406 = vmatprep.subr.mxu0 0.0
    %3407 = vmatpush1.msra.mxu0 0.0
    %3408 = vmatprep.subr.mxu0 0.0
    %3409 = vmatpush1.msra.mxu0 0.0
    %3410 = vmatprep.subr.mxu0 0.0
    %3411 = vmatpush1.msra.mxu0 0.0
    %3412 = vmatprep.subr.mxu0 0.0
    %3413 = vmatpush1.msra.mxu0 0.0
    %3414 = vmatprep.subr.mxu0 0.0
    %3415 = vmatpush1.msra.mxu0 0.0
    %3416 = vmatprep.subr.mxu0 0.0
    %3417 = vmatpush1.msra.mxu0 0.0
    %3418 = vmatprep.subr.mxu0 0.0
    %3419 = vmatpush1.msra.mxu0 0.0
    %3420 = vmatprep.subr.mxu0 0.0
    %3421 = vmatpush1.msra.mxu0 0.0
    %3422 = vmatprep.subr.mxu0 0.0
    %3423 = vmatpush1.msra.mxu0 0.0
    %3424 = vmatprep.subr.mxu0 0.0
    %3425 = vmatpush1.msra.mxu0 0.0
    %3426 = vmatprep.subr.mxu0 0.0
    %3427 = vmatpush1.msra.mxu0 0.0
    %3428 = vmatprep.mubr.f32.mxu0 0.0
    %3429 = vmatmul.mubr.f32.gmra.mrb[0].mxu0 %v3314
    %v3430 = vpop.f32.mrb[0].mxu0
    %v3431 = vadd.f32 0.0, %v3430
    %v3432 = vpop.f32.mrb[0].mxu0
    %3433 = vmatprep.mubr.f32.mxu0 0.0
    %3434 = vmatmul.mubr.f32.gmra.mrb[0].mxu0 %v3317
    %v3435 = vpop.f32.mrb[0].mxu0
    %v3436 = vadd.f32 0.0, %v3435
    %v3437 = vpop.f32.mrb[0].mxu0
    %3438 = vmatprep.mubr.f32.mxu0 0.0
    %3439 = vmatmul.mubr.f32.gmra.mrb[0].mxu0 %v3320
    %v3440 = vpop.f32.mrb[0].mxu0
    %v3441 = vadd.f32 0.0, %v3440
    %v3442 = vpop.f32.mrb[0].mxu0
    %3443 = vmatprep.mubr.f32.mxu0 0.0
    %3444 = vmatmul.mubr.f32.gmra.mrb[0].mxu0 %v3323
    %v3445 = vpop.f32.mrb[0].mxu0
    %v3446 = vadd.f32 0.0, %v3445
    %v3447 = vpop.f32.mrb[0].mxu0
    %3448 = vmatprep.mubr.f32.mxu0 0.0
    %3449 = vmatmul.mubr.f32.gmra.mrb[0].mxu0 %v3326
    %v3450 = vpop.f32.mrb[0].mxu0
    %v3451 = vadd.f32 0.0, %v3450
    %v3452 = vpop.f32.mrb[0].mxu0
    %3453 = vmatprep.mubr.f32.mxu0 0.0
    %3454 = vmatmul.mubr.f32.gmra.mrb[0].mxu0 %v3329
    %v3455 = vpop.f32.mrb[0].mxu0
    %v3456 = vadd.f32 0.0, %v3455
    %v3457 = vpop.f32.mrb[0].mxu0
    %3458 = vmatprep.mubr.f32.mxu0 0.0
    %3459 = vmatmul.mubr.f32.gmra.mrb[0].mxu0 %v3332
    %v3460 = vpop.f32.mrb[0].mxu0
    %v3461 = vadd.f32 0.0, %v3460
    %v3462 = vpop.f32.mrb[0].mxu0
    %3463 = vmatprep.mubr.f32.mxu0 0.0
    %3464 = vmatmul.mubr.f32.gmra.mrb[0].mxu0 %v3335
    %v3465 = vpop.f32.mrb[0].mxu0
    %v3466 = vadd.f32 0.0, %v3465
    %v3467 = vpop.f32.mrb[0].mxu0
    %3468 = vmatprep.mubr.f32.mxu0 0.0
    %3469 = vmatmul.mubr.f32.gmra.mrb[0].mxu0 %v3338
    %v3470 = vpop.f32.mrb[0].mxu0
    %v3471 = vadd.f32 0.0, %v3470
    %v3472 = vpop.f32.mrb[0].mxu0
    %3473 = vmatprep.mubr.f32.mxu0 0.0
    %3474 = vmatmul.mubr.f32.gmra.mrb[0].mxu0 %v3341
    %v3475 = vpop.f32.mrb[0].mxu0
    %v3476 = vadd.f32 0.0, %v3475
    %v3477 = vpop.f32.mrb[0].mxu0
    %3478 = vmatprep.mubr.f32.mxu0 0.0
    %3479 = vmatmul.mubr.f32.gmra.mrb[0].mxu0 %v3344
    %v3480 = vpop.f32.mrb[0].mxu0
    %v3481 = vadd.f32 0.0, %v3480
    %v3482 = vpop.f32.mrb[0].mxu0
    %3483 = vmatprep.mubr.f32.mxu0 0.0
    %3484 = vmatmul.mubr.f32.gmra.mrb[0].mxu0 %v3347
    %v3485 = vpop.f32.mrb[0].mxu0
    %v3486 = vadd.f32 0.0, %v3485
    %v3487 = vpop.f32.mrb[0].mxu0
    %3488 = vmatprep.mubr.f32.mxu0 0.0
    %3489 = vmatmul.mubr.f32.gmra.mrb[0].mxu0 %v3350
    %v3490 = vpop.f32.mrb[0].mxu0
    %v3491 = vadd.f32 0.0, %v3490
    %v3492 = vpop.f32.mrb[0].mxu0
    %3493 = vmatprep.mubr.f32.mxu0 0.0
    %3494 = vmatmul.mubr.f32.gmra.mrb[0].mxu0 %v3353
    %v3495 = vpop.f32.mrb[0].mxu0
    %v3496 = vadd.f32 0.0, %v3495
    %v3497 = vpop.f32.mrb[0].mxu0
    %3498 = vmatprep.mubr.f32.mxu0 0.0
    %3499 = vmatmul.mubr.f32.gmra.mrb[0].mxu0 %v3356
    %v3500 = vpop.f32.mrb[0].mxu0
    %v3501 = vadd.f32 0.0, %v3500
    %v3502 = vpop.f32.mrb[0].mxu0
    %3503 = vmatprep.mubr.f32.mxu0 0.0
    %3504 = vmatmul.mubr.f32.gmra.mrb[0].mxu0 %v3359
    %v3505 = vpop.f32.mrb[0].mxu0
    %v3506 = vadd.f32 0.0, %v3505
    %v3507 = vpop.f32.mrb[0].mxu0
    %3508 = vdwg.mxu0
    %v3509 = vadd.f32 %v3272, %v3431
    %v3510 = vadd.f32 %v3273, %v3436
    %v3511 = vadd.f32 %v3274, %v3441
    %v3512 = vadd.f32 %v3275, %v3446
    %v3513 = vadd.f32 %v3276, %v3451
    %v3514 = vadd.f32 %v3277, %v3456
    %v3515 = vadd.f32 %v3278, %v3461
    %v3516 = vadd.f32 %v3279, %v3466
    %v3517 = vadd.f32 %v3280, %v3471
    %v3518 = vadd.f32 %v3281, %v3476
    %v3519 = vadd.f32 %v3282, %v3481
    %v3520 = vadd.f32 %v3283, %v3486
    %v3521 = vadd.f32 %v3284, %v3491
    %v3522 = vadd.f32 %v3285, %v3496
    %v3523 = vadd.f32 %v3286, %v3501
    %v3524 = vadd.f32 %v3287, %v3506
    %s3525 = scalar_lea.vmem [#allocation4], 32
    %v3526 = vld [vmem:[%s3525] sm:$0xff]
    %v3527 = vld [vmem:[%s3525 + $0x8] sm:$0xff]
    %v3528 = vld [vmem:[%s3525 + $0x10] sm:$0xff]
    %v3529 = vld [vmem:[%s3525 + $0x18] sm:$0xff]
    %v3530 = vld [vmem:[%s3525 + $0x20] sm:$0xff]
    %v3531 = vld [vmem:[%s3525 + $0x28] sm:$0xff]
    %v3532 = vld [vmem:[%s3525 + $0x30] sm:$0xff]
    %v3533 = vld [vmem:[%s3525 + $0x38] sm:$0xff]
    %v3534 = vld [vmem:[%s3525 + $0x60] sm:$0xff]
    %v3535 = vld [vmem:[%s3525 + $0x68] sm:$0xff]
    %v3536 = vld [vmem:[%s3525 + $0x70] sm:$0xff]
    %v3537 = vld [vmem:[%s3525 + $0x78] sm:$0xff]
    %v3538 = vld [vmem:[%s3525 + $0x80] sm:$0xff]
    %v3539 = vld [vmem:[%s3525 + $0x88] sm:$0xff]
    %v3540 = vld [vmem:[%s3525 + $0x90] sm:$0xff]
    %v3541 = vld [vmem:[%s3525 + $0x98] sm:$0xff]
    %s3542 = scalar_lea.vmem %s3, 224
    %v3543 = vld [vmem:[%s3542] sm:$0xff]
    %v3544 = vld [vmem:[%s3542 + $0x8] sm:$0xff]
    %v3545 = vld [vmem:[%s3542 + $0x10] sm:$0xff]
    %v3546 = vld [vmem:[%s3542 + $0x18] sm:$0xff]
    %v3547 = vld [vmem:[%s3542 + $0x20] sm:$0xff]
    %v3548 = vld [vmem:[%s3542 + $0x28] sm:$0xff]
    %v3549 = vld [vmem:[%s3542 + $0x30] sm:$0x3]
    %v3551 = vsel %vm2657, %v3526, 0
    %v3554 = vsel %vm2657, %v3527, 0
    %v3557 = vsel %vm2657, %v3528, 0
    %v3560 = vsel %vm2657, %v3529, 0
    %v3563 = vsel %vm2657, %v3530, 0
    %v3566 = vsel %vm2657, %v3531, 0
    %v3569 = vsel %vm2657, %v3532, 0
    %v3572 = vsel %vm2657, %v3533, 0
    %v3575 = vsel %vm2657, %v3534, 0
    %v3578 = vsel %vm2657, %v3535, 0
    %v3581 = vsel %vm2657, %v3536, 0
    %v3584 = vsel %vm2657, %v3537, 0
    %v3587 = vsel %vm2657, %v3538, 0
    %v3590 = vsel %vm2657, %v3539, 0
    %v3593 = vsel %vm2657, %v3540, 0
    %v3596 = vsel %vm2657, %v3541, 0
    %v3599 = vsel %vm2706, %v3549, 0
    %3601 = vmatprep.subr.mxu0 0.0
    %3602 = vmatpush1.msra.mxu0 %v3543
    %3603 = vmatprep.subr.mxu0 0.0
    %3604 = vmatpush1.msra.mxu0 %v3544
    %3605 = vmatprep.subr.mxu0 0.0
    %3606 = vmatpush1.msra.mxu0 %v3545
    %3607 = vmatprep.subr.mxu0 0.0
    %3608 = vmatpush1.msra.mxu0 %v3546
    %3609 = vmatprep.subr.mxu0 0.0
    %3610 = vmatpush1.msra.mxu0 %v3547
    %3611 = vmatprep.subr.mxu0 0.0
    %3612 = vmatpush1.msra.mxu0 %v3548
    %3613 = vmatprep.subr.mxu0 0.0
    %3614 = vmatpush1.msra.mxu0 %v3599
    %3615 = vmatprep.subr.mxu0 0.0
    %3616 = vmatpush1.msra.mxu0 0.0
    %3617 = vmatprep.subr.mxu0 0.0
    %3618 = vmatpush1.msra.mxu0 0.0
    %3619 = vmatprep.subr.mxu0 0.0
    %3620 = vmatpush1.msra.mxu0 0.0
    %3621 = vmatprep.subr.mxu0 0.0
    %3622 = vmatpush1.msra.mxu0 0.0
    %3623 = vmatprep.subr.mxu0 0.0
    %3624 = vmatpush1.msra.mxu0 0.0
    %3625 = vmatprep.subr.mxu0 0.0
    %3626 = vmatpush1.msra.mxu0 0.0
    %3627 = vmatprep.subr.mxu0 0.0
    %3628 = vmatpush1.msra.mxu0 0.0
    %3629 = vmatprep.subr.mxu0 0.0
    %3630 = vmatpush1.msra.mxu0 0.0
    %3631 = vmatprep.subr.mxu0 0.0
    %3632 = vmatpush1.msra.mxu0 0.0
    %3633 = vmatprep.subr.mxu0 0.0
    %3634 = vmatpush1.msra.mxu0 0.0
    %3635 = vmatprep.subr.mxu0 0.0
    %3636 = vmatpush1.msra.mxu0 0.0
    %3637 = vmatprep.subr.mxu0 0.0
    %3638 = vmatpush1.msra.mxu0 0.0
    %3639 = vmatprep.subr.mxu0 0.0
    %3640 = vmatpush1.msra.mxu0 0.0
    %3641 = vmatprep.subr.mxu0 0.0
    %3642 = vmatpush1.msra.mxu0 0.0
    %3643 = vmatprep.subr.mxu0 0.0
    %3644 = vmatpush1.msra.mxu0 0.0
    %3645 = vmatprep.subr.mxu0 0.0
    %3646 = vmatpush1.msra.mxu0 0.0
    %3647 = vmatprep.subr.mxu0 0.0
    %3648 = vmatpush1.msra.mxu0 0.0
    %3649 = vmatprep.subr.mxu0 0.0
    %3650 = vmatpush1.msra.mxu0 0.0
    %3651 = vmatprep.subr.mxu0 0.0
    %3652 = vmatpush1.msra.mxu0 0.0
    %3653 = vmatprep.subr.mxu0 0.0
    %3654 = vmatpush1.msra.mxu0 0.0
    %3655 = vmatprep.subr.mxu0 0.0
    %3656 = vmatpush1.msra.mxu0 0.0
    %3657 = vmatprep.subr.mxu0 0.0
    %3658 = vmatpush1.msra.mxu0 0.0
    %3659 = vmatprep.subr.mxu0 0.0
    %3660 = vmatpush1.msra.mxu0 0.0
    %3661 = vmatprep.subr.mxu0 0.0
    %3662 = vmatpush1.msra.mxu0 0.0
    %3663 = vmatprep.subr.mxu0 0.0
    %3664 = vmatpush1.msra.mxu0 0.0
    %3665 = vmatprep.mubr.f32.mxu0 0.0
    %3666 = vmatmul.mubr.f32.gmra.mrb[0].mxu0 %v3551
    %v3667 = vpop.f32.mrb[0].mxu0
    %v3668 = vadd.f32 0.0, %v3667
    %v3669 = vpop.f32.mrb[0].mxu0
    %3670 = vmatprep.mubr.f32.mxu0 0.0
    %3671 = vmatmul.mubr.f32.gmra.mrb[0].mxu0 %v3554
    %v3672 = vpop.f32.mrb[0].mxu0
    %v3673 = vadd.f32 0.0, %v3672
    %v3674 = vpop.f32.mrb[0].mxu0
    %3675 = vmatprep.mubr.f32.mxu0 0.0
    %3676 = vmatmul.mubr.f32.gmra.mrb[0].mxu0 %v3557
    %v3677 = vpop.f32.mrb[0].mxu0
    %v3678 = vadd.f32 0.0, %v3677
    %v3679 = vpop.f32.mrb[0].mxu0
    %3680 = vmatprep.mubr.f32.mxu0 0.0
    %3681 = vmatmul.mubr.f32.gmra.mrb[0].mxu0 %v3560
    %v3682 = vpop.f32.mrb[0].mxu0
    %v3683 = vadd.f32 0.0, %v3682
    %v3684 = vpop.f32.mrb[0].mxu0
    %3685 = vmatprep.mubr.f32.mxu0 0.0
    %3686 = vmatmul.mubr.f32.gmra.mrb[0].mxu0 %v3563
    %v3687 = vpop.f32.mrb[0].mxu0
    %v3688 = vadd.f32 0.0, %v3687
    %v3689 = vpop.f32.mrb[0].mxu0
    %3690 = vmatprep.mubr.f32.mxu0 0.0
    %3691 = vmatmul.mubr.f32.gmra.mrb[0].mxu0 %v3566
    %v3692 = vpop.f32.mrb[0].mxu0
    %v3693 = vadd.f32 0.0, %v3692
    %v3694 = vpop.f32.mrb[0].mxu0
    %3695 = vmatprep.mubr.f32.mxu0 0.0
    %3696 = vmatmul.mubr.f32.gmra.mrb[0].mxu0 %v3569
    %v3697 = vpop.f32.mrb[0].mxu0
    %v3698 = vadd.f32 0.0, %v3697
    %v3699 = vpop.f32.mrb[0].mxu0
    %3700 = vmatprep.mubr.f32.mxu0 0.0
    %3701 = vmatmul.mubr.f32.gmra.mrb[0].mxu0 %v3572
    %v3702 = vpop.f32.mrb[0].mxu0
    %v3703 = vadd.f32 0.0, %v3702
    %v3704 = vpop.f32.mrb[0].mxu0
    %3705 = vmatprep.mubr.f32.mxu0 0.0
    %3706 = vmatmul.mubr.f32.gmra.mrb[0].mxu0 %v3575
    %v3707 = vpop.f32.mrb[0].mxu0
    %v3708 = vadd.f32 0.0, %v3707
    %v3709 = vpop.f32.mrb[0].mxu0
    %3710 = vmatprep.mubr.f32.mxu0 0.0
    %3711 = vmatmul.mubr.f32.gmra.mrb[0].mxu0 %v3578
    %v3712 = vpop.f32.mrb[0].mxu0
    %v3713 = vadd.f32 0.0, %v3712
    %v3714 = vpop.f32.mrb[0].mxu0
    %3715 = vmatprep.mubr.f32.mxu0 0.0
    %3716 = vmatmul.mubr.f32.gmra.mrb[0].mxu0 %v3581
    %v3717 = vpop.f32.mrb[0].mxu0
    %v3718 = vadd.f32 0.0, %v3717
    %v3719 = vpop.f32.mrb[0].mxu0
    %3720 = vmatprep.mubr.f32.mxu0 0.0
    %3721 = vmatmul.mubr.f32.gmra.mrb[0].mxu0 %v3584
    %v3722 = vpop.f32.mrb[0].mxu0
    %v3723 = vadd.f32 0.0, %v3722
    %v3724 = vpop.f32.mrb[0].mxu0
    %3725 = vmatprep.mubr.f32.mxu0 0.0
    %3726 = vmatmul.mubr.f32.gmra.mrb[0].mxu0 %v3587
    %v3727 = vpop.f32.mrb[0].mxu0
    %v3728 = vadd.f32 0.0, %v3727
    %v3729 = vpop.f32.mrb[0].mxu0
    %3730 = vmatprep.mubr.f32.mxu0 0.0
    %3731 = vmatmul.mubr.f32.gmra.mrb[0].mxu0 %v3590
    %v3732 = vpop.f32.mrb[0].mxu0
    %v3733 = vadd.f32 0.0, %v3732
    %v3734 = vpop.f32.mrb[0].mxu0
    %3735 = vmatprep.mubr.f32.mxu0 0.0
    %3736 = vmatmul.mubr.f32.gmra.mrb[0].mxu0 %v3593
    %v3737 = vpop.f32.mrb[0].mxu0
    %v3738 = vadd.f32 0.0, %v3737
    %v3739 = vpop.f32.mrb[0].mxu0
    %3740 = vmatprep.mubr.f32.mxu0 0.0
    %3741 = vmatmul.mubr.f32.gmra.mrb[0].mxu0 %v3596
    %v3742 = vpop.f32.mrb[0].mxu0
    %v3743 = vadd.f32 0.0, %v3742
    %v3744 = vpop.f32.mrb[0].mxu0
    %3745 = vdwg.mxu0
    %v3746 = vadd.f32 %v3509, %v3668
    %v3747 = vadd.f32 %v3510, %v3673
    %v3748 = vadd.f32 %v3511, %v3678
    %v3749 = vadd.f32 %v3512, %v3683
    %v3750 = vadd.f32 %v3513, %v3688
    %v3751 = vadd.f32 %v3514, %v3693
    %v3752 = vadd.f32 %v3515, %v3698
    %v3753 = vadd.f32 %v3516, %v3703
    %v3754 = vadd.f32 %v3517, %v3708
    %v3755 = vadd.f32 %v3518, %v3713
    %v3756 = vadd.f32 %v3519, %v3718
    %v3757 = vadd.f32 %v3520, %v3723
    %v3758 = vadd.f32 %v3521, %v3728
    %v3759 = vadd.f32 %v3522, %v3733
    %v3760 = vadd.f32 %v3523, %v3738
    %v3761 = vadd.f32 %v3524, %v3743
    %v3762 = vld [vmem:[%s4] sm:$0x1]
    %v3764 = vlaneseq
    %v3765 = vshrl.u32 %v3764, 7
    %v3766 = vsub.s32 0, %v3765
    %v3767 = vrot.slane %v3762, %v3766
    %v3769 = vadd.f32 %v3746, %v3767
    %v3770 = vadd.f32 %v3747, %v3767
    %v3771 = vadd.f32 %v3748, %v3767
    %v3772 = vadd.f32 %v3749, %v3767
    %v3773 = vadd.f32 %v3750, %v3767
    %v3774 = vadd.f32 %v3751, %v3767
    %v3775 = vadd.f32 %v3752, %v3767
    %v3776 = vadd.f32 %v3753, %v3767
    %v3777 = vadd.f32 %v3754, %v3767
    %v3778 = vadd.f32 %v3755, %v3767
    %v3779 = vadd.f32 %v3756, %v3767
    %v3780 = vadd.f32 %v3757, %v3767
    %v3781 = vadd.f32 %v3758, %v3767
    %v3782 = vadd.f32 %v3759, %v3767
    %v3783 = vadd.f32 %v3760, %v3767
    %v3784 = vadd.f32 %v3761, %v3767
    %3785 = vst [vmem:[#allocation5] sm:$0xff] %v3769
    %3786 = vst [vmem:[#allocation5 + $0x8] sm:$0xff] %v3770
    %3787 = vst [vmem:[#allocation5 + $0x10] sm:$0xff] %v3771
    %3788 = vst [vmem:[#allocation5 + $0x18] sm:$0xff] %v3772
    %3789 = vst [vmem:[#allocation5 + $0x20] sm:$0xff] %v3773
    %3790 = vst [vmem:[#allocation5 + $0x28] sm:$0xff] %v3774
    %3791 = vst [vmem:[#allocation5 + $0x30] sm:$0xff] %v3775
    %3792 = vst [vmem:[#allocation5 + $0x38] sm:$0xff] %v3776
    %3793 = vst [vmem:[#allocation5 + $0x40] sm:$0xff] %v3777
    %3794 = vst [vmem:[#allocation5 + $0x48] sm:$0xff] %v3778
    %3795 = vst [vmem:[#allocation5 + $0x50] sm:$0xff] %v3779
    %3796 = vst [vmem:[#allocation5 + $0x58] sm:$0xff] %v3780
    %3797 = vst [vmem:[#allocation5 + $0x60] sm:$0xff] %v3781
    %3798 = vst [vmem:[#allocation5 + $0x68] sm:$0xff] %v3782
    %3799 = vst [vmem:[#allocation5 + $0x70] sm:$0xff] %v3783
    %3800 = vst [vmem:[#allocation5 + $0x78] sm:$0xff] %v3784
    %v3801 = vld [vmem:[#allocation5] ss:$2 sm:$0xf]
    %s3802 = scalar_lea.vmem [#allocation5], 16
    %v3803 = vld [vmem:[%s3802] ss:$2 sm:$0xf]
    %s3804 = scalar_lea.vmem [#allocation5], 32
    %v3805 = vld [vmem:[%s3804] ss:$2 sm:$0xf]
    %s3806 = scalar_lea.vmem [#allocation5], 48
    %v3807 = vld [vmem:[%s3806] ss:$2 sm:$0xf]
    %s3808 = scalar_lea.vmem [#allocation5], 64
    %v3809 = vld [vmem:[%s3808] ss:$2 sm:$0xf]
    %s3810 = scalar_lea.vmem [#allocation5], 80
    %v3811 = vld [vmem:[%s3810] ss:$2 sm:$0xf]
    %s3812 = scalar_lea.vmem [#allocation5], 96
    %v3813 = vld [vmem:[%s3812] ss:$2 sm:$0xf]
    %s3814 = scalar_lea.vmem [#allocation5], 112
    %v3815 = vld [vmem:[%s3814] ss:$2 sm:$0xf]
    %s3816 = scalar_lea.vmem [#allocation5], 1
    %v3817 = vld [vmem:[%s3816] ss:$2 sm:$0xf]
    %s3818 = scalar_lea.vmem [#allocation5], 17
    %v3819 = vld [vmem:[%s3818] ss:$2 sm:$0xf]
    %s3820 = scalar_lea.vmem [#allocation5], 33
    %v3821 = vld [vmem:[%s3820] ss:$2 sm:$0xf]
    %s3822 = scalar_lea.vmem [#allocation5], 49
    %v3823 = vld [vmem:[%s3822] ss:$2 sm:$0xf]
    %s3824 = scalar_lea.vmem [#allocation5], 65
    %v3825 = vld [vmem:[%s3824] ss:$2 sm:$0xf]
    %s3826 = scalar_lea.vmem [#allocation5], 81
    %v3827 = vld [vmem:[%s3826] ss:$2 sm:$0xf]
    %s3828 = scalar_lea.vmem [#allocation5], 97
    %v3829 = vld [vmem:[%s3828] ss:$2 sm:$0xf]
    %s3830 = scalar_lea.vmem [#allocation5], 113
    %v3831 = vld [vmem:[%s3830] ss:$2 sm:$0xf]
    %s3832 = scalar_lea.vmem [#allocation5], 8
    %v3833 = vld [vmem:[%s3832] ss:$2 sm:$0xf]
    %s3834 = scalar_lea.vmem %s3832, 16 [#allocation5]
    %v3835 = vld [vmem:[%s3834] ss:$2 sm:$0xf]
    %s3836 = scalar_lea.vmem %s3832, 32 [#allocation5]
    %v3837 = vld [vmem:[%s3836] ss:$2 sm:$0xf]
    %s3838 = scalar_lea.vmem %s3832, 48 [#allocation5]
    %v3839 = vld [vmem:[%s3838] ss:$2 sm:$0xf]
    %s3840 = scalar_lea.vmem %s3832, 64 [#allocation5]
    %v3841 = vld [vmem:[%s3840] ss:$2 sm:$0xf]
    %s3842 = scalar_lea.vmem %s3832, 80 [#allocation5]
    %v3843 = vld [vmem:[%s3842] ss:$2 sm:$0xf]
    %s3844 = scalar_lea.vmem %s3832, 96 [#allocation5]
    %v3845 = vld [vmem:[%s3844] ss:$2 sm:$0xf]
    %s3846 = scalar_lea.vmem %s3832, 112 [#allocation5]
    %v3847 = vld [vmem:[%s3846] ss:$2 sm:$0xf]
    %s3848 = scalar_lea.vmem %s3832, 1 [#allocation5]
    %v3849 = vld [vmem:[%s3848] ss:$2 sm:$0xf]
    %s3850 = scalar_lea.vmem %s3832, 17 [#allocation5]
    %v3851 = vld [vmem:[%s3850] ss:$2 sm:$0xf]
    %s3852 = scalar_lea.vmem %s3832, 33 [#allocation5]
    %v3853 = vld [vmem:[%s3852] ss:$2 sm:$0xf]
    %s3854 = scalar_lea.vmem %s3832, 49 [#allocation5]
    %v3855 = vld [vmem:[%s3854] ss:$2 sm:$0xf]
    %s3856 = scalar_lea.vmem %s3832, 65 [#allocation5]
    %v3857 = vld [vmem:[%s3856] ss:$2 sm:$0xf]
    %s3858 = scalar_lea.vmem %s3832, 81 [#allocation5]
    %v3859 = vld [vmem:[%s3858] ss:$2 sm:$0xf]
    %s3860 = scalar_lea.vmem %s3832, 97 [#allocation5]
    %v3861 = vld [vmem:[%s3860] ss:$2 sm:$0xf]
    %s3862 = scalar_lea.vmem %s3832, 113 [#allocation5]
    %v3863 = vld [vmem:[%s3862] ss:$2 sm:$0xf]
    %v3864 = vmax.f32 %v3801, %v3817
    %v3865 = vmax.f32 %v3803, %v3819
    %v3866 = vmax.f32 %v3805, %v3821
    %v3867 = vmax.f32 %v3807, %v3823
    %v3868 = vmax.f32 %v3809, %v3825
    %v3869 = vmax.f32 %v3811, %v3827
    %v3870 = vmax.f32 %v3813, %v3829
    %v3871 = vmax.f32 %v3815, %v3831
    %v3872 = vmax.f32 %v3833, %v3849
    %v3873 = vmax.f32 %v3835, %v3851
    %v3874 = vmax.f32 %v3837, %v3853
    %v3875 = vmax.f32 %v3839, %v3855
    %v3876 = vmax.f32 %v3841, %v3857
    %v3877 = vmax.f32 %v3843, %v3859
    %v3878 = vmax.f32 %v3845, %v3861
    %v3879 = vmax.f32 %v3847, %v3863
    %v3880 = vmax.f32 %v3864, %v3872
    %v3881 = vmax.f32 %v3865, %v3873
    %v3882 = vmax.f32 %v3866, %v3874
    %v3883 = vmax.f32 %v3867, %v3875
    %v3884 = vmax.f32 %v3868, %v3876
    %v3885 = vmax.f32 %v3869, %v3877
    %v3886 = vmax.f32 %v3870, %v3878
    %v3887 = vmax.f32 %v3871, %v3879
    %v3888 = vmax.f32 %v3880, 0.0
    %v3889 = vmax.f32 %v3881, 0.0
    %v3890 = vmax.f32 %v3882, 0.0
    %v3891 = vmax.f32 %v3883, 0.0
    %v3892 = vmax.f32 %v3884, 0.0
    %v3893 = vmax.f32 %v3885, 0.0
    %v3894 = vmax.f32 %v3886, 0.0
    %v3895 = vmax.f32 %v3887, 0.0
    %3896 = vst [vmem:[#allocation6] sm:$0xf] %v3888
    %3897 = vst [vmem:[#allocation6 + $0x4] sm:$0xf] %v3889
    %3898 = vst [vmem:[#allocation6 + $0x8] sm:$0xf] %v3890
    %3899 = vst [vmem:[#allocation6 + $0xc] sm:$0xf] %v3891
    %3900 = vst [vmem:[#allocation6 + $0x10] sm:$0xf] %v3892
    %3901 = vst [vmem:[#allocation6 + $0x14] sm:$0xf] %v3893
    %3902 = vst [vmem:[#allocation6 + $0x18] sm:$0xf] %v3894
    %3903 = vst [vmem:[#allocation6 + $0x1c] sm:$0xf] %v3895
    %v3904 = vld [vmem:[#allocation6] sm:$0x1]
    %v3905 = vld [vmem:[#allocation6 + $0x10] sm:$0x1]
    %v3906 = vld [vmem:[#allocation6 + $0x1] sm:$0x1]
    %v3907 = vld [vmem:[#allocation6 + $0x11] sm:$0x1]
    %v3910 = vrot.slane %v3907, 7
    %vm3911 = vcmask 1041409
    %v3912 = vsel %vm3911, %v3910, %v3906
    %3914 = vrot.lane.b32.xlu0 %v3912, 32
    %v3915 = vpop.permute.xlu0 %3914
    %v3917 = vrot.slane %v3915, 1
    %v3920 = vadd.f32 %v3904, %v3915
    %v3921 = vadd.f32 %v3905, %v3917
    %v3922 = vld [vmem:[#allocation6 + $0x2] sm:$0x1]
    %v3923 = vld [vmem:[#allocation6 + $0x12] sm:$0x1]
    %v3926 = vrot.slane %v3923, 7
    %v3927 = vsel %vm3911, %v3926, %v3922
    %3929 = vrot.lane.b32.xlu0 %v3927, 64
    %v3930 = vpop.permute.xlu0 %3929
    %v3932 = vrot.slane %v3930, 1
    %v3935 = vadd.f32 %v3920, %v3930
    %v3936 = vadd.f32 %v3921, %v3932
    %v3937 = vld [vmem:[#allocation6 + $0x3] sm:$0x1]
    %v3938 = vld [vmem:[#allocation6 + $0x13] sm:$0x1]
    %v3941 = vrot.slane %v3938, 7
    %v3942 = vsel %vm3911, %v3941, %v3937
    %3944 = vrot.lane.b32.xlu0 %v3942, 96
    %v3945 = vpop.permute.xlu0 %3944
    %v3947 = vrot.slane %v3945, 1
    %v3950 = vadd.f32 %v3935, %v3945
    %v3951 = vadd.f32 %v3936, %v3947
    %v3952 = vld [vmem:[%s5] sm:$0xff]
    %v3953 = vld [vmem:[%s5 + $0x8] sm:$0xff]
    %v3954 = vld [vmem:[%s5 + $0x10] sm:$0xff]
    %v3955 = vld [vmem:[%s5 + $0x18] sm:$0xff]
    %v3956 = vld [vmem:[%s5 + $0x20] sm:$0xff]
    %v3957 = vld [vmem:[%s5 + $0x28] sm:$0xff]
    %v3958 = vld [vmem:[%s5 + $0x30] sm:$0xff]
    %v3959 = vld [vmem:[%s5 + $0x38] sm:$0xff]
    %v3960 = vld [vmem:[%s5 + $0x40] sm:$0xff]
    %v3961 = vld [vmem:[%s5 + $0x48] sm:$0xff]
    %v3962 = vld [vmem:[%s5 + $0x50] sm:$0xff]
    %v3963 = vld [vmem:[%s5 + $0x58] sm:$0xff]
    %v3964 = vld [vmem:[%s5 + $0x60] sm:$0xff]
    %v3965 = vld [vmem:[%s5 + $0x68] sm:$0xff]
    %v3966 = vld [vmem:[%s5 + $0x70] sm:$0xff]
    %v3967 = vld [vmem:[%s5 + $0x78] sm:$0xff]
    %s3968 = scalar_lea.vmem [#allocation6], 4
    %v3969 = vld [vmem:[%s3968] sm:$0x1]
    %v3970 = vld [vmem:[%s3968 + $0x10] sm:$0x1]
    %v3971 = vld [vmem:[%s3968 + $0x1] sm:$0x1]
    %v3972 = vld [vmem:[%s3968 + $0x11] sm:$0x1]
    %v3975 = vrot.slane %v3972, 7
    %v3976 = vsel %vm3911, %v3975, %v3971
    %3978 = vrot.lane.b32.xlu0 %v3976, 32
    %v3979 = vpop.permute.xlu0 %3978
    %v3981 = vrot.slane %v3979, 1
    %v3984 = vadd.f32 %v3969, %v3979
    %v3985 = vadd.f32 %v3970, %v3981
    %v3986 = vld [vmem:[%s3968 + $0x2] sm:$0x1]
    %v3987 = vld [vmem:[%s3968 + $0x12] sm:$0x1]
    %v3990 = vrot.slane %v3987, 7
    %v3991 = vsel %vm3911, %v3990, %v3986
    %3993 = vrot.lane.b32.xlu0 %v3991, 64
    %v3994 = vpop.permute.xlu0 %3993
    %v3996 = vrot.slane %v3994, 1
    %v3999 = vadd.f32 %v3984, %v3994
    %v4000 = vadd.f32 %v3985, %v3996
    %v4001 = vld [vmem:[%s3968 + $0x3] sm:$0x1]
    %v4002 = vld [vmem:[%s3968 + $0x13] sm:$0x1]
    %v4005 = vrot.slane %v4002, 7
    %v4006 = vsel %vm3911, %v4005, %v4001
    %4008 = vrot.lane.b32.xlu0 %v4006, 96
    %v4009 = vpop.permute.xlu0 %4008
    %v4011 = vrot.slane %v4009, 1
    %v4014 = vadd.f32 %v3999, %v4009
    %v4015 = vadd.f32 %v4000, %v4011
    %s4016 = scalar_lea.vmem %s5, 128
    %v4017 = vld [vmem:[%s4016] sm:$0xff]
    %v4018 = vld [vmem:[%s4016 + $0x8] sm:$0xff]
    %v4019 = vld [vmem:[%s4016 + $0x10] sm:$0xff]
    %v4020 = vld [vmem:[%s4016 + $0x18] sm:$0xff]
    %v4021 = vld [vmem:[%s4016 + $0x20] sm:$0xff]
    %v4022 = vld [vmem:[%s4016 + $0x28] sm:$0xff]
    %v4023 = vld [vmem:[%s4016 + $0x30] sm:$0xff]
    %v4024 = vld [vmem:[%s4016 + $0x38] sm:$0xff]
    %v4025 = vld [vmem:[%s4016 + $0x40] sm:$0xff]
    %v4026 = vld [vmem:[%s4016 + $0x48] sm:$0xff]
    %v4027 = vld [vmem:[%s4016 + $0x50] sm:$0xff]
    %v4028 = vld [vmem:[%s4016 + $0x58] sm:$0xff]
    %v4029 = vld [vmem:[%s4016 + $0x60] sm:$0xff]
    %v4030 = vld [vmem:[%s4016 + $0x68] sm:$0xff]
    %v4031 = vld [vmem:[%s4016 + $0x70] sm:$0xff]
    %v4032 = vld [vmem:[%s4016 + $0x78] sm:$0xff]
    %v4035 = vrot.slane %v4015, 7
    %v4036 = vsel %vm3911, %v4035, %v4014
    %4038 = vmatprep.subr.mxu0 0.0
    %4039 = vmatpush1.msra.mxu0 %v4017
    %4040 = vmatprep.subr.mxu0 0.0
    %4041 = vmatpush1.msra.mxu0 %v4018
    %4042 = vmatprep.subr.mxu0 0.0
    %4043 = vmatpush1.msra.mxu0 %v4019
    %4044 = vmatprep.subr.mxu0 0.0
    %4045 = vmatpush1.msra.mxu0 %v4020
    %4046 = vmatprep.subr.mxu0 0.0
    %4047 = vmatpush1.msra.mxu0 %v4021
    %4048 = vmatprep.subr.mxu0 0.0
    %4049 = vmatpush1.msra.mxu0 %v4022
    %4050 = vmatprep.subr.mxu0 0.0
    %4051 = vmatpush1.msra.mxu0 %v4023
    %4052 = vmatprep.subr.mxu0 0.0
    %4053 = vmatpush1.msra.mxu0 %v4024
    %4054 = vmatprep.subr.mxu0 0.0
    %4055 = vmatpush1.msra.mxu0 %v4025
    %4056 = vmatprep.subr.mxu0 0.0
    %4057 = vmatpush1.msra.mxu0 %v4026
    %4058 = vmatprep.subr.mxu0 0.0
    %4059 = vmatpush1.msra.mxu0 %v4027
    %4060 = vmatprep.subr.mxu0 0.0
    %4061 = vmatpush1.msra.mxu0 %v4028
    %4062 = vmatprep.subr.mxu0 0.0
    %4063 = vmatpush1.msra.mxu0 %v4029
    %4064 = vmatprep.subr.mxu0 0.0
    %4065 = vmatpush1.msra.mxu0 %v4030
    %4066 = vmatprep.subr.mxu0 0.0
    %4067 = vmatpush1.msra.mxu0 %v4031
    %4068 = vmatprep.subr.mxu0 0.0
    %4069 = vmatpush1.msra.mxu0 %v4032
    %4070 = vmatprep.subr.mxu0 0.0
    %4071 = vmatpush1.msra.mxu0 0.0
    %4072 = vmatprep.subr.mxu0 0.0
    %4073 = vmatpush1.msra.mxu0 0.0
    %4074 = vmatprep.subr.mxu0 0.0
    %4075 = vmatpush1.msra.mxu0 0.0
    %4076 = vmatprep.subr.mxu0 0.0
    %4077 = vmatpush1.msra.mxu0 0.0
    %4078 = vmatprep.subr.mxu0 0.0
    %4079 = vmatpush1.msra.mxu0 0.0
    %4080 = vmatprep.subr.mxu0 0.0
    %4081 = vmatpush1.msra.mxu0 0.0
    %4082 = vmatprep.subr.mxu0 0.0
    %4083 = vmatpush1.msra.mxu0 0.0
    %4084 = vmatprep.subr.mxu0 0.0
    %4085 = vmatpush1.msra.mxu0 0.0
    %4086 = vmatprep.subr.mxu0 0.0
    %4087 = vmatpush1.msra.mxu0 0.0
    %4088 = vmatprep.subr.mxu0 0.0
    %4089 = vmatpush1.msra.mxu0 0.0
    %4090 = vmatprep.subr.mxu0 0.0
    %4091 = vmatpush1.msra.mxu0 0.0
    %4092 = vmatprep.subr.mxu0 0.0
    %4093 = vmatpush1.msra.mxu0 0.0
    %4094 = vmatprep.subr.mxu0 0.0
    %4095 = vmatpush1.msra.mxu0 0.0
    %4096 = vmatprep.subr.mxu0 0.0
    %4097 = vmatpush1.msra.mxu0 0.0
    %4098 = vmatprep.subr.mxu0 0.0
    %4099 = vmatpush1.msra.mxu0 0.0
    %4100 = vmatprep.subr.mxu0 0.0
    %4101 = vmatpush1.msra.mxu0 0.0
    %4102 = vmatprep.mubr.f32.mxu0 0.0
    %4103 = vmatmul.mubr.f32.gmra.mrb[0].mxu0 %v4036
    %v4104 = vpop.f32.mrb[0].mxu0
    %v4105 = vadd.f32 0.0, %v4104
    %v4106 = vpop.f32.mrb[0].mxu0
    %4107 = vdwg.mxu0
    %v4110 = vrot.slane %v3951, 7
    %v4111 = vsel %vm3911, %v4110, %v3950
    %4113 = vmatprep.subr.mxu0 0.0
    %4114 = vmatpush1.msra.mxu0 %v3952
    %4115 = vmatprep.subr.mxu0 0.0
    %4116 = vmatpush1.msra.mxu0 %v3953
    %4117 = vmatprep.subr.mxu0 0.0
    %4118 = vmatpush1.msra.mxu0 %v3954
    %4119 = vmatprep.subr.mxu0 0.0
    %4120 = vmatpush1.msra.mxu0 %v3955
    %4121 = vmatprep.subr.mxu0 0.0
    %4122 = vmatpush1.msra.mxu0 %v3956
    %4123 = vmatprep.subr.mxu0 0.0
    %4124 = vmatpush1.msra.mxu0 %v3957
    %4125 = vmatprep.subr.mxu0 0.0
    %4126 = vmatpush1.msra.mxu0 %v3958
    %4127 = vmatprep.subr.mxu0 0.0
    %4128 = vmatpush1.msra.mxu0 %v3959
    %4129 = vmatprep.subr.mxu0 0.0
    %4130 = vmatpush1.msra.mxu0 %v3960
    %4131 = vmatprep.subr.mxu0 0.0
    %4132 = vmatpush1.msra.mxu0 %v3961
    %4133 = vmatprep.subr.mxu0 0.0
    %4134 = vmatpush1.msra.mxu0 %v3962
    %4135 = vmatprep.subr.mxu0 0.0
    %4136 = vmatpush1.msra.mxu0 %v3963
    %4137 = vmatprep.subr.mxu0 0.0
    %4138 = vmatpush1.msra.mxu0 %v3964
    %4139 = vmatprep.subr.mxu0 0.0
    %4140 = vmatpush1.msra.mxu0 %v3965
    %4141 = vmatprep.subr.mxu0 0.0
    %4142 = vmatpush1.msra.mxu0 %v3966
    %4143 = vmatprep.subr.mxu0 0.0
    %4144 = vmatpush1.msra.mxu0 %v3967
    %4145 = vmatprep.subr.mxu0 0.0
    %4146 = vmatpush1.msra.mxu0 0.0
    %4147 = vmatprep.subr.mxu0 0.0
    %4148 = vmatpush1.msra.mxu0 0.0
    %4149 = vmatprep.subr.mxu0 0.0
    %4150 = vmatpush1.msra.mxu0 0.0
    %4151 = vmatprep.subr.mxu0 0.0
    %4152 = vmatpush1.msra.mxu0 0.0
    %4153 = vmatprep.subr.mxu0 0.0
    %4154 = vmatpush1.msra.mxu0 0.0
    %4155 = vmatprep.subr.mxu0 0.0
    %4156 = vmatpush1.msra.mxu0 0.0
    %4157 = vmatprep.subr.mxu0 0.0
    %4158 = vmatpush1.msra.mxu0 0.0
    %4159 = vmatprep.subr.mxu0 0.0
    %4160 = vmatpush1.msra.mxu0 0.0
    %4161 = vmatprep.subr.mxu0 0.0
    %4162 = vmatpush1.msra.mxu0 0.0
    %4163 = vmatprep.subr.mxu0 0.0
    %4164 = vmatpush1.msra.mxu0 0.0
    %4165 = vmatprep.subr.mxu0 0.0
    %4166 = vmatpush1.msra.mxu0 0.0
    %4167 = vmatprep.subr.mxu0 0.0
    %4168 = vmatpush1.msra.mxu0 0.0
    %4169 = vmatprep.subr.mxu0 0.0
    %4170 = vmatpush1.msra.mxu0 0.0
    %4171 = vmatprep.subr.mxu0 0.0
    %4172 = vmatpush1.msra.mxu0 0.0
    %4173 = vmatprep.subr.mxu0 0.0
    %4174 = vmatpush1.msra.mxu0 0.0
    %4175 = vmatprep.subr.mxu0 0.0
    %4176 = vmatpush1.msra.mxu0 0.0
    %4177 = vmatprep.mubr.f32.mxu0 0.0
    %4178 = vmatmul.mubr.f32.gmra.mrb[0].mxu0 %v4111
    %v4179 = vpop.f32.mrb[0].mxu0
    %v4180 = vadd.f32 %v4105, %v4179
    %v4181 = vpop.f32.mrb[0].mxu0
    %4182 = vdwg.mxu0
    %s4183 = scalar_lea.vmem [#allocation6], 8
    %v4184 = vld [vmem:[%s4183] sm:$0x1]
    %v4185 = vld [vmem:[%s4183 + $0x10] sm:$0x1]
    %v4186 = vld [vmem:[%s4183 + $0x1] sm:$0x1]
    %v4187 = vld [vmem:[%s4183 + $0x11] sm:$0x1]
    %v4190 = vrot.slane %v4187, 7
    %v4191 = vsel %vm3911, %v4190, %v4186
    %4193 = vrot.lane.b32.xlu0 %v4191, 32
    %v4194 = vpop.permute.xlu0 %4193
    %v4196 = vrot.slane %v4194, 1
    %v4199 = vadd.f32 %v4184, %v4194
    %v4200 = vadd.f32 %v4185, %v4196
    %v4201 = vld [vmem:[%s4183 + $0x2] sm:$0x1]
    %v4202 = vld [vmem:[%s4183 + $0x12] sm:$0x1]
    %v4205 = vrot.slane %v4202, 7
    %v4206 = vsel %vm3911, %v4205, %v4201
    %4208 = vrot.lane.b32.xlu0 %v4206, 64
    %v4209 = vpop.permute.xlu0 %4208
    %v4211 = vrot.slane %v4209, 1
    %v4214 = vadd.f32 %v4199, %v4209
    %v4215 = vadd.f32 %v4200, %v4211
    %v4216 = vld [vmem:[%s4183 + $0x3] sm:$0x1]
    %v4217 = vld [vmem:[%s4183 + $0x13] sm:$0x1]
    %v4220 = vrot.slane %v4217, 7
    %v4221 = vsel %vm3911, %v4220, %v4216
    %4223 = vrot.lane.b32.xlu0 %v4221, 96
    %v4224 = vpop.permute.xlu0 %4223
    %v4226 = vrot.slane %v4224, 1
    %v4229 = vadd.f32 %v4214, %v4224
    %v4230 = vadd.f32 %v4215, %v4226
    %s4231 = scalar_lea.vmem %s5, 256
    %v4232 = vld [vmem:[%s4231] sm:$0xff]
    %v4233 = vld [vmem:[%s4231 + $0x8] sm:$0xff]
    %v4234 = vld [vmem:[%s4231 + $0x10] sm:$0xff]
    %v4235 = vld [vmem:[%s4231 + $0x18] sm:$0xff]
    %v4236 = vld [vmem:[%s4231 + $0x20] sm:$0xff]
    %v4237 = vld [vmem:[%s4231 + $0x28] sm:$0xff]
    %v4238 = vld [vmem:[%s4231 + $0x30] sm:$0xff]
    %v4239 = vld [vmem:[%s4231 + $0x38] sm:$0xff]
    %v4240 = vld [vmem:[%s4231 + $0x40] sm:$0xff]
    %v4241 = vld [vmem:[%s4231 + $0x48] sm:$0xff]
    %v4242 = vld [vmem:[%s4231 + $0x50] sm:$0xff]
    %v4243 = vld [vmem:[%s4231 + $0x58] sm:$0xff]
    %v4244 = vld [vmem:[%s4231 + $0x60] sm:$0xff]
    %v4245 = vld [vmem:[%s4231 + $0x68] sm:$0xff]
    %v4246 = vld [vmem:[%s4231 + $0x70] sm:$0xff]
    %v4247 = vld [vmem:[%s4231 + $0x78] sm:$0xff]
    %v4250 = vrot.slane %v4230, 7
    %v4251 = vsel %vm3911, %v4250, %v4229
    %4253 = vmatprep.subr.mxu0 0.0
    %4254 = vmatpush1.msra.mxu0 %v4232
    %4255 = vmatprep.subr.mxu0 0.0
    %4256 = vmatpush1.msra.mxu0 %v4233
    %4257 = vmatprep.subr.mxu0 0.0
    %4258 = vmatpush1.msra.mxu0 %v4234
    %4259 = vmatprep.subr.mxu0 0.0
    %4260 = vmatpush1.msra.mxu0 %v4235
    %4261 = vmatprep.subr.mxu0 0.0
    %4262 = vmatpush1.msra.mxu0 %v4236
    %4263 = vmatprep.subr.mxu0 0.0
    %4264 = vmatpush1.msra.mxu0 %v4237
    %4265 = vmatprep.subr.mxu0 0.0
    %4266 = vmatpush1.msra.mxu0 %v4238
    %4267 = vmatprep.subr.mxu0 0.0
    %4268 = vmatpush1.msra.mxu0 %v4239
    %4269 = vmatprep.subr.mxu0 0.0
    %4270 = vmatpush1.msra.mxu0 %v4240
    %4271 = vmatprep.subr.mxu0 0.0
    %4272 = vmatpush1.msra.mxu0 %v4241
    %4273 = vmatprep.subr.mxu0 0.0
    %4274 = vmatpush1.msra.mxu0 %v4242
    %4275 = vmatprep.subr.mxu0 0.0
    %4276 = vmatpush1.msra.mxu0 %v4243
    %4277 = vmatprep.subr.mxu0 0.0
    %4278 = vmatpush1.msra.mxu0 %v4244
    %4279 = vmatprep.subr.mxu0 0.0
    %4280 = vmatpush1.msra.mxu0 %v4245
    %4281 = vmatprep.subr.mxu0 0.0
    %4282 = vmatpush1.msra.mxu0 %v4246
    %4283 = vmatprep.subr.mxu0 0.0
    %4284 = vmatpush1.msra.mxu0 %v4247
    %4285 = vmatprep.subr.mxu0 0.0
    %4286 = vmatpush1.msra.mxu0 0.0
    %4287 = vmatprep.subr.mxu0 0.0
    %4288 = vmatpush1.msra.mxu0 0.0
    %4289 = vmatprep.subr.mxu0 0.0
    %4290 = vmatpush1.msra.mxu0 0.0
    %4291 = vmatprep.subr.mxu0 0.0
    %4292 = vmatpush1.msra.mxu0 0.0
    %4293 = vmatprep.subr.mxu0 0.0
    %4294 = vmatpush1.msra.mxu0 0.0
    %4295 = vmatprep.subr.mxu0 0.0
    %4296 = vmatpush1.msra.mxu0 0.0
    %4297 = vmatprep.subr.mxu0 0.0
    %4298 = vmatpush1.msra.mxu0 0.0
    %4299 = vmatprep.subr.mxu0 0.0
    %4300 = vmatpush1.msra.mxu0 0.0
    %4301 = vmatprep.subr.mxu0 0.0
    %4302 = vmatpush1.msra.mxu0 0.0
    %4303 = vmatprep.subr.mxu0 0.0
    %4304 = vmatpush1.msra.mxu0 0.0
    %4305 = vmatprep.subr.mxu0 0.0
    %4306 = vmatpush1.msra.mxu0 0.0
    %4307 = vmatprep.subr.mxu0 0.0
    %4308 = vmatpush1.msra.mxu0 0.0
    %4309 = vmatprep.subr.mxu0 0.0
    %4310 = vmatpush1.msra.mxu0 0.0
    %4311 = vmatprep.subr.mxu0 0.0
    %4312 = vmatpush1.msra.mxu0 0.0
    %4313 = vmatprep.subr.mxu0 0.0
    %4314 = vmatpush1.msra.mxu0 0.0
    %4315 = vmatprep.subr.mxu0 0.0
    %4316 = vmatpush1.msra.mxu0 0.0
    %4317 = vmatprep.mubr.f32.mxu0 0.0
    %4318 = vmatmul.mubr.f32.gmra.mrb[0].mxu0 %v4251
    %v4319 = vpop.f32.mrb[0].mxu0
    %v4320 = vadd.f32 0.0, %v4319
    %v4321 = vpop.f32.mrb[0].mxu0
    %4322 = vdwg.mxu0
    %v4323 = vadd.f32 %v4180, %v4320
    %s4324 = scalar_lea.vmem [#allocation6], 12
    %v4325 = vld [vmem:[%s4324] sm:$0x1]
    %v4326 = vld [vmem:[%s4324 + $0x10] sm:$0x1]
    %v4327 = vld [vmem:[%s4324 + $0x1] sm:$0x1]
    %v4328 = vld [vmem:[%s4324 + $0x11] sm:$0x1]
    %v4331 = vrot.slane %v4328, 7
    %v4332 = vsel %vm3911, %v4331, %v4327
    %4334 = vrot.lane.b32.xlu0 %v4332, 32
    %v4335 = vpop.permute.xlu0 %4334
    %v4337 = vrot.slane %v4335, 1
    %v4340 = vadd.f32 %v4325, %v4335
    %v4341 = vadd.f32 %v4326, %v4337
    %v4342 = vld [vmem:[%s4324 + $0x2] sm:$0x1]
    %v4343 = vld [vmem:[%s4324 + $0x12] sm:$0x1]
    %v4346 = vrot.slane %v4343, 7
    %v4347 = vsel %vm3911, %v4346, %v4342
    %4349 = vrot.lane.b32.xlu0 %v4347, 64
    %v4350 = vpop.permute.xlu0 %4349
    %v4352 = vrot.slane %v4350, 1
    %v4355 = vadd.f32 %v4340, %v4350
    %v4356 = vadd.f32 %v4341, %v4352
    %v4357 = vld [vmem:[%s4324 + $0x3] sm:$0x1]
    %v4358 = vld [vmem:[%s4324 + $0x13] sm:$0x1]
    %v4361 = vrot.slane %v4358, 7
    %v4362 = vsel %vm3911, %v4361, %v4357
    %4364 = vrot.lane.b32.xlu0 %v4362, 96
    %v4365 = vpop.permute.xlu0 %4364
    %v4367 = vrot.slane %v4365, 1
    %v4370 = vadd.f32 %v4355, %v4365
    %v4371 = vadd.f32 %v4356, %v4367
    %s4372 = scalar_lea.vmem %s5, 384
    %v4373 = vld [vmem:[%s4372] sm:$0xff]
    %v4374 = vld [vmem:[%s4372 + $0x8] sm:$0xff]
    %v4375 = vld [vmem:[%s4372 + $0x10] sm:$0xff]
    %v4376 = vld [vmem:[%s4372 + $0x18] sm:$0xff]
    %v4377 = vld [vmem:[%s4372 + $0x20] sm:$0xff]
    %v4378 = vld [vmem:[%s4372 + $0x28] sm:$0xff]
    %v4379 = vld [vmem:[%s4372 + $0x30] sm:$0xff]
    %v4380 = vld [vmem:[%s4372 + $0x38] sm:$0xff]
    %v4381 = vld [vmem:[%s4372 + $0x40] sm:$0xff]
    %v4382 = vld [vmem:[%s4372 + $0x48] sm:$0xff]
    %v4383 = vld [vmem:[%s4372 + $0x50] sm:$0xff]
    %v4384 = vld [vmem:[%s4372 + $0x58] sm:$0xff]
    %v4385 = vld [vmem:[%s4372 + $0x60] sm:$0xff]
    %v4386 = vld [vmem:[%s4372 + $0x68] sm:$0xff]
    %v4387 = vld [vmem:[%s4372 + $0x70] sm:$0xff]
    %v4388 = vld [vmem:[%s4372 + $0x78] sm:$0xff]
    %v4391 = vrot.slane %v4371, 7
    %v4392 = vsel %vm3911, %v4391, %v4370
    %4394 = vmatprep.subr.mxu0 0.0
    %4395 = vmatpush1.msra.mxu0 %v4373
    %4396 = vmatprep.subr.mxu0 0.0
    %4397 = vmatpush1.msra.mxu0 %v4374
    %4398 = vmatprep.subr.mxu0 0.0
    %4399 = vmatpush1.msra.mxu0 %v4375
    %4400 = vmatprep.subr.mxu0 0.0
    %4401 = vmatpush1.msra.mxu0 %v4376
    %4402 = vmatprep.subr.mxu0 0.0
    %4403 = vmatpush1.msra.mxu0 %v4377
    %4404 = vmatprep.subr.mxu0 0.0
    %4405 = vmatpush1.msra.mxu0 %v4378
    %4406 = vmatprep.subr.mxu0 0.0
    %4407 = vmatpush1.msra.mxu0 %v4379
    %4408 = vmatprep.subr.mxu0 0.0
    %4409 = vmatpush1.msra.mxu0 %v4380
    %4410 = vmatprep.subr.mxu0 0.0
    %4411 = vmatpush1.msra.mxu0 %v4381
    %4412 = vmatprep.subr.mxu0 0.0
    %4413 = vmatpush1.msra.mxu0 %v4382
    %4414 = vmatprep.subr.mxu0 0.0
    %4415 = vmatpush1.msra.mxu0 %v4383
    %4416 = vmatprep.subr.mxu0 0.0
    %4417 = vmatpush1.msra.mxu0 %v4384
    %4418 = vmatprep.subr.mxu0 0.0
    %4419 = vmatpush1.msra.mxu0 %v4385
    %4420 = vmatprep.subr.mxu0 0.0
    %4421 = vmatpush1.msra.mxu0 %v4386
    %4422 = vmatprep.subr.mxu0 0.0
    %4423 = vmatpush1.msra.mxu0 %v4387
    %4424 = vmatprep.subr.mxu0 0.0
    %4425 = vmatpush1.msra.mxu0 %v4388
    %4426 = vmatprep.subr.mxu0 0.0
    %4427 = vmatpush1.msra.mxu0 0.0
    %4428 = vmatprep.subr.mxu0 0.0
    %4429 = vmatpush1.msra.mxu0 0.0
    %4430 = vmatprep.subr.mxu0 0.0
    %4431 = vmatpush1.msra.mxu0 0.0
    %4432 = vmatprep.subr.mxu0 0.0
    %4433 = vmatpush1.msra.mxu0 0.0
    %4434 = vmatprep.subr.mxu0 0.0
    %4435 = vmatpush1.msra.mxu0 0.0
    %4436 = vmatprep.subr.mxu0 0.0
    %4437 = vmatpush1.msra.mxu0 0.0
    %4438 = vmatprep.subr.mxu0 0.0
    %4439 = vmatpush1.msra.mxu0 0.0
    %4440 = vmatprep.subr.mxu0 0.0
    %4441 = vmatpush1.msra.mxu0 0.0
    %4442 = vmatprep.subr.mxu0 0.0
    %4443 = vmatpush1.msra.mxu0 0.0
    %4444 = vmatprep.subr.mxu0 0.0
    %4445 = vmatpush1.msra.mxu0 0.0
    %4446 = vmatprep.subr.mxu0 0.0
    %4447 = vmatpush1.msra.mxu0 0.0
    %4448 = vmatprep.subr.mxu0 0.0
    %4449 = vmatpush1.msra.mxu0 0.0
    %4450 = vmatprep.subr.mxu0 0.0
    %4451 = vmatpush1.msra.mxu0 0.0
    %4452 = vmatprep.subr.mxu0 0.0
    %4453 = vmatpush1.msra.mxu0 0.0
    %4454 = vmatprep.subr.mxu0 0.0
    %4455 = vmatpush1.msra.mxu0 0.0
    %4456 = vmatprep.subr.mxu0 0.0
    %4457 = vmatpush1.msra.mxu0 0.0
    %4458 = vmatprep.mubr.f32.mxu0 0.0
    %4459 = vmatmul.mubr.f32.gmra.mrb[0].mxu0 %v4392
    %v4460 = vpop.f32.mrb[0].mxu0
    %v4461 = vadd.f32 0.0, %v4460
    %v4462 = vpop.f32.mrb[0].mxu0
    %4463 = vdwg.mxu0
    %v4464 = vadd.f32 %v4323, %v4461
    %v4465 = vld [vmem:[%s6] sm:$0x1]
    %v4467 = vlaneseq
    %v4468 = vshrl.u32 %v4467, 7
    %v4469 = vsub.s32 0, %v4468
    %v4470 = vrot.slane %v4465, %v4469
    %v4472 = vadd.f32 %v4464, %v4470
    %v4473 = vmax.f32 %v4472, 0.0
    %v4474 = vld [vmem:[%s7] sm:$0xff]
    %v4475 = vld [vmem:[%s7 + $0x8] sm:$0xff]
    %v4476 = vld [vmem:[%s7 + $0x10] sm:$0xff]
    %v4477 = vld [vmem:[%s7 + $0x18] sm:$0xff]
    %v4478 = vld [vmem:[%s7 + $0x20] sm:$0xff]
    %v4479 = vld [vmem:[%s7 + $0x28] sm:$0xff]
    %v4480 = vld [vmem:[%s7 + $0x30] sm:$0x3]
    %v4481 = vld [vmem:[%s8] sm:$0x1]
    %v4483 = vlaneseq
    %v4484 = vshrl.u32 %v4483, 7
    %v4485 = vsub.s32 0, %v4484
    %v4486 = vrot.slane %v4481, %v4485
    %v4489 = vsel %vm2657, %v4473, 0
    %v4492 = vsel %vm2706, %v4480, 0
    %4494 = vmatprep.subr.mxu0 0.0
    %4495 = vmatpush1.msra.mxu0 %v4474
    %4496 = vmatprep.subr.mxu0 0.0
    %4497 = vmatpush1.msra.mxu0 %v4475
    %4498 = vmatprep.subr.mxu0 0.0
    %4499 = vmatpush1.msra.mxu0 %v4476
    %4500 = vmatprep.subr.mxu0 0.0
    %4501 = vmatpush1.msra.mxu0 %v4477
    %4502 = vmatprep.subr.mxu0 0.0
    %4503 = vmatpush1.msra.mxu0 %v4478
    %4504 = vmatprep.subr.mxu0 0.0
    %4505 = vmatpush1.msra.mxu0 %v4479
    %4506 = vmatprep.subr.mxu0 0.0
    %4507 = vmatpush1.msra.mxu0 %v4492
    %4508 = vmatprep.subr.mxu0 0.0
    %4509 = vmatpush1.msra.mxu0 0.0
    %4510 = vmatprep.subr.mxu0 0.0
    %4511 = vmatpush1.msra.mxu0 0.0
    %4512 = vmatprep.subr.mxu0 0.0
    %4513 = vmatpush1.msra.mxu0 0.0
    %4514 = vmatprep.subr.mxu0 0.0
    %4515 = vmatpush1.msra.mxu0 0.0
    %4516 = vmatprep.subr.mxu0 0.0
    %4517 = vmatpush1.msra.mxu0 0.0
    %4518 = vmatprep.subr.mxu0 0.0
    %4519 = vmatpush1.msra.mxu0 0.0
    %4520 = vmatprep.subr.mxu0 0.0
    %4521 = vmatpush1.msra.mxu0 0.0
    %4522 = vmatprep.subr.mxu0 0.0
    %4523 = vmatpush1.msra.mxu0 0.0
    %4524 = vmatprep.subr.mxu0 0.0
    %4525 = vmatpush1.msra.mxu0 0.0
    %4526 = vmatprep.subr.mxu0 0.0
    %4527 = vmatpush1.msra.mxu0 0.0
    %4528 = vmatprep.subr.mxu0 0.0
    %4529 = vmatpush1.msra.mxu0 0.0
    %4530 = vmatprep.subr.mxu0 0.0
    %4531 = vmatpush1.msra.mxu0 0.0
    %4532 = vmatprep.subr.mxu0 0.0
    %4533 = vmatpush1.msra.mxu0 0.0
    %4534 = vmatprep.subr.mxu0 0.0
    %4535 = vmatpush1.msra.mxu0 0.0
    %4536 = vmatprep.subr.mxu0 0.0
    %4537 = vmatpush1.msra.mxu0 0.0
    %4538 = vmatprep.subr.mxu0 0.0
    %4539 = vmatpush1.msra.mxu0 0.0
    %4540 = vmatprep.subr.mxu0 0.0
    %4541 = vmatpush1.msra.mxu0 0.0
    %4542 = vmatprep.subr.mxu0 0.0
    %4543 = vmatpush1.msra.mxu0 0.0
    %4544 = vmatprep.subr.mxu0 0.0
    %4545 = vmatpush1.msra.mxu0 0.0
    %4546 = vmatprep.subr.mxu0 0.0
    %4547 = vmatpush1.msra.mxu0 0.0
    %4548 = vmatprep.subr.mxu0 0.0
    %4549 = vmatpush1.msra.mxu0 0.0
    %4550 = vmatprep.subr.mxu0 0.0
    %4551 = vmatpush1.msra.mxu0 0.0
    %4552 = vmatprep.subr.mxu0 0.0
    %4553 = vmatpush1.msra.mxu0 0.0
    %4554 = vmatprep.subr.mxu0 0.0
    %4555 = vmatpush1.msra.mxu0 0.0
    %4556 = vmatprep.subr.mxu0 0.0
    %4557 = vmatpush1.msra.mxu0 0.0
    %4558 = vmatprep.mubr.f32.mxu0 0.0
    %4559 = vmatmul.mubr.f32.gmra.mrb[0].mxu0 %v4489
    %v4560 = vpop.f32.mrb[0].mxu0
    %v4561 = vadd.f32 %v4486, %v4560
    %v4562 = vpop.f32.mrb[0].mxu0
    %4563 = vdwg.mxu0
    %vm4564 = vcmask 74752
    %v4565 = vsel %vm4564, %v4561, -inf
    %4566 = vmax.xlane.f32.xlu0 %v4565
    %v4567 = vpop.xlane.xlu0 %4566
    %v4568 = vsub.f32 %v4561, %v4567
    %v4569 = vmul.f32 %v4568, 1.442695
    %v4570 = vpow.pop %v4569
    %v4571 = vsel %vm4564, %v4570, 0.0
    %4572 = vadd.xlane.f32.xlu0 %v4571
    %v4573 = vpop.xlane.xlu0 %4572
    %v4574 = vlog2.pop %v4573
    %v4575 = vmul.f32 %v4574, 0.6931472
    %v4576 = vsub.f32 %v4568, %v4575
    %4577 = vst.msk [vmem:[#allocation7] sm:$0x3] %vm4564, %v4576
    // Predicated region
    $region38: #{net_forward.1} parent=1 // pred_check
      _
    $region39: #{net_forward.1} parent=1 // pred_check_branch
      %4579 = sbr.rel (0) target = $region41
    $region40: #{net_forward.1} parent=1 // pred_region
      %s4581 = ssub.s32 32, 32
      %4582 = vsyncadd [#allocation8], %s4581
      %s4584 = sshll.u32 [#allocation7], 4
      %s4585 = int_to_ptr.vmem [resolvable:$true] %s4584
      %4587 = dma.vmem_to_hbm [thread:$0]  %s4585, 32, %s9, [#allocation8]
    $region41: #{net_forward.1} parent=1 // pred_fallthru
      _
    // Predicated region
    $region42: #{net_forward.1} parent=1 // pred_check
      _
    $region43: #{net_forward.1} parent=1 // pred_check_branch
      %4589 = sbr.rel (0) target = $region45
    $region44: #{net_forward.1} parent=1 // pred_region
      %4590 = dma.done [#allocation8], 32
    $region45: #{net_forward.1} parent=1 // pred_fallthru
      _
    %4591 = vsyncpa [#allocation8], 1

</llo_original>
